<compile_context>
chip_gen: v7x
topology: tpu7x:2x2x1
jax: 0.10.0
libtpu: 0.0.40
codegen_flags: <defaults>
</compile_context>

<pallas_src>
import functools

import jax
import jax.numpy as jnp
from jax.experimental import pallas as pl
from jax.experimental.pallas import tpu as pltpu

LN_EPS = 1e-6  # module explicitly uses nn.LayerNorm(d_model, eps=1e-06)


def _row_tile(M):
    """Pick a row tile that is a multiple of 8, divides M, and gives grid>=2."""
    for tm in (256, 128, 64, 32, 16, 8):
        if M % tm == 0 and M // tm >= 2:
            return tm
    return M


# ----------------------------------------------------------------------------
# Kernels
# ----------------------------------------------------------------------------
def _qkv_kernel(x_ref, w_ref, b_ref, q_ref, k_ref, v_ref):
    # x: (tm, D) bf16, w: (D, 3D) bf16 (scale folded into the Q third).
    y = jnp.dot(x_ref[...], w_ref[...], preferred_element_type=jnp.float32)
    y = y + b_ref[...].astype(jnp.float32)
    D = q_ref.shape[-1]
    q_ref[...] = y[:, 0:D].astype(q_ref.dtype)
    k_ref[...] = y[:, D:2 * D].astype(k_ref.dtype)
    v_ref[...] = y[:, 2 * D:3 * D].astype(v_ref.dtype)


def _attention_kernel(q_ref, k_ref, v_ref, ctx_ref, attn_ref, *, nhead):
    # Blocks are (1, S, D): one batch element, all heads.  Scale is already
    # folded into the Q projection, so scores are just q @ k^T.
    q = q_ref[0]          # (S, D) bf16
    k = k_ref[0]
    v = v_ref[0]
    S, D = q.shape
    Dh = D // nhead

    ctx_parts = []
    attn_acc = jnp.zeros((S, S), jnp.float32)
    for h in range(nhead):                       # static unrolled head loop
        lo, hi = h * Dh, (h + 1) * Dh
        qh, kh, vh = q[:, lo:hi], k[:, lo:hi], v[:, lo:hi]
        s = jax.lax.dot_general(                 # (S, S), f32 accumulation
            qh, kh, (((1,), (1,)), ((), ())),
            preferred_element_type=jnp.float32)
        m = jnp.max(s, axis=-1, keepdims=True)
        e = jnp.exp(s - m)
        p = e * pl.reciprocal(jnp.sum(e, axis=-1, keepdims=True), approx=True)
        ctxh = jnp.dot(p.astype(vh.dtype), vh,
                       preferred_element_type=jnp.float32)
        ctx_parts.append(ctxh)
        attn_acc = attn_acc + p

    ctx = jnp.concatenate(ctx_parts, axis=-1)    # (S, D)
    ctx_ref[0] = ctx.astype(ctx_ref.dtype)
    attn_ref[0] = (attn_acc * (1.0 / nhead)).astype(attn_ref.dtype)


def _proj_residual_ln_kernel(ctx_ref, w_ref, b_ref, res_ref, g_ref, bln_ref,
                             o_ref, *, eps):
    # out = LayerNorm(residual + ctx @ wo + bo)
    y = jnp.dot(ctx_ref[...], w_ref[...], preferred_element_type=jnp.float32)
    y = y + b_ref[...].astype(jnp.float32) + res_ref[...].astype(jnp.float32)
    mu = jnp.mean(y, axis=-1, keepdims=True)
    var = jnp.mean((y - mu) * (y - mu), axis=-1, keepdims=True)
    yn = (y - mu) * jax.lax.rsqrt(var + eps)
    o_ref[...] = (yn * g_ref[...].astype(jnp.float32)
                  + bln_ref[...].astype(jnp.float32)).astype(o_ref.dtype)


def _ffn_residual_ln_kernel(x_ref, w1_ref, b1_ref, w2_ref, b2_ref, g_ref,
                            bln_ref, o_ref, *, eps):
    # out = LayerNorm(x + relu(x @ w1 + b1) @ w2 + b2); hidden stays in VMEM.
    x = x_ref[...]
    h = jnp.dot(x, w1_ref[...], preferred_element_type=jnp.float32)
    h = jnp.maximum(h + b1_ref[...].astype(jnp.float32), 0.0)
    y = jnp.dot(h.astype(x.dtype), w2_ref[...],
                preferred_element_type=jnp.float32)
    y = y + b2_ref[...].astype(jnp.float32) + x.astype(jnp.float32)
    mu = jnp.mean(y, axis=-1, keepdims=True)
    var = jnp.mean((y - mu) * (y - mu), axis=-1, keepdims=True)
    yn = (y - mu) * jax.lax.rsqrt(var + eps)
    o_ref[...] = (yn * g_ref[...].astype(jnp.float32)
                  + bln_ref[...].astype(jnp.float32)).astype(o_ref.dtype)


def _layernorm_kernel(x_ref, g_ref, b_ref, o_ref, *, eps):
    x = x_ref[...].astype(jnp.float32)
    mu = jnp.mean(x, axis=-1, keepdims=True)
    var = jnp.mean((x - mu) * (x - mu), axis=-1, keepdims=True)
    xn = (x - mu) * jax.lax.rsqrt(var + eps)
    o_ref[...] = (xn * g_ref[...].astype(jnp.float32)
                  + b_ref[...].astype(jnp.float32)).astype(o_ref.dtype)


# ----------------------------------------------------------------------------
# Wrappers
# ----------------------------------------------------------------------------
_PARALLEL1 = pltpu.CompilerParams(dimension_semantics=("parallel",))


def qkv_projection(x2d, wqkv, bqkv):
    M, D = x2d.shape
    threeD = wqkv.shape[1]
    tm = _row_tile(M)
    return pl.pallas_call(
        _qkv_kernel,
        out_shape=tuple(jax.ShapeDtypeStruct((M, D), x2d.dtype) for _ in range(3)),
        grid=(M // tm,),
        in_specs=[
            pl.BlockSpec((tm, D), lambda i: (i, 0)),
            pl.BlockSpec((D, threeD), lambda i: (0, 0)),
            pl.BlockSpec((1, threeD), lambda i: (0, 0)),
        ],
        out_specs=tuple(pl.BlockSpec((tm, D), lambda i: (i, 0)) for _ in range(3)),
        compiler_params=_PARALLEL1,
    )(x2d, wqkv, bqkv)


def attention(q, k, v, nhead):
    B, S, D = q.shape
    assert D % nhead == 0
    return pl.pallas_call(
        functools.partial(_attention_kernel, nhead=nhead),
        out_shape=(
            jax.ShapeDtypeStruct((B, S, D), q.dtype),
            jax.ShapeDtypeStruct((B, S, S), q.dtype),
        ),
        grid=(B,),
        in_specs=[pl.BlockSpec((1, S, D), lambda b: (b, 0, 0)) for _ in range(3)],
        out_specs=(
            pl.BlockSpec((1, S, D), lambda b: (b, 0, 0)),
            pl.BlockSpec((1, S, S), lambda b: (b, 0, 0)),
        ),
        compiler_params=_PARALLEL1,
    )(q, k, v)


def attn_out_residual_ln(ctx2d, wo, bo, res2d, gamma, beta):
    M, D = ctx2d.shape
    tm = _row_tile(M)
    return pl.pallas_call(
        functools.partial(_proj_residual_ln_kernel, eps=LN_EPS),
        out_shape=jax.ShapeDtypeStruct((M, D), ctx2d.dtype),
        grid=(M // tm,),
        in_specs=[
            pl.BlockSpec((tm, D), lambda i: (i, 0)),
            pl.BlockSpec((D, D), lambda i: (0, 0)),
            pl.BlockSpec((1, D), lambda i: (0, 0)),
            pl.BlockSpec((tm, D), lambda i: (i, 0)),
            pl.BlockSpec((1, D), lambda i: (0, 0)),
            pl.BlockSpec((1, D), lambda i: (0, 0)),
        ],
        out_specs=pl.BlockSpec((tm, D), lambda i: (i, 0)),
        compiler_params=_PARALLEL1,
    )(ctx2d, wo, bo, res2d, gamma, beta)


def ffn_residual_ln(x2d, w1, b1, w2, b2, gamma, beta):
    M, D = x2d.shape
    F = w1.shape[1]
    tm = _row_tile(M)
    return pl.pallas_call(
        functools.partial(_ffn_residual_ln_kernel, eps=LN_EPS),
        out_shape=jax.ShapeDtypeStruct((M, D), x2d.dtype),
        grid=(M // tm,),
        in_specs=[
            pl.BlockSpec((tm, D), lambda i: (i, 0)),
            pl.BlockSpec((D, F), lambda i: (0, 0)),
            pl.BlockSpec((1, F), lambda i: (0, 0)),
            pl.BlockSpec((F, D), lambda i: (0, 0)),
            pl.BlockSpec((1, D), lambda i: (0, 0)),
            pl.BlockSpec((1, D), lambda i: (0, 0)),
            pl.BlockSpec((1, D), lambda i: (0, 0)),
        ],
        out_specs=pl.BlockSpec((tm, D), lambda i: (i, 0)),
        compiler_params=_PARALLEL1,
    )(x2d, w1, b1, w2, b2, gamma, beta)


def layernorm(x2d, gamma, beta):
    M, D = x2d.shape
    tm = _row_tile(M)
    return pl.pallas_call(
        functools.partial(_layernorm_kernel, eps=LN_EPS),
        out_shape=jax.ShapeDtypeStruct((M, D), x2d.dtype),
        grid=(M // tm,),
        in_specs=[
            pl.BlockSpec((tm, D), lambda i: (i, 0)),
            pl.BlockSpec((1, D), lambda i: (0, 0)),
            pl.BlockSpec((1, D), lambda i: (0, 0)),
        ],
        out_specs=pl.BlockSpec((tm, D), lambda i: (i, 0)),
        compiler_params=_PARALLEL1,
    )(x2d, gamma, beta)


# ----------------------------------------------------------------------------
# Transformer encoder forward (post-norm, dropout=0, expert_counts=1)
# ----------------------------------------------------------------------------
def encoder_layer_forward(x, p, nhead):
    B, S, D = x.shape
    x2 = x.reshape(B * S, D)                 # layout-preserving, no copy

    # self-attention (normalize_before=False => src1 = src)
    q2, k2, v2 = qkv_projection(x2, p["wqkv"], p["bqkv"])
    q = q2.reshape(B, S, D)
    k = k2.reshape(B, S, D)
    v = v2.reshape(B, S, D)
    ctx, attn = attention(q, k, v, nhead)    # attn already head-averaged

    # output projection + residual + post-norm (fused)
    x2 = attn_out_residual_ln(ctx.reshape(B * S, D), p["wo"], p["bo"],
                              x2, p["ln1_g"], p["ln1_b"])

    # FFN (MultiwayNetwork with expert_counts=1) + residual + post-norm (fused)
    out2 = ffn_residual_ln(x2, p["w1"], p["b1"], p["w2"], p["b2"],
                           p["ln2_g"], p["ln2_b"])
    return out2.reshape(B, S, D), attn


def transformer_encoder_forward(x, params, nhead):
    attn_list = []
    out = x
    for layer_p in params["layers"]:
        out, attn = encoder_layer_forward(out, layer_p, nhead)
        attn_list.append(attn)
    B, S, D = out.shape
    out2 = layernorm(out.reshape(B * S, D), params["ln_g"], params["ln_b"])
    return out2.reshape(B, S, D), attn_list


# ----------------------------------------------------------------------------
# Deterministic parameter init (bf16 storage; QKV fused, scale folded into Q)
# ----------------------------------------------------------------------------
def init_params(key, num_layers, d_model, d_ffn, nhead, dtype=jnp.bfloat16):
    def dense(k, fan_in, fan_out):
        kw, kb = jax.random.split(k)
        scale = 1.0 / (fan_in ** 0.5)
        w = jax.random.uniform(kw, (fan_in, fan_out), jnp.float32, -scale, scale)
        b = jax.random.uniform(kb, (fan_out,), jnp.float32, -scale, scale)
        return w, b

    head_dim = d_model // nhead
    q_scale = 1.0 / (head_dim ** 0.5)

    layers = []
    for i in range(num_layers):
        keys = jax.random.split(jax.random.fold_in(key, i), 6)
        wq, bq = dense(keys[0], d_model, d_model)
        wk, bk = dense(keys[1], d_model, d_model)
        wv, bv = dense(keys[2], d_model, d_model)
        wo, bo = dense(keys[3], d_model, d_model)
        w1, b1 = dense(keys[4], d_model, d_ffn)
        w2, b2 = dense(keys[5], d_ffn, d_model)
        # fold the 1/sqrt(head_dim) attention scale into the Q projection
        wqkv = jnp.concatenate([wq * q_scale, wk, wv], axis=1)
        bqkv = jnp.concatenate([bq * q_scale, bk, bv], axis=0)
        layers.append(dict(
            wqkv=wqkv.astype(dtype),
            bqkv=bqkv.reshape(1, 3 * d_model).astype(dtype),
            wo=wo.astype(dtype), bo=bo.reshape(1, d_model).astype(dtype),
            w1=w1.astype(dtype), b1=b1.reshape(1, d_ffn).astype(dtype),
            w2=w2.astype(dtype), b2=b2.reshape(1, d_model).astype(dtype),
            ln1_g=jnp.ones((1, d_model), dtype),
            ln1_b=jnp.zeros((1, d_model), dtype),
            ln2_g=jnp.ones((1, d_model), dtype),
            ln2_b=jnp.zeros((1, d_model), dtype),
        ))
    return dict(
        layers=layers,
        ln_g=jnp.ones((1, d_model), dtype),
        ln_b=jnp.zeros((1, d_model), dtype),
    )


# ----------------------------------------------------------------------------
if __name__ == "__main__":
    # Small shapes consistent with the module: batch=2, seq=8, d_model=32,
    # nhead=4, d_ffn=64, num_layers=2.
    B, S, D, H, DFF, L = 2, 8, 32, 4, 64, 2

    key = jax.random.PRNGKey(0)
    kx, kp = jax.random.split(key)
    x = jax.random.normal(kx, (B, S, D), dtype=jnp.float32).astype(jnp.bfloat16)
    params = init_params(kp, num_layers=L, d_model=D, d_ffn=DFF, nhead=H)

    out, attn_lst = jax.jit(
        functools.partial(transformer_encoder_forward, nhead=H)
    )(x, params)

    jax.block_until_ready(out)
    jax.block_until_ready(attn_lst)
    assert out.shape == (B, S, D)
    assert len(attn_lst) == L and attn_lst[0].shape == (B, S, S)
    print("KERNEL_OK")
</pallas_src>

<mosaic_0001>
module attributes {stable_mosaic.version = 11 : i64} {
  func.func @_attention_kernel(%arg0: i32, %arg1: memref<1x8x32xbf16, #tpu.memory_space<vmem>>, %arg2: memref<1x8x32xbf16, #tpu.memory_space<vmem>>, %arg3: memref<1x8x32xbf16, #tpu.memory_space<vmem>>, %arg4: memref<1x8x32xbf16, #tpu.memory_space<vmem>>, %arg5: memref<1x8x8xbf16, #tpu.memory_space<vmem>>) attributes {dimension_semantics = [#tpu.dimension_semantics<parallel>], iteration_bounds = array<i64: 2>, scalar_prefetch = 0 : i64, scratch_operands = 0 : i64, tpu.core_type = #tpu.core_type<tc>, window_params = [{transform_indices = @transform_0, window_bounds = array<i64: 1, 8, 32>}, {transform_indices = @transform_1, window_bounds = array<i64: 1, 8, 32>}, {transform_indices = @transform_2, window_bounds = array<i64: 1, 8, 32>}, {transform_indices = @transform_3, window_bounds = array<i64: 1, 8, 32>}, {transform_indices = @transform_4, window_bounds = array<i64: 1, 8, 8>}]} {
    %c0 = arith.constant 0 : index
    %c0_0 = arith.constant 0 : index
    %c0_1 = arith.constant 0 : index
    %0 = vector.load %arg1[%c0, %c0_0, %c0_1] : memref<1x8x32xbf16, #tpu.memory_space<vmem>>, vector<1x8x32xbf16>
    %1 = vector.shape_cast %0 : vector<1x8x32xbf16> to vector<8x32xbf16>
    %c0_2 = arith.constant 0 : index
    %c0_3 = arith.constant 0 : index
    %c0_4 = arith.constant 0 : index
    %2 = vector.load %arg2[%c0_2, %c0_3, %c0_4] : memref<1x8x32xbf16, #tpu.memory_space<vmem>>, vector<1x8x32xbf16>
    %3 = vector.shape_cast %2 : vector<1x8x32xbf16> to vector<8x32xbf16>
    %c0_5 = arith.constant 0 : index
    %c0_6 = arith.constant 0 : index
    %c0_7 = arith.constant 0 : index
    %4 = vector.load %arg3[%c0_5, %c0_6, %c0_7] : memref<1x8x32xbf16, #tpu.memory_space<vmem>>, vector<1x8x32xbf16>
    %5 = vector.shape_cast %4 : vector<1x8x32xbf16> to vector<8x32xbf16>
    %cst = arith.constant 0.000000e+00 : f32
    %6 = vector.broadcast %cst : f32 to vector<8x8xf32>
    %7 = vector.extract_strided_slice %1 {offsets = [0, 0], sizes = [8, 8], strides = [1, 1]} : vector<8x32xbf16> to vector<8x8xbf16>
    %8 = vector.extract_strided_slice %3 {offsets = [0, 0], sizes = [8, 8], strides = [1, 1]} : vector<8x32xbf16> to vector<8x8xbf16>
    %9 = vector.extract_strided_slice %5 {offsets = [0, 0], sizes = [8, 8], strides = [1, 1]} : vector<8x32xbf16> to vector<8x8xbf16>
    %cst_8 = arith.constant dense<0.000000e+00> : vector<8x8xf32>
    %10 = tpu.matmul %7, %8, %cst_8 {dimension_numbers = #tpu.dot_dimension_numbers<[1], [1], [0], [0], [0, 0, 1, 0], [], []>} : vector<8x8xbf16>, vector<8x8xbf16>, vector<8x8xf32> -> vector<8x8xf32>
    %cst_9 = arith.constant dense<0xFF800000> : vector<8xf32>
    %11 = vector.multi_reduction <maximumf>, %10, %cst_9 [1] : vector<8x8xf32> to vector<8xf32>
    %12 = vector.shape_cast %11 : vector<8xf32> to vector<8x1xf32>
    %13 = vector.broadcast %12 : vector<8x1xf32> to vector<8x8xf32>
    %14 = arith.subf %10, %13 : vector<8x8xf32>
    %15 = math.exp %14 : vector<8x8xf32>
    %cst_10 = arith.constant dense<0.000000e+00> : vector<8xf32>
    %16 = vector.multi_reduction <add>, %15, %cst_10 [1] : vector<8x8xf32> to vector<8xf32>
    %17 = vector.shape_cast %16 : vector<8xf32> to vector<8x1xf32>
    %18 = tpu.reciprocal %17 {approx = true} : vector<8x1xf32> -> vector<8x1xf32>
    %19 = vector.broadcast %18 : vector<8x1xf32> to vector<8x8xf32>
    %20 = arith.mulf %15, %19 : vector<8x8xf32>
    %21 = arith.truncf %20 : vector<8x8xf32> to vector<8x8xbf16>
    %cst_11 = arith.constant dense<0.000000e+00> : vector<8x8xf32>
    %22 = tpu.matmul %21, %9, %cst_11 {dimension_numbers = #tpu.dot_dimension_numbers<[1], [0], [0], [1], [0, 0, 1, 1], [], []>} : vector<8x8xbf16>, vector<8x8xbf16>, vector<8x8xf32> -> vector<8x8xf32>
    %23 = arith.addf %6, %20 : vector<8x8xf32>
    %24 = vector.extract_strided_slice %1 {offsets = [0, 8], sizes = [8, 8], strides = [1, 1]} : vector<8x32xbf16> to vector<8x8xbf16>
    %25 = vector.extract_strided_slice %3 {offsets = [0, 8], sizes = [8, 8], strides = [1, 1]} : vector<8x32xbf16> to vector<8x8xbf16>
    %26 = vector.extract_strided_slice %5 {offsets = [0, 8], sizes = [8, 8], strides = [1, 1]} : vector<8x32xbf16> to vector<8x8xbf16>
    %cst_12 = arith.constant dense<0.000000e+00> : vector<8x8xf32>
    %27 = tpu.matmul %24, %25, %cst_12 {dimension_numbers = #tpu.dot_dimension_numbers<[1], [1], [0], [0], [0, 0, 1, 0], [], []>} : vector<8x8xbf16>, vector<8x8xbf16>, vector<8x8xf32> -> vector<8x8xf32>
    %cst_13 = arith.constant dense<0xFF800000> : vector<8xf32>
    %28 = vector.multi_reduction <maximumf>, %27, %cst_13 [1] : vector<8x8xf32> to vector<8xf32>
    %29 = vector.shape_cast %28 : vector<8xf32> to vector<8x1xf32>
    %30 = vector.broadcast %29 : vector<8x1xf32> to vector<8x8xf32>
    %31 = arith.subf %27, %30 : vector<8x8xf32>
    %32 = math.exp %31 : vector<8x8xf32>
    %cst_14 = arith.constant dense<0.000000e+00> : vector<8xf32>
    %33 = vector.multi_reduction <add>, %32, %cst_14 [1] : vector<8x8xf32> to vector<8xf32>
    %34 = vector.shape_cast %33 : vector<8xf32> to vector<8x1xf32>
    %35 = tpu.reciprocal %34 {approx = true} : vector<8x1xf32> -> vector<8x1xf32>
    %36 = vector.broadcast %35 : vector<8x1xf32> to vector<8x8xf32>
    %37 = arith.mulf %32, %36 : vector<8x8xf32>
    %38 = arith.truncf %37 : vector<8x8xf32> to vector<8x8xbf16>
    %cst_15 = arith.constant dense<0.000000e+00> : vector<8x8xf32>
    %39 = tpu.matmul %38, %26, %cst_15 {dimension_numbers = #tpu.dot_dimension_numbers<[1], [0], [0], [1], [0, 0, 1, 1], [], []>} : vector<8x8xbf16>, vector<8x8xbf16>, vector<8x8xf32> -> vector<8x8xf32>
    %40 = arith.addf %23, %37 : vector<8x8xf32>
    %41 = vector.extract_strided_slice %1 {offsets = [0, 16], sizes = [8, 8], strides = [1, 1]} : vector<8x32xbf16> to vector<8x8xbf16>
    %42 = vector.extract_strided_slice %3 {offsets = [0, 16], sizes = [8, 8], strides = [1, 1]} : vector<8x32xbf16> to vector<8x8xbf16>
    %43 = vector.extract_strided_slice %5 {offsets = [0, 16], sizes = [8, 8], strides = [1, 1]} : vector<8x32xbf16> to vector<8x8xbf16>
    %cst_16 = arith.constant dense<0.000000e+00> : vector<8x8xf32>
    %44 = tpu.matmul %41, %42, %cst_16 {dimension_numbers = #tpu.dot_dimension_numbers<[1], [1], [0], [0], [0, 0, 1, 0], [], []>} : vector<8x8xbf16>, vector<8x8xbf16>, vector<8x8xf32> -> vector<8x8xf32>
    %cst_17 = arith.constant dense<0xFF800000> : vector<8xf32>
    %45 = vector.multi_reduction <maximumf>, %44, %cst_17 [1] : vector<8x8xf32> to vector<8xf32>
    %46 = vector.shape_cast %45 : vector<8xf32> to vector<8x1xf32>
    %47 = vector.broadcast %46 : vector<8x1xf32> to vector<8x8xf32>
    %48 = arith.subf %44, %47 : vector<8x8xf32>
    %49 = math.exp %48 : vector<8x8xf32>
    %cst_18 = arith.constant dense<0.000000e+00> : vector<8xf32>
    %50 = vector.multi_reduction <add>, %49, %cst_18 [1] : vector<8x8xf32> to vector<8xf32>
    %51 = vector.shape_cast %50 : vector<8xf32> to vector<8x1xf32>
    %52 = tpu.reciprocal %51 {approx = true} : vector<8x1xf32> -> vector<8x1xf32>
    %53 = vector.broadcast %52 : vector<8x1xf32> to vector<8x8xf32>
    %54 = arith.mulf %49, %53 : vector<8x8xf32>
    %55 = arith.truncf %54 : vector<8x8xf32> to vector<8x8xbf16>
    %cst_19 = arith.constant dense<0.000000e+00> : vector<8x8xf32>
    %56 = tpu.matmul %55, %43, %cst_19 {dimension_numbers = #tpu.dot_dimension_numbers<[1], [0], [0], [1], [0, 0, 1, 1], [], []>} : vector<8x8xbf16>, vector<8x8xbf16>, vector<8x8xf32> -> vector<8x8xf32>
    %57 = arith.addf %40, %54 : vector<8x8xf32>
    %58 = vector.extract_strided_slice %1 {offsets = [0, 24], sizes = [8, 8], strides = [1, 1]} : vector<8x32xbf16> to vector<8x8xbf16>
    %59 = vector.extract_strided_slice %3 {offsets = [0, 24], sizes = [8, 8], strides = [1, 1]} : vector<8x32xbf16> to vector<8x8xbf16>
    %60 = vector.extract_strided_slice %5 {offsets = [0, 24], sizes = [8, 8], strides = [1, 1]} : vector<8x32xbf16> to vector<8x8xbf16>
    %cst_20 = arith.constant dense<0.000000e+00> : vector<8x8xf32>
    %61 = tpu.matmul %58, %59, %cst_20 {dimension_numbers = #tpu.dot_dimension_numbers<[1], [1], [0], [0], [0, 0, 1, 0], [], []>} : vector<8x8xbf16>, vector<8x8xbf16>, vector<8x8xf32> -> vector<8x8xf32>
    %cst_21 = arith.constant dense<0xFF800000> : vector<8xf32>
    %62 = vector.multi_reduction <maximumf>, %61, %cst_21 [1] : vector<8x8xf32> to vector<8xf32>
    %63 = vector.shape_cast %62 : vector<8xf32> to vector<8x1xf32>
    %64 = vector.broadcast %63 : vector<8x1xf32> to vector<8x8xf32>
    %65 = arith.subf %61, %64 : vector<8x8xf32>
    %66 = math.exp %65 : vector<8x8xf32>
    %cst_22 = arith.constant dense<0.000000e+00> : vector<8xf32>
    %67 = vector.multi_reduction <add>, %66, %cst_22 [1] : vector<8x8xf32> to vector<8xf32>
    %68 = vector.shape_cast %67 : vector<8xf32> to vector<8x1xf32>
    %69 = tpu.reciprocal %68 {approx = true} : vector<8x1xf32> -> vector<8x1xf32>
    %70 = vector.broadcast %69 : vector<8x1xf32> to vector<8x8xf32>
    %71 = arith.mulf %66, %70 : vector<8x8xf32>
    %72 = arith.truncf %71 : vector<8x8xf32> to vector<8x8xbf16>
    %cst_23 = arith.constant dense<0.000000e+00> : vector<8x8xf32>
    %73 = tpu.matmul %72, %60, %cst_23 {dimension_numbers = #tpu.dot_dimension_numbers<[1], [0], [0], [1], [0, 0, 1, 1], [], []>} : vector<8x8xbf16>, vector<8x8xbf16>, vector<8x8xf32> -> vector<8x8xf32>
    %74 = arith.addf %57, %71 : vector<8x8xf32>
    %75 = tpu.concatenate %22, %39, %56, %73 in 1 : vector<8x8xf32>, vector<8x8xf32>, vector<8x8xf32>, vector<8x8xf32> -> vector<8x32xf32>
    %76 = arith.truncf %75 : vector<8x32xf32> to vector<8x32xbf16>
    %c0_24 = arith.constant 0 : index
    %c0_25 = arith.constant 0 : index
    %c0_26 = arith.constant 0 : index
    %77 = vector.load %arg4[%c0_24, %c0_25, %c0_26] : memref<1x8x32xbf16, #tpu.memory_space<vmem>>, vector<1x8x32xbf16>
    %78 = vector.shape_cast %77 : vector<1x8x32xbf16> to vector<8x32xbf16>
    %79 = vector.shape_cast %76 : vector<8x32xbf16> to vector<1x8x32xbf16>
    tpu.vector_store %arg4[%c0_24, %c0_25, %c0_26], %79 {strides = array<i32>} : memref<1x8x32xbf16, #tpu.memory_space<vmem>>, vector<1x8x32xbf16>,
    %cst_27 = arith.constant 2.500000e-01 : f32
    %80 = vector.broadcast %cst_27 : f32 to vector<8x8xf32>
    %81 = arith.mulf %74, %80 : vector<8x8xf32>
    %82 = arith.truncf %81 : vector<8x8xf32> to vector<8x8xbf16>
    %c0_28 = arith.constant 0 : index
    %c0_29 = arith.constant 0 : index
    %c0_30 = arith.constant 0 : index
    %83 = vector.load %arg5[%c0_28, %c0_29, %c0_30] : memref<1x8x8xbf16, #tpu.memory_space<vmem>>, vector<1x8x8xbf16>
    %84 = vector.shape_cast %83 : vector<1x8x8xbf16> to vector<8x8xbf16>
    %85 = vector.shape_cast %82 : vector<8x8xbf16> to vector<1x8x8xbf16>
    tpu.vector_store %arg5[%c0_28, %c0_29, %c0_30], %85 {strides = array<i32>} : memref<1x8x8xbf16, #tpu.memory_space<vmem>>, vector<1x8x8xbf16>,
    return
  }
  func.func @transform_0(%arg0: i32) -> (i32, i32, i32) {
    %c0_i32 = arith.constant 0 : i32
    %c0_i32_0 = arith.constant 0 : i32
    %c0_i32_1 = arith.constant 0 : i32
    return %arg0, %c0_i32, %c0_i32_0 : i32, i32, i32
  }
  func.func @transform_1(%arg0: i32) -> (i32, i32, i32) {
    %c0_i32 = arith.constant 0 : i32
    %c0_i32_0 = arith.constant 0 : i32
    %c0_i32_1 = arith.constant 0 : i32
    return %arg0, %c0_i32, %c0_i32_0 : i32, i32, i32
  }
  func.func @transform_2(%arg0: i32) -> (i32, i32, i32) {
    %c0_i32 = arith.constant 0 : i32
    %c0_i32_0 = arith.constant 0 : i32
    %c0_i32_1 = arith.constant 0 : i32
    return %arg0, %c0_i32, %c0_i32_0 : i32, i32, i32
  }
  func.func @transform_3(%arg0: i32) -> (i32, i32, i32) {
    %c0_i32 = arith.constant 0 : i32
    %c0_i32_0 = arith.constant 0 : i32
    %c0_i32_1 = arith.constant 0 : i32
    return %arg0, %c0_i32, %c0_i32_0 : i32, i32, i32
  }
  func.func @transform_4(%arg0: i32) -> (i32, i32, i32) {
    %c0_i32 = arith.constant 0 : i32
    %c0_i32_0 = arith.constant 0 : i32
    %c0_i32_1 = arith.constant 0 : i32
    return %arg0, %c0_i32, %c0_i32_0 : i32, i32, i32
  }
}

module attributes {stable_mosaic.version = 11 : i64} {
  func.func @_proj_residual_ln_kernel(%arg0: i32, %arg1: memref<8x32xbf16, #tpu.memory_space<vmem>>, %arg2: memref<32x32xbf16, #tpu.memory_space<vmem>>, %arg3: memref<1x32xbf16, #tpu.memory_space<vmem>>, %arg4: memref<8x32xbf16, #tpu.memory_space<vmem>>, %arg5: memref<1x32xbf16, #tpu.memory_space<vmem>>, %arg6: memref<1x32xbf16, #tpu.memory_space<vmem>>, %arg7: memref<8x32xbf16, #tpu.memory_space<vmem>>) attributes {dimension_semantics = [#tpu.dimension_semantics<parallel>], iteration_bounds = array<i64: 2>, scalar_prefetch = 0 : i64, scratch_operands = 0 : i64, tpu.core_type = #tpu.core_type<tc>, window_params = [{transform_indices = @transform_0, window_bounds = array<i64: 8, 32>}, {pipeline_mode = #tpu.pipeline_mode<synchronous>, transform_indices = @transform_1, window_bounds = array<i64: 32, 32>}, {pipeline_mode = #tpu.pipeline_mode<synchronous>, transform_indices = @transform_2, window_bounds = array<i64: 1, 32>}, {transform_indices = @transform_3, window_bounds = array<i64: 8, 32>}, {pipeline_mode = #tpu.pipeline_mode<synchronous>, transform_indices = @transform_4, window_bounds = array<i64: 1, 32>}, {pipeline_mode = #tpu.pipeline_mode<synchronous>, transform_indices = @transform_5, window_bounds = array<i64: 1, 32>}, {transform_indices = @transform_6, window_bounds = array<i64: 8, 32>}]} {
    %c0 = arith.constant 0 : index
    %c0_0 = arith.constant 0 : index
    %0 = vector.load %arg1[%c0, %c0_0] : memref<8x32xbf16, #tpu.memory_space<vmem>>, vector<8x32xbf16>
    %c0_1 = arith.constant 0 : index
    %c0_2 = arith.constant 0 : index
    %1 = vector.load %arg2[%c0_1, %c0_2] : memref<32x32xbf16, #tpu.memory_space<vmem>>, vector<32x32xbf16>
    %cst = arith.constant dense<0.000000e+00> : vector<8x32xf32>
    %2 = tpu.matmul %0, %1, %cst {dimension_numbers = #tpu.dot_dimension_numbers<[1], [0], [0], [1], [0, 0, 1, 1], [], []>} : vector<8x32xbf16>, vector<32x32xbf16>, vector<8x32xf32> -> vector<8x32xf32>
    %c0_3 = arith.constant 0 : index
    %c0_4 = arith.constant 0 : index
    %3 = vector.load %arg3[%c0_3, %c0_4] : memref<1x32xbf16, #tpu.memory_space<vmem>>, vector<1x32xbf16>
    %4 = arith.extf %3 : vector<1x32xbf16> to vector<1x32xf32>
    %5 = vector.broadcast %4 : vector<1x32xf32> to vector<8x32xf32>
    %6 = arith.addf %2, %5 : vector<8x32xf32>
    %c0_5 = arith.constant 0 : index
    %c0_6 = arith.constant 0 : index
    %7 = vector.load %arg4[%c0_5, %c0_6] : memref<8x32xbf16, #tpu.memory_space<vmem>>, vector<8x32xbf16>
    %8 = arith.extf %7 : vector<8x32xbf16> to vector<8x32xf32>
    %9 = arith.addf %6, %8 : vector<8x32xf32>
    %cst_7 = arith.constant dense<0.000000e+00> : vector<8xf32>
    %10 = vector.multi_reduction <add>, %9, %cst_7 [1] : vector<8x32xf32> to vector<8xf32>
    %11 = vector.shape_cast %10 : vector<8xf32> to vector<8x1xf32>
    %cst_8 = arith.constant 3.200000e+01 : f32
    %12 = vector.broadcast %cst_8 : f32 to vector<8x1xf32>
    %13 = arith.divf %11, %12 : vector<8x1xf32>
    %14 = vector.broadcast %13 : vector<8x1xf32> to vector<8x32xf32>
    %15 = arith.subf %9, %14 : vector<8x32xf32>
    %16 = vector.broadcast %13 : vector<8x1xf32> to vector<8x32xf32>
    %17 = arith.subf %9, %16 : vector<8x32xf32>
    %18 = arith.mulf %15, %17 : vector<8x32xf32>
    %cst_9 = arith.constant dense<0.000000e+00> : vector<8xf32>
    %19 = vector.multi_reduction <add>, %18, %cst_9 [1] : vector<8x32xf32> to vector<8xf32>
    %20 = vector.shape_cast %19 : vector<8xf32> to vector<8x1xf32>
    %cst_10 = arith.constant 3.200000e+01 : f32
    %21 = vector.broadcast %cst_10 : f32 to vector<8x1xf32>
    %22 = arith.divf %20, %21 : vector<8x1xf32>
    %23 = vector.broadcast %13 : vector<8x1xf32> to vector<8x32xf32>
    %24 = arith.subf %9, %23 : vector<8x32xf32>
    %cst_11 = arith.constant 9.99999997E-7 : f32
    %25 = vector.broadcast %cst_11 : f32 to vector<8x1xf32>
    %26 = arith.addf %22, %25 : vector<8x1xf32>
    %27 = math.rsqrt %26 : vector<8x1xf32>
    %28 = vector.broadcast %27 : vector<8x1xf32> to vector<8x32xf32>
    %29 = arith.mulf %24, %28 : vector<8x32xf32>
    %c0_12 = arith.constant 0 : index
    %c0_13 = arith.constant 0 : index
    %30 = vector.load %arg5[%c0_12, %c0_13] : memref<1x32xbf16, #tpu.memory_space<vmem>>, vector<1x32xbf16>
    %31 = arith.extf %30 : vector<1x32xbf16> to vector<1x32xf32>
    %32 = vector.broadcast %31 : vector<1x32xf32> to vector<8x32xf32>
    %33 = arith.mulf %29, %32 : vector<8x32xf32>
    %c0_14 = arith.constant 0 : index
    %c0_15 = arith.constant 0 : index
    %34 = vector.load %arg6[%c0_14, %c0_15] : memref<1x32xbf16, #tpu.memory_space<vmem>>, vector<1x32xbf16>
    %35 = arith.extf %34 : vector<1x32xbf16> to vector<1x32xf32>
    %36 = vector.broadcast %35 : vector<1x32xf32> to vector<8x32xf32>
    %37 = arith.addf %33, %36 : vector<8x32xf32>
    %38 = arith.truncf %37 : vector<8x32xf32> to vector<8x32xbf16>
    %c0_16 = arith.constant 0 : index
    %c0_17 = arith.constant 0 : index
    %39 = vector.load %arg7[%c0_16, %c0_17] : memref<8x32xbf16, #tpu.memory_space<vmem>>, vector<8x32xbf16>
    tpu.vector_store %arg7[%c0_16, %c0_17], %38 {strides = array<i32>} : memref<8x32xbf16, #tpu.memory_space<vmem>>, vector<8x32xbf16>,
    return
  }
  func.func @transform_0(%arg0: i32) -> (i32, i32) {
    %c0_i32 = arith.constant 0 : i32
    %c0_i32_0 = arith.constant 0 : i32
    return %arg0, %c0_i32 : i32, i32
  }
  func.func @transform_1(%arg0: i32) -> (i32, i32) {
    %c0_i32 = arith.constant 0 : i32
    %c0_i32_0 = arith.constant 0 : i32
    %c0_i32_1 = arith.constant 0 : i32
    return %c0_i32, %c0_i32_0 : i32, i32
  }
  func.func @transform_2(%arg0: i32) -> (i32, i32) {
    %c0_i32 = arith.constant 0 : i32
    %c0_i32_0 = arith.constant 0 : i32
    %c0_i32_1 = arith.constant 0 : i32
    return %c0_i32, %c0_i32_0 : i32, i32
  }
  func.func @transform_3(%arg0: i32) -> (i32, i32) {
    %c0_i32 = arith.constant 0 : i32
    %c0_i32_0 = arith.constant 0 : i32
    return %arg0, %c0_i32 : i32, i32
  }
  func.func @transform_4(%arg0: i32) -> (i32, i32) {
    %c0_i32 = arith.constant 0 : i32
    %c0_i32_0 = arith.constant 0 : i32
    %c0_i32_1 = arith.constant 0 : i32
    return %c0_i32, %c0_i32_0 : i32, i32
  }
  func.func @transform_5(%arg0: i32) -> (i32, i32) {
    %c0_i32 = arith.constant 0 : i32
    %c0_i32_0 = arith.constant 0 : i32
    %c0_i32_1 = arith.constant 0 : i32
    return %c0_i32, %c0_i32_0 : i32, i32
  }
  func.func @transform_6(%arg0: i32) -> (i32, i32) {
    %c0_i32 = arith.constant 0 : i32
    %c0_i32_0 = arith.constant 0 : i32
    return %arg0, %c0_i32 : i32, i32
  }
}

module attributes {stable_mosaic.version = 11 : i64} {
  func.func @_qkv_kernel(%arg0: i32, %arg1: memref<8x32xbf16, #tpu.memory_space<vmem>>, %arg2: memref<32x96xbf16, #tpu.memory_space<vmem>>, %arg3: memref<1x96xbf16, #tpu.memory_space<vmem>>, %arg4: memref<8x32xbf16, #tpu.memory_space<vmem>>, %arg5: memref<8x32xbf16, #tpu.memory_space<vmem>>, %arg6: memref<8x32xbf16, #tpu.memory_space<vmem>>) attributes {dimension_semantics = [#tpu.dimension_semantics<parallel>], iteration_bounds = array<i64: 2>, scalar_prefetch = 0 : i64, scratch_operands = 0 : i64, tpu.core_type = #tpu.core_type<tc>, window_params = [{transform_indices = @transform_0, window_bounds = array<i64: 8, 32>}, {pipeline_mode = #tpu.pipeline_mode<synchronous>, transform_indices = @transform_1, window_bounds = array<i64: 32, 96>}, {pipeline_mode = #tpu.pipeline_mode<synchronous>, transform_indices = @transform_2, window_bounds = array<i64: 1, 96>}, {transform_indices = @transform_3, window_bounds = array<i64: 8, 32>}, {transform_indices = @transform_4, window_bounds = array<i64: 8, 32>}, {transform_indices = @transform_5, window_bounds = array<i64: 8, 32>}]} {
    %c0 = arith.constant 0 : index
    %c0_0 = arith.constant 0 : index
    %0 = vector.load %arg1[%c0, %c0_0] : memref<8x32xbf16, #tpu.memory_space<vmem>>, vector<8x32xbf16>
    %c0_1 = arith.constant 0 : index
    %c0_2 = arith.constant 0 : index
    %1 = vector.load %arg2[%c0_1, %c0_2] : memref<32x96xbf16, #tpu.memory_space<vmem>>, vector<32x96xbf16>
    %cst = arith.constant dense<0.000000e+00> : vector<8x96xf32>
    %2 = tpu.matmul %0, %1, %cst {dimension_numbers = #tpu.dot_dimension_numbers<[1], [0], [0], [1], [0, 0, 1, 1], [], []>} : vector<8x32xbf16>, vector<32x96xbf16>, vector<8x96xf32> -> vector<8x96xf32>
    %c0_3 = arith.constant 0 : index
    %c0_4 = arith.constant 0 : index
    %3 = vector.load %arg3[%c0_3, %c0_4] : memref<1x96xbf16, #tpu.memory_space<vmem>>, vector<1x96xbf16>
    %4 = arith.extf %3 : vector<1x96xbf16> to vector<1x96xf32>
    %5 = vector.broadcast %4 : vector<1x96xf32> to vector<8x96xf32>
    %6 = arith.addf %2, %5 : vector<8x96xf32>
    %7 = vector.extract_strided_slice %6 {offsets = [0, 0], sizes = [8, 32], strides = [1, 1]} : vector<8x96xf32> to vector<8x32xf32>
    %8 = arith.truncf %7 : vector<8x32xf32> to vector<8x32xbf16>
    %c0_5 = arith.constant 0 : index
    %c0_6 = arith.constant 0 : index
    %9 = vector.load %arg4[%c0_5, %c0_6] : memref<8x32xbf16, #tpu.memory_space<vmem>>, vector<8x32xbf16>
    tpu.vector_store %arg4[%c0_5, %c0_6], %8 {strides = array<i32>} : memref<8x32xbf16, #tpu.memory_space<vmem>>, vector<8x32xbf16>,
    %10 = vector.extract_strided_slice %6 {offsets = [0, 32], sizes = [8, 32], strides = [1, 1]} : vector<8x96xf32> to vector<8x32xf32>
    %11 = arith.truncf %10 : vector<8x32xf32> to vector<8x32xbf16>
    %c0_7 = arith.constant 0 : index
    %c0_8 = arith.constant 0 : index
    %12 = vector.load %arg5[%c0_7, %c0_8] : memref<8x32xbf16, #tpu.memory_space<vmem>>, vector<8x32xbf16>
    tpu.vector_store %arg5[%c0_7, %c0_8], %11 {strides = array<i32>} : memref<8x32xbf16, #tpu.memory_space<vmem>>, vector<8x32xbf16>,
    %13 = vector.extract_strided_slice %6 {offsets = [0, 64], sizes = [8, 32], strides = [1, 1]} : vector<8x96xf32> to vector<8x32xf32>
    %14 = arith.truncf %13 : vector<8x32xf32> to vector<8x32xbf16>
    %c0_9 = arith.constant 0 : index
    %c0_10 = arith.constant 0 : index
    %15 = vector.load %arg6[%c0_9, %c0_10] : memref<8x32xbf16, #tpu.memory_space<vmem>>, vector<8x32xbf16>
    tpu.vector_store %arg6[%c0_9, %c0_10], %14 {strides = array<i32>} : memref<8x32xbf16, #tpu.memory_space<vmem>>, vector<8x32xbf16>,
    return
  }
  func.func @transform_0(%arg0: i32) -> (i32, i32) {
    %c0_i32 = arith.constant 0 : i32
    %c0_i32_0 = arith.constant 0 : i32
    return %arg0, %c0_i32 : i32, i32
  }
  func.func @transform_1(%arg0: i32) -> (i32, i32) {
    %c0_i32 = arith.constant 0 : i32
    %c0_i32_0 = arith.constant 0 : i32
    %c0_i32_1 = arith.constant 0 : i32
    return %c0_i32, %c0_i32_0 : i32, i32
  }
  func.func @transform_2(%arg0: i32) -> (i32, i32) {
    %c0_i32 = arith.constant 0 : i32
    %c0_i32_0 = arith.constant 0 : i32
    %c0_i32_1 = arith.constant 0 : i32
    return %c0_i32, %c0_i32_0 : i32, i32
  }
  func.func @transform_3(%arg0: i32) -> (i32, i32) {
    %c0_i32 = arith.constant 0 : i32
    %c0_i32_0 = arith.constant 0 : i32
    return %arg0, %c0_i32 : i32, i32
  }
  func.func @transform_4(%arg0: i32) -> (i32, i32) {
    %c0_i32 = arith.constant 0 : i32
    %c0_i32_0 = arith.constant 0 : i32
    return %arg0, %c0_i32 : i32, i32
  }
  func.func @transform_5(%arg0: i32) -> (i32, i32) {
    %c0_i32 = arith.constant 0 : i32
    %c0_i32_0 = arith.constant 0 : i32
    return %arg0, %c0_i32 : i32, i32
  }
}

module attributes {stable_mosaic.version = 11 : i64} {
  func.func @_ffn_residual_ln_kernel(%arg0: i32, %arg1: memref<8x32xbf16, #tpu.memory_space<vmem>>, %arg2: memref<32x64xbf16, #tpu.memory_space<vmem>>, %arg3: memref<1x64xbf16, #tpu.memory_space<vmem>>, %arg4: memref<64x32xbf16, #tpu.memory_space<vmem>>, %arg5: memref<1x32xbf16, #tpu.memory_space<vmem>>, %arg6: memref<1x32xbf16, #tpu.memory_space<vmem>>, %arg7: memref<1x32xbf16, #tpu.memory_space<vmem>>, %arg8: memref<8x32xbf16, #tpu.memory_space<vmem>>) attributes {dimension_semantics = [#tpu.dimension_semantics<parallel>], iteration_bounds = array<i64: 2>, scalar_prefetch = 0 : i64, scratch_operands = 0 : i64, tpu.core_type = #tpu.core_type<tc>, window_params = [{transform_indices = @transform_0, window_bounds = array<i64: 8, 32>}, {pipeline_mode = #tpu.pipeline_mode<synchronous>, transform_indices = @transform_1, window_bounds = array<i64: 32, 64>}, {pipeline_mode = #tpu.pipeline_mode<synchronous>, transform_indices = @transform_2, window_bounds = array<i64: 1, 64>}, {pipeline_mode = #tpu.pipeline_mode<synchronous>, transform_indices = @transform_3, window_bounds = array<i64: 64, 32>}, {pipeline_mode = #tpu.pipeline_mode<synchronous>, transform_indices = @transform_4, window_bounds = array<i64: 1, 32>}, {pipeline_mode = #tpu.pipeline_mode<synchronous>, transform_indices = @transform_5, window_bounds = array<i64: 1, 32>}, {pipeline_mode = #tpu.pipeline_mode<synchronous>, transform_indices = @transform_6, window_bounds = array<i64: 1, 32>}, {transform_indices = @transform_7, window_bounds = array<i64: 8, 32>}]} {
    %c0 = arith.constant 0 : index
    %c0_0 = arith.constant 0 : index
    %0 = vector.load %arg1[%c0, %c0_0] : memref<8x32xbf16, #tpu.memory_space<vmem>>, vector<8x32xbf16>
    %c0_1 = arith.constant 0 : index
    %c0_2 = arith.constant 0 : index
    %1 = vector.load %arg2[%c0_1, %c0_2] : memref<32x64xbf16, #tpu.memory_space<vmem>>, vector<32x64xbf16>
    %cst = arith.constant dense<0.000000e+00> : vector<8x64xf32>
    %2 = tpu.matmul %0, %1, %cst {dimension_numbers = #tpu.dot_dimension_numbers<[1], [0], [0], [1], [0, 0, 1, 1], [], []>} : vector<8x32xbf16>, vector<32x64xbf16>, vector<8x64xf32> -> vector<8x64xf32>
    %c0_3 = arith.constant 0 : index
    %c0_4 = arith.constant 0 : index
    %3 = vector.load %arg3[%c0_3, %c0_4] : memref<1x64xbf16, #tpu.memory_space<vmem>>, vector<1x64xbf16>
    %4 = arith.extf %3 : vector<1x64xbf16> to vector<1x64xf32>
    %5 = vector.broadcast %4 : vector<1x64xf32> to vector<8x64xf32>
    %6 = arith.addf %2, %5 : vector<8x64xf32>
    %cst_5 = arith.constant 0.000000e+00 : f32
    %7 = vector.broadcast %cst_5 : f32 to vector<8x64xf32>
    %8 = arith.maximumf %6, %7 : vector<8x64xf32>
    %9 = arith.truncf %8 : vector<8x64xf32> to vector<8x64xbf16>
    %c0_6 = arith.constant 0 : index
    %c0_7 = arith.constant 0 : index
    %10 = vector.load %arg4[%c0_6, %c0_7] : memref<64x32xbf16, #tpu.memory_space<vmem>>, vector<64x32xbf16>
    %cst_8 = arith.constant dense<0.000000e+00> : vector<8x32xf32>
    %11 = tpu.matmul %9, %10, %cst_8 {dimension_numbers = #tpu.dot_dimension_numbers<[1], [0], [0], [1], [0, 0, 1, 1], [], []>} : vector<8x64xbf16>, vector<64x32xbf16>, vector<8x32xf32> -> vector<8x32xf32>
    %c0_9 = arith.constant 0 : index
    %c0_10 = arith.constant 0 : index
    %12 = vector.load %arg5[%c0_9, %c0_10] : memref<1x32xbf16, #tpu.memory_space<vmem>>, vector<1x32xbf16>
    %13 = arith.extf %12 : vector<1x32xbf16> to vector<1x32xf32>
    %14 = vector.broadcast %13 : vector<1x32xf32> to vector<8x32xf32>
    %15 = arith.addf %11, %14 : vector<8x32xf32>
    %16 = arith.extf %0 : vector<8x32xbf16> to vector<8x32xf32>
    %17 = arith.addf %15, %16 : vector<8x32xf32>
    %cst_11 = arith.constant dense<0.000000e+00> : vector<8xf32>
    %18 = vector.multi_reduction <add>, %17, %cst_11 [1] : vector<8x32xf32> to vector<8xf32>
    %19 = vector.shape_cast %18 : vector<8xf32> to vector<8x1xf32>
    %cst_12 = arith.constant 3.200000e+01 : f32
    %20 = vector.broadcast %cst_12 : f32 to vector<8x1xf32>
    %21 = arith.divf %19, %20 : vector<8x1xf32>
    %22 = vector.broadcast %21 : vector<8x1xf32> to vector<8x32xf32>
    %23 = arith.subf %17, %22 : vector<8x32xf32>
    %24 = vector.broadcast %21 : vector<8x1xf32> to vector<8x32xf32>
    %25 = arith.subf %17, %24 : vector<8x32xf32>
    %26 = arith.mulf %23, %25 : vector<8x32xf32>
    %cst_13 = arith.constant dense<0.000000e+00> : vector<8xf32>
    %27 = vector.multi_reduction <add>, %26, %cst_13 [1] : vector<8x32xf32> to vector<8xf32>
    %28 = vector.shape_cast %27 : vector<8xf32> to vector<8x1xf32>
    %cst_14 = arith.constant 3.200000e+01 : f32
    %29 = vector.broadcast %cst_14 : f32 to vector<8x1xf32>
    %30 = arith.divf %28, %29 : vector<8x1xf32>
    %31 = vector.broadcast %21 : vector<8x1xf32> to vector<8x32xf32>
    %32 = arith.subf %17, %31 : vector<8x32xf32>
    %cst_15 = arith.constant 9.99999997E-7 : f32
    %33 = vector.broadcast %cst_15 : f32 to vector<8x1xf32>
    %34 = arith.addf %30, %33 : vector<8x1xf32>
    %35 = math.rsqrt %34 : vector<8x1xf32>
    %36 = vector.broadcast %35 : vector<8x1xf32> to vector<8x32xf32>
    %37 = arith.mulf %32, %36 : vector<8x32xf32>
    %c0_16 = arith.constant 0 : index
    %c0_17 = arith.constant 0 : index
    %38 = vector.load %arg6[%c0_16, %c0_17] : memref<1x32xbf16, #tpu.memory_space<vmem>>, vector<1x32xbf16>
    %39 = arith.extf %38 : vector<1x32xbf16> to vector<1x32xf32>
    %40 = vector.broadcast %39 : vector<1x32xf32> to vector<8x32xf32>
    %41 = arith.mulf %37, %40 : vector<8x32xf32>
    %c0_18 = arith.constant 0 : index
    %c0_19 = arith.constant 0 : index
    %42 = vector.load %arg7[%c0_18, %c0_19] : memref<1x32xbf16, #tpu.memory_space<vmem>>, vector<1x32xbf16>
    %43 = arith.extf %42 : vector<1x32xbf16> to vector<1x32xf32>
    %44 = vector.broadcast %43 : vector<1x32xf32> to vector<8x32xf32>
    %45 = arith.addf %41, %44 : vector<8x32xf32>
    %46 = arith.truncf %45 : vector<8x32xf32> to vector<8x32xbf16>
    %c0_20 = arith.constant 0 : index
    %c0_21 = arith.constant 0 : index
    %47 = vector.load %arg8[%c0_20, %c0_21] : memref<8x32xbf16, #tpu.memory_space<vmem>>, vector<8x32xbf16>
    tpu.vector_store %arg8[%c0_20, %c0_21], %46 {strides = array<i32>} : memref<8x32xbf16, #tpu.memory_space<vmem>>, vector<8x32xbf16>,
    return
  }
  func.func @transform_0(%arg0: i32) -> (i32, i32) {
    %c0_i32 = arith.constant 0 : i32
    %c0_i32_0 = arith.constant 0 : i32
    return %arg0, %c0_i32 : i32, i32
  }
  func.func @transform_1(%arg0: i32) -> (i32, i32) {
    %c0_i32 = arith.constant 0 : i32
    %c0_i32_0 = arith.constant 0 : i32
    %c0_i32_1 = arith.constant 0 : i32
    return %c0_i32, %c0_i32_0 : i32, i32
  }
  func.func @transform_2(%arg0: i32) -> (i32, i32) {
    %c0_i32 = arith.constant 0 : i32
    %c0_i32_0 = arith.constant 0 : i32
    %c0_i32_1 = arith.constant 0 : i32
    return %c0_i32, %c0_i32_0 : i32, i32
  }
  func.func @transform_3(%arg0: i32) -> (i32, i32) {
    %c0_i32 = arith.constant 0 : i32
    %c0_i32_0 = arith.constant 0 : i32
    %c0_i32_1 = arith.constant 0 : i32
    return %c0_i32, %c0_i32_0 : i32, i32
  }
  func.func @transform_4(%arg0: i32) -> (i32, i32) {
    %c0_i32 = arith.constant 0 : i32
    %c0_i32_0 = arith.constant 0 : i32
    %c0_i32_1 = arith.constant 0 : i32
    return %c0_i32, %c0_i32_0 : i32, i32
  }
  func.func @transform_5(%arg0: i32) -> (i32, i32) {
    %c0_i32 = arith.constant 0 : i32
    %c0_i32_0 = arith.constant 0 : i32
    %c0_i32_1 = arith.constant 0 : i32
    return %c0_i32, %c0_i32_0 : i32, i32
  }
  func.func @transform_6(%arg0: i32) -> (i32, i32) {
    %c0_i32 = arith.constant 0 : i32
    %c0_i32_0 = arith.constant 0 : i32
    %c0_i32_1 = arith.constant 0 : i32
    return %c0_i32, %c0_i32_0 : i32, i32
  }
  func.func @transform_7(%arg0: i32) -> (i32, i32) {
    %c0_i32 = arith.constant 0 : i32
    %c0_i32_0 = arith.constant 0 : i32
    return %arg0, %c0_i32 : i32, i32
  }
}

module attributes {stable_mosaic.version = 11 : i64} {
  func.func @_layernorm_kernel(%arg0: i32, %arg1: memref<8x32xbf16, #tpu.memory_space<vmem>>, %arg2: memref<1x32xbf16, #tpu.memory_space<vmem>>, %arg3: memref<1x32xbf16, #tpu.memory_space<vmem>>, %arg4: memref<8x32xbf16, #tpu.memory_space<vmem>>) attributes {dimension_semantics = [#tpu.dimension_semantics<parallel>], iteration_bounds = array<i64: 2>, scalar_prefetch = 0 : i64, scratch_operands = 0 : i64, tpu.core_type = #tpu.core_type<tc>, window_params = [{transform_indices = @transform_0, window_bounds = array<i64: 8, 32>}, {pipeline_mode = #tpu.pipeline_mode<synchronous>, transform_indices = @transform_1, window_bounds = array<i64: 1, 32>}, {pipeline_mode = #tpu.pipeline_mode<synchronous>, transform_indices = @transform_2, window_bounds = array<i64: 1, 32>}, {transform_indices = @transform_3, window_bounds = array<i64: 8, 32>}]} {
    %c0 = arith.constant 0 : index
    %c0_0 = arith.constant 0 : index
    %0 = vector.load %arg1[%c0, %c0_0] : memref<8x32xbf16, #tpu.memory_space<vmem>>, vector<8x32xbf16>
    %1 = arith.extf %0 : vector<8x32xbf16> to vector<8x32xf32>
    %cst = arith.constant dense<0.000000e+00> : vector<8xf32>
    %2 = vector.multi_reduction <add>, %1, %cst [1] : vector<8x32xf32> to vector<8xf32>
    %3 = vector.shape_cast %2 : vector<8xf32> to vector<8x1xf32>
    %cst_1 = arith.constant 3.200000e+01 : f32
    %4 = vector.broadcast %cst_1 : f32 to vector<8x1xf32>
    %5 = arith.divf %3, %4 : vector<8x1xf32>
    %6 = vector.broadcast %5 : vector<8x1xf32> to vector<8x32xf32>
    %7 = arith.subf %1, %6 : vector<8x32xf32>
    %8 = vector.broadcast %5 : vector<8x1xf32> to vector<8x32xf32>
    %9 = arith.subf %1, %8 : vector<8x32xf32>
    %10 = arith.mulf %7, %9 : vector<8x32xf32>
    %cst_2 = arith.constant dense<0.000000e+00> : vector<8xf32>
    %11 = vector.multi_reduction <add>, %10, %cst_2 [1] : vector<8x32xf32> to vector<8xf32>
    %12 = vector.shape_cast %11 : vector<8xf32> to vector<8x1xf32>
    %cst_3 = arith.constant 3.200000e+01 : f32
    %13 = vector.broadcast %cst_3 : f32 to vector<8x1xf32>
    %14 = arith.divf %12, %13 : vector<8x1xf32>
    %15 = vector.broadcast %5 : vector<8x1xf32> to vector<8x32xf32>
    %16 = arith.subf %1, %15 : vector<8x32xf32>
    %cst_4 = arith.constant 9.99999997E-7 : f32
    %17 = vector.broadcast %cst_4 : f32 to vector<8x1xf32>
    %18 = arith.addf %14, %17 : vector<8x1xf32>
    %19 = math.rsqrt %18 : vector<8x1xf32>
    %20 = vector.broadcast %19 : vector<8x1xf32> to vector<8x32xf32>
    %21 = arith.mulf %16, %20 : vector<8x32xf32>
    %c0_5 = arith.constant 0 : index
    %c0_6 = arith.constant 0 : index
    %22 = vector.load %arg2[%c0_5, %c0_6] : memref<1x32xbf16, #tpu.memory_space<vmem>>, vector<1x32xbf16>
    %23 = arith.extf %22 : vector<1x32xbf16> to vector<1x32xf32>
    %24 = vector.broadcast %23 : vector<1x32xf32> to vector<8x32xf32>
    %25 = arith.mulf %21, %24 : vector<8x32xf32>
    %c0_7 = arith.constant 0 : index
    %c0_8 = arith.constant 0 : index
    %26 = vector.load %arg3[%c0_7, %c0_8] : memref<1x32xbf16, #tpu.memory_space<vmem>>, vector<1x32xbf16>
    %27 = arith.extf %26 : vector<1x32xbf16> to vector<1x32xf32>
    %28 = vector.broadcast %27 : vector<1x32xf32> to vector<8x32xf32>
    %29 = arith.addf %25, %28 : vector<8x32xf32>
    %30 = arith.truncf %29 : vector<8x32xf32> to vector<8x32xbf16>
    %c0_9 = arith.constant 0 : index
    %c0_10 = arith.constant 0 : index
    %31 = vector.load %arg4[%c0_9, %c0_10] : memref<8x32xbf16, #tpu.memory_space<vmem>>, vector<8x32xbf16>
    tpu.vector_store %arg4[%c0_9, %c0_10], %30 {strides = array<i32>} : memref<8x32xbf16, #tpu.memory_space<vmem>>, vector<8x32xbf16>,
    return
  }
  func.func @transform_0(%arg0: i32) -> (i32, i32) {
    %c0_i32 = arith.constant 0 : i32
    %c0_i32_0 = arith.constant 0 : i32
    return %arg0, %c0_i32 : i32, i32
  }
  func.func @transform_1(%arg0: i32) -> (i32, i32) {
    %c0_i32 = arith.constant 0 : i32
    %c0_i32_0 = arith.constant 0 : i32
    %c0_i32_1 = arith.constant 0 : i32
    return %c0_i32, %c0_i32_0 : i32, i32
  }
  func.func @transform_2(%arg0: i32) -> (i32, i32) {
    %c0_i32 = arith.constant 0 : i32
    %c0_i32_0 = arith.constant 0 : i32
    %c0_i32_1 = arith.constant 0 : i32
    return %c0_i32, %c0_i32_0 : i32, i32
  }
  func.func @transform_3(%arg0: i32) -> (i32, i32) {
    %c0_i32 = arith.constant 0 : i32
    %c0_i32_0 = arith.constant 0 : i32
    return %arg0, %c0_i32 : i32, i32
  }
}

module attributes {stable_mosaic.version = 11 : i64} {
  func.func @_qkv_kernel(%arg0: i32, %arg1: memref<8x32xbf16, #tpu.memory_space<vmem>>, %arg2: memref<32x96xbf16, #tpu.memory_space<vmem>>, %arg3: memref<1x96xbf16, #tpu.memory_space<vmem>>, %arg4: memref<8x32xbf16, #tpu.memory_space<vmem>>, %arg5: memref<8x32xbf16, #tpu.memory_space<vmem>>, %arg6: memref<8x32xbf16, #tpu.memory_space<vmem>>) attributes {dimension_semantics = [#tpu.dimension_semantics<parallel>], iteration_bounds = array<i64: 2>, scalar_prefetch = 0 : i64, scratch_operands = 0 : i64, tpu.core_type = #tpu.core_type<tc>, window_params = [{transform_indices = @transform_0, window_bounds = array<i64: 8, 32>}, {pipeline_mode = #tpu.pipeline_mode<synchronous>, transform_indices = @transform_1, window_bounds = array<i64: 32, 96>}, {pipeline_mode = #tpu.pipeline_mode<synchronous>, transform_indices = @transform_2, window_bounds = array<i64: 1, 96>}, {transform_indices = @transform_3, window_bounds = array<i64: 8, 32>}, {transform_indices = @transform_4, window_bounds = array<i64: 8, 32>}, {transform_indices = @transform_5, window_bounds = array<i64: 8, 32>}]} {
    %c0 = arith.constant 0 : index
    %c0_0 = arith.constant 0 : index
    %0 = vector.load %arg1[%c0, %c0_0] : memref<8x32xbf16, #tpu.memory_space<vmem>>, vector<8x32xbf16>
    %c0_1 = arith.constant 0 : index
    %c0_2 = arith.constant 0 : index
    %1 = vector.load %arg2[%c0_1, %c0_2] : memref<32x96xbf16, #tpu.memory_space<vmem>>, vector<32x96xbf16>
    %cst = arith.constant dense<0.000000e+00> : vector<8x96xf32>
    %2 = tpu.matmul %0, %1, %cst {dimension_numbers = #tpu.dot_dimension_numbers<[1], [0], [0], [1], [0, 0, 1, 1], [], []>} : vector<8x32xbf16>, vector<32x96xbf16>, vector<8x96xf32> -> vector<8x96xf32>
    %c0_3 = arith.constant 0 : index
    %c0_4 = arith.constant 0 : index
    %3 = vector.load %arg3[%c0_3, %c0_4] : memref<1x96xbf16, #tpu.memory_space<vmem>>, vector<1x96xbf16>
    %4 = arith.extf %3 : vector<1x96xbf16> to vector<1x96xf32>
    %5 = vector.broadcast %4 : vector<1x96xf32> to vector<8x96xf32>
    %6 = arith.addf %2, %5 : vector<8x96xf32>
    %7 = vector.extract_strided_slice %6 {offsets = [0, 0], sizes = [8, 32], strides = [1, 1]} : vector<8x96xf32> to vector<8x32xf32>
    %8 = arith.truncf %7 : vector<8x32xf32> to vector<8x32xbf16>
    %c0_5 = arith.constant 0 : index
    %c0_6 = arith.constant 0 : index
    %9 = vector.load %arg4[%c0_5, %c0_6] : memref<8x32xbf16, #tpu.memory_space<vmem>>, vector<8x32xbf16>
    tpu.vector_store %arg4[%c0_5, %c0_6], %8 {strides = array<i32>} : memref<8x32xbf16, #tpu.memory_space<vmem>>, vector<8x32xbf16>,
    %10 = vector.extract_strided_slice %6 {offsets = [0, 32], sizes = [8, 32], strides = [1, 1]} : vector<8x96xf32> to vector<8x32xf32>
    %11 = arith.truncf %10 : vector<8x32xf32> to vector<8x32xbf16>
    %c0_7 = arith.constant 0 : index
    %c0_8 = arith.constant 0 : index
    %12 = vector.load %arg5[%c0_7, %c0_8] : memref<8x32xbf16, #tpu.memory_space<vmem>>, vector<8x32xbf16>
    tpu.vector_store %arg5[%c0_7, %c0_8], %11 {strides = array<i32>} : memref<8x32xbf16, #tpu.memory_space<vmem>>, vector<8x32xbf16>,
    %13 = vector.extract_strided_slice %6 {offsets = [0, 64], sizes = [8, 32], strides = [1, 1]} : vector<8x96xf32> to vector<8x32xf32>
    %14 = arith.truncf %13 : vector<8x32xf32> to vector<8x32xbf16>
    %c0_9 = arith.constant 0 : index
    %c0_10 = arith.constant 0 : index
    %15 = vector.load %arg6[%c0_9, %c0_10] : memref<8x32xbf16, #tpu.memory_space<vmem>>, vector<8x32xbf16>
    tpu.vector_store %arg6[%c0_9, %c0_10], %14 {strides = array<i32>} : memref<8x32xbf16, #tpu.memory_space<vmem>>, vector<8x32xbf16>,
    return
  }
  func.func @transform_0(%arg0: i32) -> (i32, i32) {
    %c0_i32 = arith.constant 0 : i32
    %c0_i32_0 = arith.constant 0 : i32
    return %arg0, %c0_i32 : i32, i32
  }
  func.func @transform_1(%arg0: i32) -> (i32, i32) {
    %c0_i32 = arith.constant 0 : i32
    %c0_i32_0 = arith.constant 0 : i32
    %c0_i32_1 = arith.constant 0 : i32
    return %c0_i32, %c0_i32_0 : i32, i32
  }
  func.func @transform_2(%arg0: i32) -> (i32, i32) {
    %c0_i32 = arith.constant 0 : i32
    %c0_i32_0 = arith.constant 0 : i32
    %c0_i32_1 = arith.constant 0 : i32
    return %c0_i32, %c0_i32_0 : i32, i32
  }
  func.func @transform_3(%arg0: i32) -> (i32, i32) {
    %c0_i32 = arith.constant 0 : i32
    %c0_i32_0 = arith.constant 0 : i32
    return %arg0, %c0_i32 : i32, i32
  }
  func.func @transform_4(%arg0: i32) -> (i32, i32) {
    %c0_i32 = arith.constant 0 : i32
    %c0_i32_0 = arith.constant 0 : i32
    return %arg0, %c0_i32 : i32, i32
  }
  func.func @transform_5(%arg0: i32) -> (i32, i32) {
    %c0_i32 = arith.constant 0 : i32
    %c0_i32_0 = arith.constant 0 : i32
    return %arg0, %c0_i32 : i32, i32
  }
}

</mosaic_0001>

<llo_original>
// kernel: transformer_encoder_forward.9
$region0: #{transformer_encoder_forward.9}
  #allocation0 [shape = 'u32[]', space=smem, size = 0x4, offset = 0x4, fixed_abs, tag = 'smem constant byte address 0x4 - core index']
  #allocation1 [shape = 'u32[144,128]{1,0:T(1,128)}', space=vmem, size = 0x12000, scoped, tag = 'internal scratch']
  %s0 = inlined_call_operand.hbm [shape: bf16[16,32], index: 0, kind: input, shape index: {}]
  %s1 = inlined_call_operand.vmem [shape: bf16[32,96], index: 1, kind: input, shape index: {}]
  %s2 = inlined_call_operand.vmem [shape: bf16[1,96], index: 2, kind: input, shape index: {}]
  %s3 = inlined_call_operand.vmem [shape: bf16[16,32], index: 3, kind: output, shape index: {0}]
  %s4 = inlined_call_operand.vmem [shape: bf16[16,32], index: 4, kind: output, shape index: {1}]
  %s5 = inlined_call_operand.vmem [shape: bf16[16,32], index: 5, kind: output, shape index: {2}]
  %6 = xla_tuple %s3, %s4, %s5
  %s7 = sld [smem:[#allocation0]]
  $region65: #{transformer_encoder_forward.9} parent=0
    _
  %s9 = ssub.s32 1, %s7
  %s10 = scalar_select 0, %s9, %s7
  $region1: #{transformer_encoder_forward.9} parent=0
    #allocation2 [shape = 'u8[4096]{0}', space=vmem, size = 0x1000, scoped, tag = 'input window, operand 0']
    #allocation3 [shape = 's32[2]{0}', space=sflag, size = 0x8, scoped, tag = 'scoped memory for transformer_encoder_forward.9']
    %11 = vsyncpa [#allocation3], 0
    %s12 = scalar_lea.sflag [#allocation3], 1
    %13 = vsyncpa %s12, 0
    loop: start=0, step=1, limit=4
    $region2: #{transformer_encoder_forward.9} parent=1 // loop_pre_header
      _
    $region3: #{transformer_encoder_forward.9} parent=1 // loop_header
      %s15 = sphi 0, %s19
      %p16 = scmp.ge.s32.totalorder %s15, 4
      %s25 = sphi 0, %s27
      %s28 = sphi 0, %s25
      %s29 = sphi 0, %s28
      %s45 = sphi 0, %s29
      %s49 = sphi 0, %s49
      %s51 = sphi 0, %s49
      %s52 = sphi 0, %s51
      %s66 = sphi 0, %s52
      %s70 = sphi 0, %s70
      %s72 = sphi 0, %s70
      %s73 = sphi 0, %s72
      %s87 = sphi 0, %s73
      %s93 = sphi 0, %s95
      %s96 = sphi 0, %s93
      %s97 = sphi 0, %s96
      %s113 = sphi 0, %s97
      %s119 = sphi 0, %s121
      %s122 = sphi 0, %s119
      %s123 = sphi 0, %s122
      %s139 = sphi 0, %s123
      %s145 = sphi 0, %s147
      %s148 = sphi 0, %s145
      %s149 = sphi 0, %s148
      %s165 = sphi 0, %s149
    $region4: #{transformer_encoder_forward.9} parent=1 // loop_header_branch
      %18 = sbr.rel (%p16) target = $region8
    $region5: #{transformer_encoder_forward.9} parent=1 // loop_body
      %s20 = ssub.s32 %s15, 1
      %s21 = ssub.s32 %s15, 2
      %s22 = sadd.s32 %s15, 1
      %s23 = ssub.s32 %s15, %s22
      %p24 = scmp.eq.s32.totalorder %s23, 0
      %s26 = sadd.s32 %s25, 1
      %s27 = scalar_select %p24, %s25, %s26
      %p30 = pneg %p24
      %p31 = scmp.eq.s32.totalorder %s15, 1
      %p32 = por %p30, %p31
      %p33 = scmp.ne.s32.totalorder %s25, %s28
      %p34 = scmp.eq.s32.totalorder %s15, 0
      %p35 = por %p33, %p34
      %p36 = scmp.ne.s32.totalorder %s25, %s28
      %p37 = scmp.eq.s32.totalorder %s20, 1
      %p38 = por %p36, %p37
      %p39 = scmp.ne.s32.totalorder %s28, %s29
      %p40 = scmp.eq.s32.totalorder %s20, 0
      %p41 = por %p39, %p40
      %p42 = scmp.ne.s32.totalorder %s28, %s29
      %p43 = scmp.eq.s32.totalorder %s21, 1
      %p44 = por %p42, %p43
      %p46 = scmp.ne.s32.totalorder %s29, %s45
      %p47 = scmp.eq.s32.totalorder %s21, 0
      %p48 = por %p46, %p47
      %s50 = sadd.s32 %s49, 1
      %p53 = scmp.eq.s32.totalorder %s15, 1
      %p54 = scmp.ne.s32.totalorder %s49, %s51
      %p55 = scmp.eq.s32.totalorder %s15, 0
      %p56 = por %p54, %p55
      %p57 = scmp.ne.s32.totalorder %s49, %s51
      %p58 = scmp.eq.s32.totalorder %s20, 1
      %p59 = por %p57, %p58
      %p60 = scmp.ne.s32.totalorder %s51, %s52
      %p61 = scmp.eq.s32.totalorder %s20, 0
      %p62 = por %p60, %p61
      %p63 = scmp.ne.s32.totalorder %s51, %s52
      %p64 = scmp.eq.s32.totalorder %s21, 1
      %p65 = por %p63, %p64
      %p67 = scmp.ne.s32.totalorder %s52, %s66
      %p68 = scmp.eq.s32.totalorder %s21, 0
      %p69 = por %p67, %p68
      %s71 = sadd.s32 %s70, 1
      %p74 = scmp.eq.s32.totalorder %s15, 1
      %p75 = scmp.ne.s32.totalorder %s70, %s72
      %p76 = scmp.eq.s32.totalorder %s15, 0
      %p77 = por %p75, %p76
      %p78 = scmp.ne.s32.totalorder %s70, %s72
      %p79 = scmp.eq.s32.totalorder %s20, 1
      %p80 = por %p78, %p79
      %p81 = scmp.ne.s32.totalorder %s72, %s73
      %p82 = scmp.eq.s32.totalorder %s20, 0
      %p83 = por %p81, %p82
      %p84 = scmp.ne.s32.totalorder %s72, %s73
      %p85 = scmp.eq.s32.totalorder %s21, 1
      %p86 = por %p84, %p85
      %p88 = scmp.ne.s32.totalorder %s73, %s87
      %p89 = scmp.eq.s32.totalorder %s21, 0
      %p90 = por %p88, %p89
      %s91 = ssub.s32 %s15, %s22
      %p92 = scmp.eq.s32.totalorder %s91, 0
      %s94 = sadd.s32 %s93, 1
      %s95 = scalar_select %p92, %s93, %s94
      %p98 = pneg %p92
      %p99 = scmp.eq.s32.totalorder %s15, 1
      %p100 = por %p98, %p99
      %p101 = scmp.ne.s32.totalorder %s93, %s96
      %p102 = scmp.eq.s32.totalorder %s15, 0
      %p103 = por %p101, %p102
      %p104 = scmp.ne.s32.totalorder %s93, %s96
      %p105 = scmp.eq.s32.totalorder %s20, 1
      %p106 = por %p104, %p105
      %p107 = scmp.ne.s32.totalorder %s96, %s97
      %p108 = scmp.eq.s32.totalorder %s20, 0
      %p109 = por %p107, %p108
      %p110 = scmp.ne.s32.totalorder %s96, %s97
      %p111 = scmp.eq.s32.totalorder %s21, 1
      %p112 = por %p110, %p111
      %p114 = scmp.ne.s32.totalorder %s97, %s113
      %p115 = scmp.eq.s32.totalorder %s21, 0
      %p116 = por %p114, %p115
      %s117 = ssub.s32 %s15, %s22
      %p118 = scmp.eq.s32.totalorder %s117, 0
      %s120 = sadd.s32 %s119, 1
      %s121 = scalar_select %p118, %s119, %s120
      %p124 = pneg %p118
      %p125 = scmp.eq.s32.totalorder %s15, 1
      %p126 = por %p124, %p125
      %p127 = scmp.ne.s32.totalorder %s119, %s122
      %p128 = scmp.eq.s32.totalorder %s15, 0
      %p129 = por %p127, %p128
      %p130 = scmp.ne.s32.totalorder %s119, %s122
      %p131 = scmp.eq.s32.totalorder %s20, 1
      %p132 = por %p130, %p131
      %p133 = scmp.ne.s32.totalorder %s122, %s123
      %p134 = scmp.eq.s32.totalorder %s20, 0
      %p135 = por %p133, %p134
      %p136 = scmp.ne.s32.totalorder %s122, %s123
      %p137 = scmp.eq.s32.totalorder %s21, 1
      %p138 = por %p136, %p137
      %p140 = scmp.ne.s32.totalorder %s123, %s139
      %p141 = scmp.eq.s32.totalorder %s21, 0
      %p142 = por %p140, %p141
      %s143 = ssub.s32 %s15, %s22
      %p144 = scmp.eq.s32.totalorder %s143, 0
      %s146 = sadd.s32 %s145, 1
      %s147 = scalar_select %p144, %s145, %s146
      %p150 = pneg %p144
      %p151 = scmp.eq.s32.totalorder %s15, 1
      %p152 = por %p150, %p151
      %p153 = scmp.ne.s32.totalorder %s145, %s148
      %p154 = scmp.eq.s32.totalorder %s15, 0
      %p155 = por %p153, %p154
      %p156 = scmp.ne.s32.totalorder %s145, %s148
      %p157 = scmp.eq.s32.totalorder %s20, 1
      %p158 = por %p156, %p157
      %p159 = scmp.ne.s32.totalorder %s148, %s149
      %p160 = scmp.eq.s32.totalorder %s20, 0
      %p161 = por %p159, %p160
      %p162 = scmp.ne.s32.totalorder %s148, %s149
      %p163 = scmp.eq.s32.totalorder %s21, 1
      %p164 = por %p162, %p163
      %p166 = scmp.ne.s32.totalorder %s149, %s165
      %p167 = scmp.eq.s32.totalorder %s21, 0
      %p168 = por %p166, %p167
      %p169 = scmp.le.s32.totalorder 1, %s15
      %p170 = scmp.lt.s32.totalorder %s15, 3
      %p171 = pnand %p169, %p170
      %p172 = pneg %p171
      // Predicated region
      $region9: #{transformer_encoder_forward.9} parent=5 // pred_check
        _
      $region10: #{transformer_encoder_forward.9} parent=5 // pred_check_branch
        %174 = sbr.rel (%p171) target = $region12
      $region11: #{transformer_encoder_forward.9} parent=5 // pred_region
        %s175 = ssub.s32 %s15, 1
        // Predicated region
        $region13: #{transformer_encoder_forward.9} parent=11 // pred_check
          %p176 = pneg %p62
        $region14: #{transformer_encoder_forward.9} parent=11 // pred_check_branch
          %178 = sbr.rel (%p176) target = $region16
        $region15: #{transformer_encoder_forward.9} parent=11 // pred_region
          _
        $region16: #{transformer_encoder_forward.9} parent=11 // pred_fallthru
          _
        // Predicated region
        $region17: #{transformer_encoder_forward.9} parent=11 // pred_check
          %p179 = pneg %p83
        $region18: #{transformer_encoder_forward.9} parent=11 // pred_check_branch
          %181 = sbr.rel (%p179) target = $region20
        $region19: #{transformer_encoder_forward.9} parent=11 // pred_region
          _
        $region20: #{transformer_encoder_forward.9} parent=11 // pred_fallthru
          _
      $region12: #{transformer_encoder_forward.9} parent=5 // pred_fallthru
        _
      %p182 = scmp.lt.s32.totalorder %s15, 2
      // Predicated region
      $region21: #{transformer_encoder_forward.9} parent=5 // pred_check
        %p183 = pneg %p182
      $region22: #{transformer_encoder_forward.9} parent=5 // pred_check_branch
        %185 = sbr.rel (%p183) target = $region24
      $region23: #{transformer_encoder_forward.9} parent=5 // pred_region
        // Predicated region
        $region25: #{transformer_encoder_forward.9} parent=23 // pred_check
          %p186 = pneg %p35
        $region26: #{transformer_encoder_forward.9} parent=23 // pred_check_branch
          %188 = sbr.rel (%p186) target = $region28
        $region27: #{transformer_encoder_forward.9} parent=23 // pred_region
          %s189 = sand.u32 %s25, 1
          %s190 = scalar_lea.sflag [#allocation3], %s189
          %s191 = sand.u32 %s25, 1
          %s192 = smul.addr %s191, 4
          %s193 = scalar_lea.vmem [#allocation2], %s192
          %s195 = ssub.s32 64, 64
          %196 = vsyncadd %s190, %s195
          %s197 = smul.addr %s15, 64
          %s198 = scalar_lea.hbm %s0, %s197
          %s200 = sshll.u32 %s193, 4
          %s201 = int_to_ptr.vmem [resolvable:$true] %s200
          %203 = dma.hbm_to_vmem [thread:$0]  %s198, 64, %s201, %s190
        $region28: #{transformer_encoder_forward.9} parent=23 // pred_fallthru
          _
      $region24: #{transformer_encoder_forward.9} parent=5 // pred_fallthru
        _
      %p204 = scmp.le.s32.totalorder 1, %s15
      %p205 = scmp.lt.s32.totalorder %s15, 3
      %p206 = pnand %p204, %p205
      %p207 = pneg %p206
      // Predicated region
      $region29: #{transformer_encoder_forward.9} parent=5 // pred_check
        _
      $region30: #{transformer_encoder_forward.9} parent=5 // pred_check_branch
        %209 = sbr.rel (%p206) target = $region32
      $region31: #{transformer_encoder_forward.9} parent=5 // pred_region
        %s210 = ssub.s32 %s15, 1
        %s211 = sand.u32 %s28, 1
        %s212 = scalar_lea.sflag [#allocation3], %s211
        %s213 = sand.u32 %s28, 1
        %s214 = smul.addr %s213, 4
        %s215 = scalar_lea.vmem [#allocation2], %s214
        // Predicated region
        $region33: #{transformer_encoder_forward.9} parent=31 // pred_check
          %p216 = pneg %p41
        $region34: #{transformer_encoder_forward.9} parent=31 // pred_check_branch
          %218 = sbr.rel (%p216) target = $region36
        $region35: #{transformer_encoder_forward.9} parent=31 // pred_region
          %219 = dma.done %s212, 64
        $region36: #{transformer_encoder_forward.9} parent=31 // pred_fallthru
          _
        %s220 = sand.u32 %s28, 1
        %s221 = scalar_lea.sflag [#allocation3], %s220
        %s222 = sand.u32 %s28, 1
        %s223 = smul.addr %s222, 4
        %s224 = scalar_lea.vmem [#allocation2], %s223
        %p225 = pneg %p41
        %p226 = pneg %p38
        %p227 = pneg %p62
        %p228 = pneg %p59
        %p229 = pneg %p83
        %p230 = pneg %p80
        %p231 = pneg %p109
        %p232 = pneg %p106
        %p233 = scmp.lt.s32.totalorder %s20, 1
        %s234 = scalar_select %p233, %s20, 1
        %s235 = smul.addr %s234, 4
        %s236 = scalar_lea.vmem %s3, %s235
        %p237 = pneg %p135
        %p238 = pneg %p132
        %p239 = scmp.lt.s32.totalorder %s20, 1
        %s240 = scalar_select %p239, %s20, 1
        %s241 = smul.addr %s240, 4
        %s242 = scalar_lea.vmem %s4, %s241
        %p243 = pneg %p161
        %p244 = pneg %p158
        %p245 = scmp.lt.s32.totalorder %s20, 1
        %s246 = scalar_select %p245, %s20, 1
        %s247 = smul.addr %s246, 4
        %s248 = scalar_lea.vmem %s5, %s247
        %p249 = scmp.lt.s32.totalorder %s20, 1
        %s250 = scalar_select %p249, %s20, 1
        %s251 = smul.addr %s250, 4
        %s252 = scalar_lea.vmem %s3, %s251
        %p253 = scmp.lt.s32.totalorder %s20, 1
        %s254 = scalar_select %p253, %s20, 1
        %s255 = smul.addr %s254, 4
        %s256 = scalar_lea.vmem %s4, %s255
        %p257 = scmp.lt.s32.totalorder %s20, 1
        %s258 = scalar_select %p257, %s20, 1
        %s259 = smul.addr %s258, 4
        %s260 = scalar_lea.vmem %s5, %s259
        %v262 = vld [vmem:[%s215] sm:$0xf]
        %v263 = vld [vmem:[%s1] sm:$0xf]
        %v264 = vld [vmem:[%s1 + $0x4] sm:$0xf]
        %v265 = vld [vmem:[%s1 + $0x8] sm:$0xf]
        %v266 = vld [vmem:[%s1 + $0xc] sm:$0xf]
        %v267 = vld [vmem:[%s2] sm:$0x1]
        %v268 = vunpack.c.l.bf16 %v267
        %v269 = vlaneseq
        %v270 = vshrl.u32 %v269, 7
        %v271 = vsub.s32 0, %v270
        %v272 = vrot.slane %v268, %v271
        %v277 = vunpack.c.l.b16 %v263
        %v278 = vunpack.c.l.b16 %v264
        %v279 = vunpack.c.l.b16 %v265
        %v280 = vunpack.c.l.b16 %v266
        %v281 = vpack.c.b16 %v278, %v277
        %v282 = vpack.c.b16 %v280, %v279
        %vm285 = vcmask 261120
        %v287 = vsel %vm285, %v262, 0
        %289 = vmatprep.subr.bf16.mxu0 0
        %290 = vmatpush1.bf16.msra.mxu0 %v281
        %291 = vmatprep.subr.bf16.mxu0 0
        %292 = vmatpush1.bf16.msra.mxu0 %v282
        %293 = vmatprep.subr.bf16.mxu0 0
        %294 = vmatpush1.bf16.msra.mxu0 0
        %295 = vmatprep.subr.bf16.mxu0 0
        %296 = vmatpush1.bf16.msra.mxu0 0
        %297 = vmatprep.subr.bf16.mxu0 0
        %298 = vmatpush1.bf16.msra.mxu0 0
        %299 = vmatprep.subr.bf16.mxu0 0
        %300 = vmatpush1.bf16.msra.mxu0 0
        %301 = vmatprep.subr.bf16.mxu0 0
        %302 = vmatpush1.bf16.msra.mxu0 0
        %303 = vmatprep.subr.bf16.mxu0 0
        %304 = vmatpush1.bf16.msra.mxu0 0
        %305 = vmatprep.subr.bf16.mxu0 0
        %306 = vmatpush1.bf16.msra.mxu0 0
        %307 = vmatprep.subr.bf16.mxu0 0
        %308 = vmatpush1.bf16.msra.mxu0 0
        %309 = vmatprep.subr.bf16.mxu0 0
        %310 = vmatpush1.bf16.msra.mxu0 0
        %311 = vmatprep.subr.bf16.mxu0 0
        %312 = vmatpush1.bf16.msra.mxu0 0
        %313 = vmatprep.subr.bf16.mxu0 0
        %314 = vmatpush1.bf16.msra.mxu0 0
        %315 = vmatprep.subr.bf16.mxu0 0
        %316 = vmatpush1.bf16.msra.mxu0 0
        %317 = vmatprep.subr.bf16.mxu0 0
        %318 = vmatpush1.bf16.msra.mxu0 0
        %319 = vmatprep.subr.bf16.mxu0 0
        %320 = vmatpush1.bf16.msra.mxu0 0
        %321 = vmatprep.mubr.bf16.mxu0 0
        %322 = vmatmul.mubr.bf16.gmra.mrb[0].mxu0 %v287
        %v323 = vpop.f32.mrb[0].mxu0
        %v324 = vadd.f32 %v272, %v323
        %v325 = vpop.f32.mrb[0].mxu0
        %v326 = vpop.f32.mrb[0].mxu0
        %v327 = vpop.f32.mrb[0].mxu0
        %328 = vdwg.mxu0
        %v329 = vpack.c.bf16 %v324, %v324
        %vm330 = vcmask 257024
        %331 = vst.msk [vmem:[%s252] sm:$0xf] %vm330, %v329
        %v333 = vunpack.c.l.b16 %v329
        %v334 = vpack.c.b16 %v333, %v333
        %335 = vrot.lane.b32.xlu0 %v334, 96
        %v336 = vpop.permute.xlu0 %335
        %338 = vst.msk [vmem:[%s256] sm:$0xf] %vm330, %v336
        %339 = vrot.lane.b32.xlu0 %v334, 64
        %v340 = vpop.permute.xlu0 %339
        %342 = vst.msk [vmem:[%s260] sm:$0xf] %vm330, %v340
        %p343 = scmp.lt.s32.totalorder %s20, 1
        %s344 = scalar_select %p343, %s20, 1
        %s345 = smul.addr %s344, 4
        %s346 = scalar_lea.vmem %s3, %s345
        %p347 = scmp.lt.s32.totalorder %s20, 1
        %s348 = scalar_select %p347, %s20, 1
        %s349 = smul.addr %s348, 4
        %s350 = scalar_lea.vmem %s4, %s349
        %p351 = scmp.lt.s32.totalorder %s20, 1
        %s352 = scalar_select %p351, %s20, 1
        %s353 = smul.addr %s352, 4
        %s354 = scalar_lea.vmem %s5, %s353
        // Predicated region
        $region37: #{transformer_encoder_forward.9} parent=31 // pred_check
          %p355 = pneg %p106
        $region38: #{transformer_encoder_forward.9} parent=31 // pred_check_branch
          %357 = sbr.rel (%p355) target = $region40
        $region39: #{transformer_encoder_forward.9} parent=31 // pred_region
          _
        $region40: #{transformer_encoder_forward.9} parent=31 // pred_fallthru
          _
        // Predicated region
        $region41: #{transformer_encoder_forward.9} parent=31 // pred_check
          %p358 = pneg %p132
        $region42: #{transformer_encoder_forward.9} parent=31 // pred_check_branch
          %360 = sbr.rel (%p358) target = $region44
        $region43: #{transformer_encoder_forward.9} parent=31 // pred_region
          _
        $region44: #{transformer_encoder_forward.9} parent=31 // pred_fallthru
          _
        // Predicated region
        $region45: #{transformer_encoder_forward.9} parent=31 // pred_check
          %p361 = pneg %p158
        $region46: #{transformer_encoder_forward.9} parent=31 // pred_check_branch
          %363 = sbr.rel (%p361) target = $region48
        $region47: #{transformer_encoder_forward.9} parent=31 // pred_region
          _
        $region48: #{transformer_encoder_forward.9} parent=31 // pred_fallthru
          _
      $region32: #{transformer_encoder_forward.9} parent=5 // pred_fallthru
        _
      %p364 = scmp.le.s32.totalorder 2, %s15
      // Predicated region
      $region49: #{transformer_encoder_forward.9} parent=5 // pred_check
        %p365 = pneg %p364
      $region50: #{transformer_encoder_forward.9} parent=5 // pred_check_branch
        %367 = sbr.rel (%p365) target = $region52
      $region51: #{transformer_encoder_forward.9} parent=5 // pred_region
        %s368 = ssub.s32 %s15, 2
        // Predicated region
        $region53: #{transformer_encoder_forward.9} parent=51 // pred_check
          %p369 = pneg %p112
        $region54: #{transformer_encoder_forward.9} parent=51 // pred_check_branch
          %371 = sbr.rel (%p369) target = $region56
        $region55: #{transformer_encoder_forward.9} parent=51 // pred_region
          %p372 = scmp.lt.s32.totalorder %s21, 1
          %s373 = scalar_select %p372, %s21, 1
          %s374 = smul.addr %s373, 4
          %s375 = scalar_lea.vmem %s3, %s374
        $region56: #{transformer_encoder_forward.9} parent=51 // pred_fallthru
          _
        // Predicated region
        $region57: #{transformer_encoder_forward.9} parent=51 // pred_check
          %p376 = pneg %p138
        $region58: #{transformer_encoder_forward.9} parent=51 // pred_check_branch
          %378 = sbr.rel (%p376) target = $region60
        $region59: #{transformer_encoder_forward.9} parent=51 // pred_region
          %p379 = scmp.lt.s32.totalorder %s21, 1
          %s380 = scalar_select %p379, %s21, 1
          %s381 = smul.addr %s380, 4
          %s382 = scalar_lea.vmem %s4, %s381
        $region60: #{transformer_encoder_forward.9} parent=51 // pred_fallthru
          _
        // Predicated region
        $region61: #{transformer_encoder_forward.9} parent=51 // pred_check
          %p383 = pneg %p164
        $region62: #{transformer_encoder_forward.9} parent=51 // pred_check_branch
          %385 = sbr.rel (%p383) target = $region64
        $region63: #{transformer_encoder_forward.9} parent=51 // pred_region
          %p386 = scmp.lt.s32.totalorder %s21, 1
          %s387 = scalar_select %p386, %s21, 1
          %s388 = smul.addr %s387, 4
          %s389 = scalar_lea.vmem %s5, %s388
        $region64: #{transformer_encoder_forward.9} parent=51 // pred_fallthru
          _
      $region52: #{transformer_encoder_forward.9} parent=5 // pred_fallthru
        _
    $region6: #{transformer_encoder_forward.9} parent=1 // loop_footer
      %s19 = sadd.s32 1, %s15
    $region7: #{transformer_encoder_forward.9} parent=1 // loop_footer_branch
      %14 = sbr.rel target = $region3
    $region8: #{transformer_encoder_forward.9} parent=1 // loop_exit
      _
    %390 = vsyncpa [#allocation3], 1
    %s391 = scalar_lea.sflag [#allocation3], 1
    %392 = vsyncpa %s391, 1

// kernel: transformer_encoder_forward.11
$region0: #{transformer_encoder_forward.11}
  #allocation0 [shape = 'u32[]', space=smem, size = 0x4, offset = 0x4, fixed_abs, tag = 'smem constant byte address 0x4 - core index']
  #allocation1 [shape = 'u32[144,128]{1,0:T(1,128)}', space=vmem, size = 0x12000, scoped, tag = 'internal scratch']
  %s0 = inlined_call_operand.vmem [shape: bf16[16,32], index: 0, kind: input, shape index: {}]
  %s1 = inlined_call_operand.vmem [shape: bf16[32,32], index: 1, kind: input, shape index: {}]
  %s2 = inlined_call_operand.vmem [shape: bf16[1,32], index: 2, kind: input, shape index: {}]
  %s3 = inlined_call_operand.vmem [shape: bf16[16,32], index: 3, kind: input, shape index: {}]
  %s4 = inlined_call_operand.vmem [shape: bf16[1,32], index: 4, kind: input, shape index: {}]
  %s5 = inlined_call_operand.vmem [shape: bf16[1,32], index: 5, kind: input, shape index: {}]
  %s6 = inlined_call_operand.vmem [shape: bf16[16,32], index: 6, kind: output, shape index: {}]
  %s7 = sld [smem:[#allocation0]]
  $region57: #{transformer_encoder_forward.11} parent=0
    _
  %s9 = ssub.s32 1, %s7
  %s10 = scalar_select 0, %s9, %s7
  loop: start=0, step=1, limit=4
  $region2: #{transformer_encoder_forward.11} parent=0 // loop_pre_header
    _
  $region3: #{transformer_encoder_forward.11} parent=0 // loop_header
    %s12 = sphi 0, %s16
    %p13 = scmp.ge.s32.totalorder %s12, 4
    %s22 = sphi 0, %s24
    %s25 = sphi 0, %s22
    %s26 = sphi 0, %s25
    %s42 = sphi 0, %s26
    %s46 = sphi 0, %s46
    %s48 = sphi 0, %s46
    %s49 = sphi 0, %s48
    %s63 = sphi 0, %s49
    %s67 = sphi 0, %s67
    %s69 = sphi 0, %s67
    %s70 = sphi 0, %s69
    %s84 = sphi 0, %s70
    %s90 = sphi 0, %s92
    %s93 = sphi 0, %s90
    %s94 = sphi 0, %s93
    %s110 = sphi 0, %s94
    %s114 = sphi 0, %s114
    %s116 = sphi 0, %s114
    %s117 = sphi 0, %s116
    %s131 = sphi 0, %s117
    %s135 = sphi 0, %s135
    %s137 = sphi 0, %s135
    %s138 = sphi 0, %s137
    %s152 = sphi 0, %s138
    %s158 = sphi 0, %s160
    %s161 = sphi 0, %s158
    %s162 = sphi 0, %s161
    %s178 = sphi 0, %s162
  $region4: #{transformer_encoder_forward.11} parent=0 // loop_header_branch
    %15 = sbr.rel (%p13) target = $region8
  $region5: #{transformer_encoder_forward.11} parent=0 // loop_body
    %s17 = ssub.s32 %s12, 1
    %s18 = ssub.s32 %s12, 2
    %s19 = sadd.s32 %s12, 1
    %s20 = ssub.s32 %s12, %s19
    %p21 = scmp.eq.s32.totalorder %s20, 0
    %s23 = sadd.s32 %s22, 1
    %s24 = scalar_select %p21, %s22, %s23
    %p27 = pneg %p21
    %p28 = scmp.eq.s32.totalorder %s12, 1
    %p29 = por %p27, %p28
    %p30 = scmp.ne.s32.totalorder %s22, %s25
    %p31 = scmp.eq.s32.totalorder %s12, 0
    %p32 = por %p30, %p31
    %p33 = scmp.ne.s32.totalorder %s22, %s25
    %p34 = scmp.eq.s32.totalorder %s17, 1
    %p35 = por %p33, %p34
    %p36 = scmp.ne.s32.totalorder %s25, %s26
    %p37 = scmp.eq.s32.totalorder %s17, 0
    %p38 = por %p36, %p37
    %p39 = scmp.ne.s32.totalorder %s25, %s26
    %p40 = scmp.eq.s32.totalorder %s18, 1
    %p41 = por %p39, %p40
    %p43 = scmp.ne.s32.totalorder %s26, %s42
    %p44 = scmp.eq.s32.totalorder %s18, 0
    %p45 = por %p43, %p44
    %s47 = sadd.s32 %s46, 1
    %p50 = scmp.eq.s32.totalorder %s12, 1
    %p51 = scmp.ne.s32.totalorder %s46, %s48
    %p52 = scmp.eq.s32.totalorder %s12, 0
    %p53 = por %p51, %p52
    %p54 = scmp.ne.s32.totalorder %s46, %s48
    %p55 = scmp.eq.s32.totalorder %s17, 1
    %p56 = por %p54, %p55
    %p57 = scmp.ne.s32.totalorder %s48, %s49
    %p58 = scmp.eq.s32.totalorder %s17, 0
    %p59 = por %p57, %p58
    %p60 = scmp.ne.s32.totalorder %s48, %s49
    %p61 = scmp.eq.s32.totalorder %s18, 1
    %p62 = por %p60, %p61
    %p64 = scmp.ne.s32.totalorder %s49, %s63
    %p65 = scmp.eq.s32.totalorder %s18, 0
    %p66 = por %p64, %p65
    %s68 = sadd.s32 %s67, 1
    %p71 = scmp.eq.s32.totalorder %s12, 1
    %p72 = scmp.ne.s32.totalorder %s67, %s69
    %p73 = scmp.eq.s32.totalorder %s12, 0
    %p74 = por %p72, %p73
    %p75 = scmp.ne.s32.totalorder %s67, %s69
    %p76 = scmp.eq.s32.totalorder %s17, 1
    %p77 = por %p75, %p76
    %p78 = scmp.ne.s32.totalorder %s69, %s70
    %p79 = scmp.eq.s32.totalorder %s17, 0
    %p80 = por %p78, %p79
    %p81 = scmp.ne.s32.totalorder %s69, %s70
    %p82 = scmp.eq.s32.totalorder %s18, 1
    %p83 = por %p81, %p82
    %p85 = scmp.ne.s32.totalorder %s70, %s84
    %p86 = scmp.eq.s32.totalorder %s18, 0
    %p87 = por %p85, %p86
    %s88 = ssub.s32 %s12, %s19
    %p89 = scmp.eq.s32.totalorder %s88, 0
    %s91 = sadd.s32 %s90, 1
    %s92 = scalar_select %p89, %s90, %s91
    %p95 = pneg %p89
    %p96 = scmp.eq.s32.totalorder %s12, 1
    %p97 = por %p95, %p96
    %p98 = scmp.ne.s32.totalorder %s90, %s93
    %p99 = scmp.eq.s32.totalorder %s12, 0
    %p100 = por %p98, %p99
    %p101 = scmp.ne.s32.totalorder %s90, %s93
    %p102 = scmp.eq.s32.totalorder %s17, 1
    %p103 = por %p101, %p102
    %p104 = scmp.ne.s32.totalorder %s93, %s94
    %p105 = scmp.eq.s32.totalorder %s17, 0
    %p106 = por %p104, %p105
    %p107 = scmp.ne.s32.totalorder %s93, %s94
    %p108 = scmp.eq.s32.totalorder %s18, 1
    %p109 = por %p107, %p108
    %p111 = scmp.ne.s32.totalorder %s94, %s110
    %p112 = scmp.eq.s32.totalorder %s18, 0
    %p113 = por %p111, %p112
    %s115 = sadd.s32 %s114, 1
    %p118 = scmp.eq.s32.totalorder %s12, 1
    %p119 = scmp.ne.s32.totalorder %s114, %s116
    %p120 = scmp.eq.s32.totalorder %s12, 0
    %p121 = por %p119, %p120
    %p122 = scmp.ne.s32.totalorder %s114, %s116
    %p123 = scmp.eq.s32.totalorder %s17, 1
    %p124 = por %p122, %p123
    %p125 = scmp.ne.s32.totalorder %s116, %s117
    %p126 = scmp.eq.s32.totalorder %s17, 0
    %p127 = por %p125, %p126
    %p128 = scmp.ne.s32.totalorder %s116, %s117
    %p129 = scmp.eq.s32.totalorder %s18, 1
    %p130 = por %p128, %p129
    %p132 = scmp.ne.s32.totalorder %s117, %s131
    %p133 = scmp.eq.s32.totalorder %s18, 0
    %p134 = por %p132, %p133
    %s136 = sadd.s32 %s135, 1
    %p139 = scmp.eq.s32.totalorder %s12, 1
    %p140 = scmp.ne.s32.totalorder %s135, %s137
    %p141 = scmp.eq.s32.totalorder %s12, 0
    %p142 = por %p140, %p141
    %p143 = scmp.ne.s32.totalorder %s135, %s137
    %p144 = scmp.eq.s32.totalorder %s17, 1
    %p145 = por %p143, %p144
    %p146 = scmp.ne.s32.totalorder %s137, %s138
    %p147 = scmp.eq.s32.totalorder %s17, 0
    %p148 = por %p146, %p147
    %p149 = scmp.ne.s32.totalorder %s137, %s138
    %p150 = scmp.eq.s32.totalorder %s18, 1
    %p151 = por %p149, %p150
    %p153 = scmp.ne.s32.totalorder %s138, %s152
    %p154 = scmp.eq.s32.totalorder %s18, 0
    %p155 = por %p153, %p154
    %s156 = ssub.s32 %s12, %s19
    %p157 = scmp.eq.s32.totalorder %s156, 0
    %s159 = sadd.s32 %s158, 1
    %s160 = scalar_select %p157, %s158, %s159
    %p163 = pneg %p157
    %p164 = scmp.eq.s32.totalorder %s12, 1
    %p165 = por %p163, %p164
    %p166 = scmp.ne.s32.totalorder %s158, %s161
    %p167 = scmp.eq.s32.totalorder %s12, 0
    %p168 = por %p166, %p167
    %p169 = scmp.ne.s32.totalorder %s158, %s161
    %p170 = scmp.eq.s32.totalorder %s17, 1
    %p171 = por %p169, %p170
    %p172 = scmp.ne.s32.totalorder %s161, %s162
    %p173 = scmp.eq.s32.totalorder %s17, 0
    %p174 = por %p172, %p173
    %p175 = scmp.ne.s32.totalorder %s161, %s162
    %p176 = scmp.eq.s32.totalorder %s18, 1
    %p177 = por %p175, %p176
    %p179 = scmp.ne.s32.totalorder %s162, %s178
    %p180 = scmp.eq.s32.totalorder %s18, 0
    %p181 = por %p179, %p180
    %p182 = scmp.le.s32.totalorder 1, %s12
    %p183 = scmp.lt.s32.totalorder %s12, 3
    %p184 = pnand %p182, %p183
    %p185 = pneg %p184
    // Predicated region
    $region9: #{transformer_encoder_forward.11} parent=5 // pred_check
      _
    $region10: #{transformer_encoder_forward.11} parent=5 // pred_check_branch
      %187 = sbr.rel (%p184) target = $region12
    $region11: #{transformer_encoder_forward.11} parent=5 // pred_region
      %s188 = ssub.s32 %s12, 1
      // Predicated region
      $region13: #{transformer_encoder_forward.11} parent=11 // pred_check
        %p189 = pneg %p59
      $region14: #{transformer_encoder_forward.11} parent=11 // pred_check_branch
        %191 = sbr.rel (%p189) target = $region16
      $region15: #{transformer_encoder_forward.11} parent=11 // pred_region
        _
      $region16: #{transformer_encoder_forward.11} parent=11 // pred_fallthru
        _
      // Predicated region
      $region17: #{transformer_encoder_forward.11} parent=11 // pred_check
        %p192 = pneg %p80
      $region18: #{transformer_encoder_forward.11} parent=11 // pred_check_branch
        %194 = sbr.rel (%p192) target = $region20
      $region19: #{transformer_encoder_forward.11} parent=11 // pred_region
        _
      $region20: #{transformer_encoder_forward.11} parent=11 // pred_fallthru
        _
      // Predicated region
      $region21: #{transformer_encoder_forward.11} parent=11 // pred_check
        %p195 = pneg %p127
      $region22: #{transformer_encoder_forward.11} parent=11 // pred_check_branch
        %197 = sbr.rel (%p195) target = $region24
      $region23: #{transformer_encoder_forward.11} parent=11 // pred_region
        _
      $region24: #{transformer_encoder_forward.11} parent=11 // pred_fallthru
        _
      // Predicated region
      $region25: #{transformer_encoder_forward.11} parent=11 // pred_check
        %p198 = pneg %p148
      $region26: #{transformer_encoder_forward.11} parent=11 // pred_check_branch
        %200 = sbr.rel (%p198) target = $region28
      $region27: #{transformer_encoder_forward.11} parent=11 // pred_region
        _
      $region28: #{transformer_encoder_forward.11} parent=11 // pred_fallthru
        _
    $region12: #{transformer_encoder_forward.11} parent=5 // pred_fallthru
      _
    %p201 = scmp.lt.s32.totalorder %s12, 2
    // Predicated region
    $region29: #{transformer_encoder_forward.11} parent=5 // pred_check
      %p202 = pneg %p201
    $region30: #{transformer_encoder_forward.11} parent=5 // pred_check_branch
      %204 = sbr.rel (%p202) target = $region32
    $region31: #{transformer_encoder_forward.11} parent=5 // pred_region
      // Predicated region
      $region33: #{transformer_encoder_forward.11} parent=31 // pred_check
        %p205 = pneg %p32
      $region34: #{transformer_encoder_forward.11} parent=31 // pred_check_branch
        %207 = sbr.rel (%p205) target = $region36
      $region35: #{transformer_encoder_forward.11} parent=31 // pred_region
        %p208 = scmp.lt.s32.totalorder %s12, 1
        %s209 = scalar_select %p208, %s12, 1
        %s210 = smul.addr %s209, 4
        %s211 = scalar_lea.vmem %s0, %s210
      $region36: #{transformer_encoder_forward.11} parent=31 // pred_fallthru
        _
      // Predicated region
      $region37: #{transformer_encoder_forward.11} parent=31 // pred_check
        %p212 = pneg %p100
      $region38: #{transformer_encoder_forward.11} parent=31 // pred_check_branch
        %214 = sbr.rel (%p212) target = $region40
      $region39: #{transformer_encoder_forward.11} parent=31 // pred_region
        %p215 = scmp.lt.s32.totalorder %s12, 1
        %s216 = scalar_select %p215, %s12, 1
        %s217 = smul.addr %s216, 4
        %s218 = scalar_lea.vmem %s3, %s217
      $region40: #{transformer_encoder_forward.11} parent=31 // pred_fallthru
        _
    $region32: #{transformer_encoder_forward.11} parent=5 // pred_fallthru
      _
    %p219 = scmp.le.s32.totalorder 1, %s12
    %p220 = scmp.lt.s32.totalorder %s12, 3
    %p221 = pnand %p219, %p220
    %p222 = pneg %p221
    // Predicated region
    $region41: #{transformer_encoder_forward.11} parent=5 // pred_check
      _
    $region42: #{transformer_encoder_forward.11} parent=5 // pred_check_branch
      %224 = sbr.rel (%p221) target = $region44
    $region43: #{transformer_encoder_forward.11} parent=5 // pred_region
      %s225 = ssub.s32 %s12, 1
      %p226 = scmp.lt.s32.totalorder %s17, 1
      %s227 = scalar_select %p226, %s17, 1
      %s228 = smul.addr %s227, 4
      %s229 = scalar_lea.vmem %s0, %s228
      %p230 = pneg %p38
      %p231 = pneg %p35
      %p232 = pneg %p59
      %p233 = pneg %p56
      %p234 = pneg %p80
      %p235 = pneg %p77
      %p236 = scmp.lt.s32.totalorder %s17, 1
      %s237 = scalar_select %p236, %s17, 1
      %s238 = smul.addr %s237, 4
      %s239 = scalar_lea.vmem %s3, %s238
      %p240 = pneg %p106
      %p241 = pneg %p103
      %p242 = pneg %p127
      %p243 = pneg %p124
      %p244 = pneg %p148
      %p245 = pneg %p145
      %p246 = pneg %p174
      %p247 = pneg %p171
      %p248 = scmp.lt.s32.totalorder %s17, 1
      %s249 = scalar_select %p248, %s17, 1
      %s250 = smul.addr %s249, 4
      %s251 = scalar_lea.vmem %s6, %s250
      %p252 = scmp.lt.s32.totalorder %s17, 1
      %s253 = scalar_select %p252, %s17, 1
      %s254 = smul.addr %s253, 4
      %s255 = scalar_lea.vmem %s0, %s254
      %p256 = scmp.lt.s32.totalorder %s17, 1
      %s257 = scalar_select %p256, %s17, 1
      %s258 = smul.addr %s257, 4
      %s259 = scalar_lea.vmem %s3, %s258
      %p260 = scmp.lt.s32.totalorder %s17, 1
      %s261 = scalar_select %p260, %s17, 1
      %s262 = smul.addr %s261, 4
      %s263 = scalar_lea.vmem %s6, %s262
      %v265 = vld [vmem:[%s255] sm:$0xf]
      %v266 = vld [vmem:[%s1] sm:$0xf]
      %v267 = vld [vmem:[%s1 + $0x4] sm:$0xf]
      %v268 = vld [vmem:[%s1 + $0x8] sm:$0xf]
      %v269 = vld [vmem:[%s1 + $0xc] sm:$0xf]
      %v270 = vld [vmem:[%s2] sm:$0x1]
      %v271 = vunpack.c.l.bf16 %v270
      %v272 = vlaneseq
      %v273 = vshrl.u32 %v272, 7
      %v274 = vsub.s32 0, %v273
      %v275 = vrot.slane %v271, %v274
      %v280 = vunpack.c.l.b16 %v266
      %v281 = vunpack.c.l.b16 %v267
      %v282 = vunpack.c.l.b16 %v268
      %v283 = vunpack.c.l.b16 %v269
      %v284 = vpack.c.b16 %v281, %v280
      %v285 = vpack.c.b16 %v283, %v282
      %vm288 = vcmask 261120
      %v290 = vsel %vm288, %v265, 0
      %292 = vmatprep.subr.bf16.mxu0 0
      %293 = vmatpush1.bf16.msra.mxu0 %v284
      %294 = vmatprep.subr.bf16.mxu0 0
      %295 = vmatpush1.bf16.msra.mxu0 %v285
      %296 = vmatprep.subr.bf16.mxu0 0
      %297 = vmatpush1.bf16.msra.mxu0 0
      %298 = vmatprep.subr.bf16.mxu0 0
      %299 = vmatpush1.bf16.msra.mxu0 0
      %300 = vmatprep.subr.bf16.mxu0 0
      %301 = vmatpush1.bf16.msra.mxu0 0
      %302 = vmatprep.subr.bf16.mxu0 0
      %303 = vmatpush1.bf16.msra.mxu0 0
      %304 = vmatprep.subr.bf16.mxu0 0
      %305 = vmatpush1.bf16.msra.mxu0 0
      %306 = vmatprep.subr.bf16.mxu0 0
      %307 = vmatpush1.bf16.msra.mxu0 0
      %308 = vmatprep.subr.bf16.mxu0 0
      %309 = vmatpush1.bf16.msra.mxu0 0
      %310 = vmatprep.subr.bf16.mxu0 0
      %311 = vmatpush1.bf16.msra.mxu0 0
      %312 = vmatprep.subr.bf16.mxu0 0
      %313 = vmatpush1.bf16.msra.mxu0 0
      %314 = vmatprep.subr.bf16.mxu0 0
      %315 = vmatpush1.bf16.msra.mxu0 0
      %316 = vmatprep.subr.bf16.mxu0 0
      %317 = vmatpush1.bf16.msra.mxu0 0
      %318 = vmatprep.subr.bf16.mxu0 0
      %319 = vmatpush1.bf16.msra.mxu0 0
      %320 = vmatprep.subr.bf16.mxu0 0
      %321 = vmatpush1.bf16.msra.mxu0 0
      %322 = vmatprep.subr.bf16.mxu0 0
      %323 = vmatpush1.bf16.msra.mxu0 0
      %324 = vmatprep.mubr.bf16.mxu0 0
      %325 = vmatmul.mubr.bf16.gmra.mrb[0].mxu0 %v290
      %v326 = vpop.f32.mrb[0].mxu0
      %v327 = vadd.f32 %v275, %v326
      %v328 = vpop.f32.mrb[0].mxu0
      %v329 = vpop.f32.mrb[0].mxu0
      %v330 = vpop.f32.mrb[0].mxu0
      %331 = vdwg.mxu0
      %v332 = vld [vmem:[%s259] sm:$0xf]
      %v333 = vunpack.c.l.bf16 %v332
      %v334 = vadd.f32 %v327, %v333
      %v335 = vsel %vm288, %v334, 0.0
      %336 = vadd.xlane.f32.xlu0 %v335
      %v337 = vpop.xlane.xlu0 %336
      %v338 = vrcp.pop 32.0
      %v339 = vmul.f32 %v337, %v338
      %v340 = vsub.f32 %v334, %v339
      %v341 = vmul.f32 %v340, %v340
      %v342 = vsel %vm288, %v341, 0.0
      %343 = vadd.xlane.f32.xlu0 %v342
      %v344 = vpop.xlane.xlu0 %343
      %v345 = vmul.f32 %v344, %v338
      %v346 = vadd.f32 %v345, 1e-06
      %v347 = vrsqrt.pop %v346
      %v348 = vmul.f32 %v340, %v347
      %v349 = vld [vmem:[%s4] sm:$0x1]
      %v350 = vunpack.c.l.bf16 %v349
      %v351 = vlaneseq
      %v352 = vshrl.u32 %v351, 7
      %v353 = vsub.s32 0, %v352
      %v354 = vrot.slane %v350, %v353
      %v355 = vmul.f32 %v348, %v354
      %v356 = vld [vmem:[%s5] sm:$0x1]
      %v357 = vunpack.c.l.bf16 %v356
      %v358 = vlaneseq
      %v359 = vshrl.u32 %v358, 7
      %v360 = vsub.s32 0, %v359
      %v361 = vrot.slane %v357, %v360
      %v362 = vadd.f32 %v355, %v361
      %v363 = vpack.c.bf16 %v362, %v362
      %vm364 = vcmask 257024
      %365 = vst.msk [vmem:[%s263] sm:$0xf] %vm364, %v363
      %p366 = scmp.lt.s32.totalorder %s17, 1
      %s367 = scalar_select %p366, %s17, 1
      %s368 = smul.addr %s367, 4
      %s369 = scalar_lea.vmem %s6, %s368
      // Predicated region
      $region45: #{transformer_encoder_forward.11} parent=43 // pred_check
        %p370 = pneg %p171
      $region46: #{transformer_encoder_forward.11} parent=43 // pred_check_branch
        %372 = sbr.rel (%p370) target = $region48
      $region47: #{transformer_encoder_forward.11} parent=43 // pred_region
        _
      $region48: #{transformer_encoder_forward.11} parent=43 // pred_fallthru
        _
    $region44: #{transformer_encoder_forward.11} parent=5 // pred_fallthru
      _
    %p373 = scmp.le.s32.totalorder 2, %s12
    // Predicated region
    $region49: #{transformer_encoder_forward.11} parent=5 // pred_check
      %p374 = pneg %p373
    $region50: #{transformer_encoder_forward.11} parent=5 // pred_check_branch
      %376 = sbr.rel (%p374) target = $region52
    $region51: #{transformer_encoder_forward.11} parent=5 // pred_region
      %s377 = ssub.s32 %s12, 2
      // Predicated region
      $region53: #{transformer_encoder_forward.11} parent=51 // pred_check
        %p378 = pneg %p177
      $region54: #{transformer_encoder_forward.11} parent=51 // pred_check_branch
        %380 = sbr.rel (%p378) target = $region56
      $region55: #{transformer_encoder_forward.11} parent=51 // pred_region
        %p381 = scmp.lt.s32.totalorder %s18, 1
        %s382 = scalar_select %p381, %s18, 1
        %s383 = smul.addr %s382, 4
        %s384 = scalar_lea.vmem %s6, %s383
      $region56: #{transformer_encoder_forward.11} parent=51 // pred_fallthru
        _
    $region52: #{transformer_encoder_forward.11} parent=5 // pred_fallthru
      _
  $region6: #{transformer_encoder_forward.11} parent=0 // loop_footer
    %s16 = sadd.s32 1, %s12
  $region7: #{transformer_encoder_forward.11} parent=0 // loop_footer_branch
    %11 = sbr.rel target = $region3
  $region8: #{transformer_encoder_forward.11} parent=0 // loop_exit
    _

// kernel: transformer_encoder_forward.10
$region0: #{transformer_encoder_forward.10}
  #allocation0 [shape = 'u32[]', space=smem, size = 0x4, offset = 0x4, fixed_abs, tag = 'smem constant byte address 0x4 - core index']
  #allocation1 [shape = 'u32[144,128]{1,0:T(1,128)}', space=vmem, size = 0x12000, scoped, tag = 'internal scratch']
  %s0 = inlined_call_operand.vmem [shape: bf16[2,8,32], index: 0, kind: input, shape index: {}]
  %s1 = inlined_call_operand.vmem [shape: bf16[2,8,32], index: 1, kind: input, shape index: {}]
  %s2 = inlined_call_operand.vmem [shape: bf16[2,8,32], index: 2, kind: input, shape index: {}]
  %s3 = inlined_call_operand.vmem [shape: bf16[2,8,32], index: 3, kind: output, shape index: {0}]
  %s4 = inlined_call_operand.hbm [shape: bf16[2,8,8], index: 4, kind: output, shape index: {1}]
  %5 = xla_tuple %s3, %s4
  %s6 = sld [smem:[#allocation0]]
  $region53: #{transformer_encoder_forward.10} parent=0
    _
  %s8 = ssub.s32 1, %s6
  %s9 = scalar_select 0, %s8, %s6
  $region1: #{transformer_encoder_forward.10} parent=0
    #allocation2 [shape = 'u8[4096]{0}', space=vmem, size = 0x1000, scoped, tag = 'output window, operand 1']
    #allocation3 [shape = 's32[2]{0}', space=sflag, size = 0x8, scoped, tag = 'scoped memory for transformer_encoder_forward.10']
    %10 = vsyncpa [#allocation3], 0
    %s11 = scalar_lea.sflag [#allocation3], 1
    %12 = vsyncpa %s11, 0
    loop: start=0, step=1, limit=4
    $region2: #{transformer_encoder_forward.10} parent=1 // loop_pre_header
      _
    $region3: #{transformer_encoder_forward.10} parent=1 // loop_header
      %s14 = sphi 0, %s18
      %p15 = scmp.ge.s32.totalorder %s14, 4
      %s24 = sphi 0, %s26
      %s27 = sphi 0, %s24
      %s28 = sphi 0, %s27
      %s44 = sphi 0, %s28
      %s50 = sphi 0, %s52
      %s53 = sphi 0, %s50
      %s54 = sphi 0, %s53
      %s70 = sphi 0, %s54
      %s76 = sphi 0, %s78
      %s79 = sphi 0, %s76
      %s80 = sphi 0, %s79
      %s96 = sphi 0, %s80
      %s102 = sphi 0, %s104
      %s105 = sphi 0, %s102
      %s106 = sphi 0, %s105
      %s122 = sphi 0, %s106
      %s128 = sphi 0, %s130
      %s131 = sphi 0, %s128
      %s132 = sphi 0, %s131
      %s148 = sphi 0, %s132
    $region4: #{transformer_encoder_forward.10} parent=1 // loop_header_branch
      %17 = sbr.rel (%p15) target = $region8
    $region5: #{transformer_encoder_forward.10} parent=1 // loop_body
      %s19 = ssub.s32 %s14, 1
      %s20 = ssub.s32 %s14, 2
      %s21 = sadd.s32 %s14, 1
      %s22 = ssub.s32 %s14, %s21
      %p23 = scmp.eq.s32.totalorder %s22, 0
      %s25 = sadd.s32 %s24, 1
      %s26 = scalar_select %p23, %s24, %s25
      %p29 = pneg %p23
      %p30 = scmp.eq.s32.totalorder %s14, 1
      %p31 = por %p29, %p30
      %p32 = scmp.ne.s32.totalorder %s24, %s27
      %p33 = scmp.eq.s32.totalorder %s14, 0
      %p34 = por %p32, %p33
      %p35 = scmp.ne.s32.totalorder %s24, %s27
      %p36 = scmp.eq.s32.totalorder %s19, 1
      %p37 = por %p35, %p36
      %p38 = scmp.ne.s32.totalorder %s27, %s28
      %p39 = scmp.eq.s32.totalorder %s19, 0
      %p40 = por %p38, %p39
      %p41 = scmp.ne.s32.totalorder %s27, %s28
      %p42 = scmp.eq.s32.totalorder %s20, 1
      %p43 = por %p41, %p42
      %p45 = scmp.ne.s32.totalorder %s28, %s44
      %p46 = scmp.eq.s32.totalorder %s20, 0
      %p47 = por %p45, %p46
      %s48 = ssub.s32 %s14, %s21
      %p49 = scmp.eq.s32.totalorder %s48, 0
      %s51 = sadd.s32 %s50, 1
      %s52 = scalar_select %p49, %s50, %s51
      %p55 = pneg %p49
      %p56 = scmp.eq.s32.totalorder %s14, 1
      %p57 = por %p55, %p56
      %p58 = scmp.ne.s32.totalorder %s50, %s53
      %p59 = scmp.eq.s32.totalorder %s14, 0
      %p60 = por %p58, %p59
      %p61 = scmp.ne.s32.totalorder %s50, %s53
      %p62 = scmp.eq.s32.totalorder %s19, 1
      %p63 = por %p61, %p62
      %p64 = scmp.ne.s32.totalorder %s53, %s54
      %p65 = scmp.eq.s32.totalorder %s19, 0
      %p66 = por %p64, %p65
      %p67 = scmp.ne.s32.totalorder %s53, %s54
      %p68 = scmp.eq.s32.totalorder %s20, 1
      %p69 = por %p67, %p68
      %p71 = scmp.ne.s32.totalorder %s54, %s70
      %p72 = scmp.eq.s32.totalorder %s20, 0
      %p73 = por %p71, %p72
      %s74 = ssub.s32 %s14, %s21
      %p75 = scmp.eq.s32.totalorder %s74, 0
      %s77 = sadd.s32 %s76, 1
      %s78 = scalar_select %p75, %s76, %s77
      %p81 = pneg %p75
      %p82 = scmp.eq.s32.totalorder %s14, 1
      %p83 = por %p81, %p82
      %p84 = scmp.ne.s32.totalorder %s76, %s79
      %p85 = scmp.eq.s32.totalorder %s14, 0
      %p86 = por %p84, %p85
      %p87 = scmp.ne.s32.totalorder %s76, %s79
      %p88 = scmp.eq.s32.totalorder %s19, 1
      %p89 = por %p87, %p88
      %p90 = scmp.ne.s32.totalorder %s79, %s80
      %p91 = scmp.eq.s32.totalorder %s19, 0
      %p92 = por %p90, %p91
      %p93 = scmp.ne.s32.totalorder %s79, %s80
      %p94 = scmp.eq.s32.totalorder %s20, 1
      %p95 = por %p93, %p94
      %p97 = scmp.ne.s32.totalorder %s80, %s96
      %p98 = scmp.eq.s32.totalorder %s20, 0
      %p99 = por %p97, %p98
      %s100 = ssub.s32 %s14, %s21
      %p101 = scmp.eq.s32.totalorder %s100, 0
      %s103 = sadd.s32 %s102, 1
      %s104 = scalar_select %p101, %s102, %s103
      %p107 = pneg %p101
      %p108 = scmp.eq.s32.totalorder %s14, 1
      %p109 = por %p107, %p108
      %p110 = scmp.ne.s32.totalorder %s102, %s105
      %p111 = scmp.eq.s32.totalorder %s14, 0
      %p112 = por %p110, %p111
      %p113 = scmp.ne.s32.totalorder %s102, %s105
      %p114 = scmp.eq.s32.totalorder %s19, 1
      %p115 = por %p113, %p114
      %p116 = scmp.ne.s32.totalorder %s105, %s106
      %p117 = scmp.eq.s32.totalorder %s19, 0
      %p118 = por %p116, %p117
      %p119 = scmp.ne.s32.totalorder %s105, %s106
      %p120 = scmp.eq.s32.totalorder %s20, 1
      %p121 = por %p119, %p120
      %p123 = scmp.ne.s32.totalorder %s106, %s122
      %p124 = scmp.eq.s32.totalorder %s20, 0
      %p125 = por %p123, %p124
      %s126 = ssub.s32 %s14, %s21
      %p127 = scmp.eq.s32.totalorder %s126, 0
      %s129 = sadd.s32 %s128, 1
      %s130 = scalar_select %p127, %s128, %s129
      %p133 = pneg %p127
      %p134 = scmp.eq.s32.totalorder %s14, 1
      %p135 = por %p133, %p134
      %p136 = scmp.ne.s32.totalorder %s128, %s131
      %p137 = scmp.eq.s32.totalorder %s14, 0
      %p138 = por %p136, %p137
      %p139 = scmp.ne.s32.totalorder %s128, %s131
      %p140 = scmp.eq.s32.totalorder %s19, 1
      %p141 = por %p139, %p140
      %p142 = scmp.ne.s32.totalorder %s131, %s132
      %p143 = scmp.eq.s32.totalorder %s19, 0
      %p144 = por %p142, %p143
      %p145 = scmp.ne.s32.totalorder %s131, %s132
      %p146 = scmp.eq.s32.totalorder %s20, 1
      %p147 = por %p145, %p146
      %p149 = scmp.ne.s32.totalorder %s132, %s148
      %p150 = scmp.eq.s32.totalorder %s20, 0
      %p151 = por %p149, %p150
      %p152 = scmp.le.s32.totalorder 1, %s14
      %p153 = scmp.lt.s32.totalorder %s14, 3
      %p154 = pnand %p152, %p153
      %p155 = pneg %p154
      // Predicated region
      $region9: #{transformer_encoder_forward.10} parent=5 // pred_check
        _
      $region10: #{transformer_encoder_forward.10} parent=5 // pred_check_branch
        %157 = sbr.rel (%p154) target = $region12
      $region11: #{transformer_encoder_forward.10} parent=5 // pred_region
        %s158 = ssub.s32 %s14, 1
      $region12: #{transformer_encoder_forward.10} parent=5 // pred_fallthru
        _
      %p159 = scmp.lt.s32.totalorder %s14, 2
      // Predicated region
      $region13: #{transformer_encoder_forward.10} parent=5 // pred_check
        %p160 = pneg %p159
      $region14: #{transformer_encoder_forward.10} parent=5 // pred_check_branch
        %162 = sbr.rel (%p160) target = $region16
      $region15: #{transformer_encoder_forward.10} parent=5 // pred_region
        // Predicated region
        $region17: #{transformer_encoder_forward.10} parent=15 // pred_check
          %p163 = pneg %p34
        $region18: #{transformer_encoder_forward.10} parent=15 // pred_check_branch
          %165 = sbr.rel (%p163) target = $region20
        $region19: #{transformer_encoder_forward.10} parent=15 // pred_region
          %p166 = scmp.lt.s32.totalorder %s14, 1
          %s167 = scalar_select %p166, %s14, 1
          %s168 = smul.addr %s167, 4
          %s169 = scalar_lea.vmem %s0, %s168
        $region20: #{transformer_encoder_forward.10} parent=15 // pred_fallthru
          _
        // Predicated region
        $region21: #{transformer_encoder_forward.10} parent=15 // pred_check
          %p170 = pneg %p60
        $region22: #{transformer_encoder_forward.10} parent=15 // pred_check_branch
          %172 = sbr.rel (%p170) target = $region24
        $region23: #{transformer_encoder_forward.10} parent=15 // pred_region
          %p173 = scmp.lt.s32.totalorder %s14, 1
          %s174 = scalar_select %p173, %s14, 1
          %s175 = smul.addr %s174, 4
          %s176 = scalar_lea.vmem %s1, %s175
        $region24: #{transformer_encoder_forward.10} parent=15 // pred_fallthru
          _
        // Predicated region
        $region25: #{transformer_encoder_forward.10} parent=15 // pred_check
          %p177 = pneg %p86
        $region26: #{transformer_encoder_forward.10} parent=15 // pred_check_branch
          %179 = sbr.rel (%p177) target = $region28
        $region27: #{transformer_encoder_forward.10} parent=15 // pred_region
          %p180 = scmp.lt.s32.totalorder %s14, 1
          %s181 = scalar_select %p180, %s14, 1
          %s182 = smul.addr %s181, 4
          %s183 = scalar_lea.vmem %s2, %s182
        $region28: #{transformer_encoder_forward.10} parent=15 // pred_fallthru
          _
      $region16: #{transformer_encoder_forward.10} parent=5 // pred_fallthru
        _
      %p184 = scmp.le.s32.totalorder 1, %s14
      %p185 = scmp.lt.s32.totalorder %s14, 3
      %p186 = pnand %p184, %p185
      %p187 = pneg %p186
      // Predicated region
      $region29: #{transformer_encoder_forward.10} parent=5 // pred_check
        _
      $region30: #{transformer_encoder_forward.10} parent=5 // pred_check_branch
        %189 = sbr.rel (%p186) target = $region32
      $region31: #{transformer_encoder_forward.10} parent=5 // pred_region
        %s190 = ssub.s32 %s14, 1
        %p191 = scmp.lt.s32.totalorder %s19, 1
        %s192 = scalar_select %p191, %s19, 1
        %s193 = smul.addr %s192, 4
        %s194 = scalar_lea.vmem %s0, %s193
        %p195 = pneg %p40
        %p196 = pneg %p37
        %p197 = scmp.lt.s32.totalorder %s19, 1
        %s198 = scalar_select %p197, %s19, 1
        %s199 = smul.addr %s198, 4
        %s200 = scalar_lea.vmem %s1, %s199
        %p201 = pneg %p66
        %p202 = pneg %p63
        %p203 = scmp.lt.s32.totalorder %s19, 1
        %s204 = scalar_select %p203, %s19, 1
        %s205 = smul.addr %s204, 4
        %s206 = scalar_lea.vmem %s2, %s205
        %p207 = pneg %p92
        %p208 = pneg %p89
        %p209 = pneg %p118
        %p210 = pneg %p115
        %p211 = scmp.lt.s32.totalorder %s19, 1
        %s212 = scalar_select %p211, %s19, 1
        %s213 = smul.addr %s212, 4
        %s214 = scalar_lea.vmem %s3, %s213
        %p215 = pneg %p144
        %p216 = pneg %p141
        %s217 = sand.u32 %s131, 1
        %s218 = scalar_lea.sflag [#allocation3], %s217
        %s219 = sand.u32 %s131, 1
        %s220 = smul.addr %s219, 4
        %s221 = scalar_lea.vmem [#allocation2], %s220
        %p222 = scmp.lt.s32.totalorder %s19, 1
        %s223 = scalar_select %p222, %s19, 1
        %s224 = smul.addr %s223, 4
        %s225 = scalar_lea.vmem %s0, %s224
        %p226 = scmp.lt.s32.totalorder %s19, 1
        %s227 = scalar_select %p226, %s19, 1
        %s228 = smul.addr %s227, 4
        %s229 = scalar_lea.vmem %s1, %s228
        %p230 = scmp.lt.s32.totalorder %s19, 1
        %s231 = scalar_select %p230, %s19, 1
        %s232 = smul.addr %s231, 4
        %s233 = scalar_lea.vmem %s2, %s232
        %p234 = scmp.lt.s32.totalorder %s19, 1
        %s235 = scalar_select %p234, %s19, 1
        %s236 = smul.addr %s235, 4
        %s237 = scalar_lea.vmem %s3, %s236
        %v239 = vld [vmem:[%s225] sm:$0xf]
        %v240 = vld [vmem:[%s229] sm:$0xf]
        %v241 = vld [vmem:[%s233] sm:$0xf]
        %vm242 = vcmask 64512
        %v244 = vsel %vm242, %v239, 0
        %v247 = vsel %vm242, %v240, 0
        %249 = vmatprep.subr.bf16.mxu0 0
        %250 = vmatpush1.bf16.xpose.msra.mxu0 %v247
        %251 = vmatprep.subr.bf16.mxu0 0
        %252 = vmatpush1.bf16.xpose.msra.mxu0 0
        %253 = vmatprep.subr.bf16.mxu0 0
        %254 = vmatpush1.bf16.xpose.msra.mxu0 0
        %255 = vmatprep.subr.bf16.mxu0 0
        %256 = vmatpush1.bf16.xpose.msra.mxu0 0
        %257 = vmatprep.subr.bf16.mxu0 0
        %258 = vmatpush1.bf16.xpose.msra.mxu0 0
        %259 = vmatprep.subr.bf16.mxu0 0
        %260 = vmatpush1.bf16.xpose.msra.mxu0 0
        %261 = vmatprep.subr.bf16.mxu0 0
        %262 = vmatpush1.bf16.xpose.msra.mxu0 0
        %263 = vmatprep.subr.bf16.mxu0 0
        %264 = vmatpush1.bf16.xpose.msra.mxu0 0
        %265 = vmatprep.subr.bf16.mxu0 0
        %266 = vmatpush1.bf16.xpose.msra.mxu0 0
        %267 = vmatprep.subr.bf16.mxu0 0
        %268 = vmatpush1.bf16.xpose.msra.mxu0 0
        %269 = vmatprep.subr.bf16.mxu0 0
        %270 = vmatpush1.bf16.xpose.msra.mxu0 0
        %271 = vmatprep.subr.bf16.mxu0 0
        %272 = vmatpush1.bf16.xpose.msra.mxu0 0
        %273 = vmatprep.subr.bf16.mxu0 0
        %274 = vmatpush1.bf16.xpose.msra.mxu0 0
        %275 = vmatprep.subr.bf16.mxu0 0
        %276 = vmatpush1.bf16.xpose.msra.mxu0 0
        %277 = vmatprep.subr.bf16.mxu0 0
        %278 = vmatpush1.bf16.xpose.msra.mxu0 0
        %279 = vmatprep.subr.bf16.mxu0 0
        %280 = vmatpush1.bf16.xpose.msra.mxu0 0
        %281 = vmatprep.mubr.bf16.mxu0 0
        %282 = vmatmul.mubr.bf16.gmra.mrb[0].mxu0 %v244
        %v283 = vpop.f32.mrb[0].mxu0
        %v284 = vadd.f32 0.0, %v283
        %v285 = vpop.f32.mrb[0].mxu0
        %v286 = vpop.f32.mrb[0].mxu0
        %v287 = vpop.f32.mrb[0].mxu0
        %288 = vdwg.mxu0
        %v289 = vsel %vm242, %v284, -inf
        %290 = vmax.xlane.f32.xlu0 %v289
        %v291 = vpop.xlane.xlu0 %290
        %v292 = vsub.f32 %v284, %v291
        %v293 = vmul.f32 %v292, 1.442695
        %v294 = vpow.pop %v293
        %v295 = vsel %vm242, %v294, 0.0
        %296 = vadd.xlane.f32.xlu0 %v295
        %v297 = vpop.xlane.xlu0 %296
        %v298 = vrcp.pop %v297
        %v299 = vmul.f32 %v294, %v298
        %v300 = vpack.c.bf16 %v299, %v299
        %v302 = vsel %vm242, %v300, 0
        %vm304 = vcmask 1043456
        %v306 = vsel %vm304, %v241, 0
        %308 = vmatprep.subr.bf16.mxu0 0
        %309 = vmatpush1.bf16.msra.mxu0 %v306
        %310 = vmatprep.subr.bf16.mxu0 0
        %311 = vmatpush1.bf16.msra.mxu0 0
        %312 = vmatprep.subr.bf16.mxu0 0
        %313 = vmatpush1.bf16.msra.mxu0 0
        %314 = vmatprep.subr.bf16.mxu0 0
        %315 = vmatpush1.bf16.msra.mxu0 0
        %316 = vmatprep.subr.bf16.mxu0 0
        %317 = vmatpush1.bf16.msra.mxu0 0
        %318 = vmatprep.subr.bf16.mxu0 0
        %319 = vmatpush1.bf16.msra.mxu0 0
        %320 = vmatprep.subr.bf16.mxu0 0
        %321 = vmatpush1.bf16.msra.mxu0 0
        %322 = vmatprep.subr.bf16.mxu0 0
        %323 = vmatpush1.bf16.msra.mxu0 0
        %324 = vmatprep.subr.bf16.mxu0 0
        %325 = vmatpush1.bf16.msra.mxu0 0
        %326 = vmatprep.subr.bf16.mxu0 0
        %327 = vmatpush1.bf16.msra.mxu0 0
        %328 = vmatprep.subr.bf16.mxu0 0
        %329 = vmatpush1.bf16.msra.mxu0 0
        %330 = vmatprep.subr.bf16.mxu0 0
        %331 = vmatpush1.bf16.msra.mxu0 0
        %332 = vmatprep.subr.bf16.mxu0 0
        %333 = vmatpush1.bf16.msra.mxu0 0
        %334 = vmatprep.subr.bf16.mxu0 0
        %335 = vmatpush1.bf16.msra.mxu0 0
        %336 = vmatprep.subr.bf16.mxu0 0
        %337 = vmatpush1.bf16.msra.mxu0 0
        %338 = vmatprep.subr.bf16.mxu0 0
        %339 = vmatpush1.bf16.msra.mxu0 0
        %340 = vmatprep.mubr.bf16.mxu0 0
        %341 = vmatmul.mubr.bf16.gmra.mrb[0].mxu0 %v302
        %v342 = vpop.f32.mrb[0].mxu0
        %v343 = vadd.f32 0.0, %v342
        %v344 = vpop.f32.mrb[0].mxu0
        %v345 = vpop.f32.mrb[0].mxu0
        %v346 = vpop.f32.mrb[0].mxu0
        %347 = vdwg.mxu0
        %v348 = vadd.f32 %v299, 0.0
        %v350 = vunpack.c.l.b16 %v239
        %v351 = vpack.c.b16 %v350, %v350
        %352 = vrot.lane.b32.xlu0 %v351, 120
        %v353 = vpop.permute.xlu0 %352
        %v355 = vunpack.c.l.b16 %v240
        %v356 = vpack.c.b16 %v355, %v355
        %357 = vrot.lane.b32.xlu0 %v356, 120
        %v358 = vpop.permute.xlu0 %357
        %v360 = vsel %vm242, %v353, 0
        %v363 = vsel %vm242, %v358, 0
        %365 = vmatprep.subr.bf16.mxu0 0
        %366 = vmatpush1.bf16.xpose.msra.mxu0 %v363
        %367 = vmatprep.subr.bf16.mxu0 0
        %368 = vmatpush1.bf16.xpose.msra.mxu0 0
        %369 = vmatprep.subr.bf16.mxu0 0
        %370 = vmatpush1.bf16.xpose.msra.mxu0 0
        %371 = vmatprep.subr.bf16.mxu0 0
        %372 = vmatpush1.bf16.xpose.msra.mxu0 0
        %373 = vmatprep.subr.bf16.mxu0 0
        %374 = vmatpush1.bf16.xpose.msra.mxu0 0
        %375 = vmatprep.subr.bf16.mxu0 0
        %376 = vmatpush1.bf16.xpose.msra.mxu0 0
        %377 = vmatprep.subr.bf16.mxu0 0
        %378 = vmatpush1.bf16.xpose.msra.mxu0 0
        %379 = vmatprep.subr.bf16.mxu0 0
        %380 = vmatpush1.bf16.xpose.msra.mxu0 0
        %381 = vmatprep.subr.bf16.mxu0 0
        %382 = vmatpush1.bf16.xpose.msra.mxu0 0
        %383 = vmatprep.subr.bf16.mxu0 0
        %384 = vmatpush1.bf16.xpose.msra.mxu0 0
        %385 = vmatprep.subr.bf16.mxu0 0
        %386 = vmatpush1.bf16.xpose.msra.mxu0 0
        %387 = vmatprep.subr.bf16.mxu0 0
        %388 = vmatpush1.bf16.xpose.msra.mxu0 0
        %389 = vmatprep.subr.bf16.mxu0 0
        %390 = vmatpush1.bf16.xpose.msra.mxu0 0
        %391 = vmatprep.subr.bf16.mxu0 0
        %392 = vmatpush1.bf16.xpose.msra.mxu0 0
        %393 = vmatprep.subr.bf16.mxu0 0
        %394 = vmatpush1.bf16.xpose.msra.mxu0 0
        %395 = vmatprep.subr.bf16.mxu0 0
        %396 = vmatpush1.bf16.xpose.msra.mxu0 0
        %397 = vmatprep.mubr.bf16.mxu0 0
        %398 = vmatmul.mubr.bf16.gmra.mrb[0].mxu0 %v360
        %v399 = vpop.f32.mrb[0].mxu0
        %v400 = vadd.f32 0.0, %v399
        %v401 = vpop.f32.mrb[0].mxu0
        %v402 = vpop.f32.mrb[0].mxu0
        %v403 = vpop.f32.mrb[0].mxu0
        %404 = vdwg.mxu0
        %v405 = vsel %vm242, %v400, -inf
        %406 = vmax.xlane.f32.xlu0 %v405
        %v407 = vpop.xlane.xlu0 %406
        %v408 = vsub.f32 %v400, %v407
        %v409 = vmul.f32 %v408, 1.442695
        %v410 = vpow.pop %v409
        %v411 = vsel %vm242, %v410, 0.0
        %412 = vadd.xlane.f32.xlu0 %v411
        %v413 = vpop.xlane.xlu0 %412
        %v414 = vrcp.pop %v413
        %v415 = vmul.f32 %v410, %v414
        %v416 = vpack.c.bf16 %v415, %v415
        %v418 = vunpack.c.l.b16 %v241
        %v419 = vpack.c.b16 %v418, %v418
        %420 = vrot.lane.b32.xlu0 %v419, 120
        %v421 = vpop.permute.xlu0 %420
        %v423 = vsel %vm242, %v416, 0
        %v426 = vsel %vm304, %v421, 0
        %428 = vmatprep.subr.bf16.mxu0 0
        %429 = vmatpush1.bf16.msra.mxu0 %v426
        %430 = vmatprep.subr.bf16.mxu0 0
        %431 = vmatpush1.bf16.msra.mxu0 0
        %432 = vmatprep.subr.bf16.mxu0 0
        %433 = vmatpush1.bf16.msra.mxu0 0
        %434 = vmatprep.subr.bf16.mxu0 0
        %435 = vmatpush1.bf16.msra.mxu0 0
        %436 = vmatprep.subr.bf16.mxu0 0
        %437 = vmatpush1.bf16.msra.mxu0 0
        %438 = vmatprep.subr.bf16.mxu0 0
        %439 = vmatpush1.bf16.msra.mxu0 0
        %440 = vmatprep.subr.bf16.mxu0 0
        %441 = vmatpush1.bf16.msra.mxu0 0
        %442 = vmatprep.subr.bf16.mxu0 0
        %443 = vmatpush1.bf16.msra.mxu0 0
        %444 = vmatprep.subr.bf16.mxu0 0
        %445 = vmatpush1.bf16.msra.mxu0 0
        %446 = vmatprep.subr.bf16.mxu0 0
        %447 = vmatpush1.bf16.msra.mxu0 0
        %448 = vmatprep.subr.bf16.mxu0 0
        %449 = vmatpush1.bf16.msra.mxu0 0
        %450 = vmatprep.subr.bf16.mxu0 0
        %451 = vmatpush1.bf16.msra.mxu0 0
        %452 = vmatprep.subr.bf16.mxu0 0
        %453 = vmatpush1.bf16.msra.mxu0 0
        %454 = vmatprep.subr.bf16.mxu0 0
        %455 = vmatpush1.bf16.msra.mxu0 0
        %456 = vmatprep.subr.bf16.mxu0 0
        %457 = vmatpush1.bf16.msra.mxu0 0
        %458 = vmatprep.subr.bf16.mxu0 0
        %459 = vmatpush1.bf16.msra.mxu0 0
        %460 = vmatprep.mubr.bf16.mxu0 0
        %461 = vmatmul.mubr.bf16.gmra.mrb[0].mxu0 %v423
        %v462 = vpop.f32.mrb[0].mxu0
        %v463 = vadd.f32 0.0, %v462
        %v464 = vpop.f32.mrb[0].mxu0
        %v465 = vpop.f32.mrb[0].mxu0
        %v466 = vpop.f32.mrb[0].mxu0
        %467 = vdwg.mxu0
        %v468 = vadd.f32 %v348, %v415
        %469 = vrot.lane.b32.xlu0 %v351, 112
        %v470 = vpop.permute.xlu0 %469
        %471 = vrot.lane.b32.xlu0 %v356, 112
        %v472 = vpop.permute.xlu0 %471
        %v474 = vsel %vm242, %v470, 0
        %v477 = vsel %vm242, %v472, 0
        %479 = vmatprep.subr.bf16.mxu0 0
        %480 = vmatpush1.bf16.xpose.msra.mxu0 %v477
        %481 = vmatprep.subr.bf16.mxu0 0
        %482 = vmatpush1.bf16.xpose.msra.mxu0 0
        %483 = vmatprep.subr.bf16.mxu0 0
        %484 = vmatpush1.bf16.xpose.msra.mxu0 0
        %485 = vmatprep.subr.bf16.mxu0 0
        %486 = vmatpush1.bf16.xpose.msra.mxu0 0
        %487 = vmatprep.subr.bf16.mxu0 0
        %488 = vmatpush1.bf16.xpose.msra.mxu0 0
        %489 = vmatprep.subr.bf16.mxu0 0
        %490 = vmatpush1.bf16.xpose.msra.mxu0 0
        %491 = vmatprep.subr.bf16.mxu0 0
        %492 = vmatpush1.bf16.xpose.msra.mxu0 0
        %493 = vmatprep.subr.bf16.mxu0 0
        %494 = vmatpush1.bf16.xpose.msra.mxu0 0
        %495 = vmatprep.subr.bf16.mxu0 0
        %496 = vmatpush1.bf16.xpose.msra.mxu0 0
        %497 = vmatprep.subr.bf16.mxu0 0
        %498 = vmatpush1.bf16.xpose.msra.mxu0 0
        %499 = vmatprep.subr.bf16.mxu0 0
        %500 = vmatpush1.bf16.xpose.msra.mxu0 0
        %501 = vmatprep.subr.bf16.mxu0 0
        %502 = vmatpush1.bf16.xpose.msra.mxu0 0
        %503 = vmatprep.subr.bf16.mxu0 0
        %504 = vmatpush1.bf16.xpose.msra.mxu0 0
        %505 = vmatprep.subr.bf16.mxu0 0
        %506 = vmatpush1.bf16.xpose.msra.mxu0 0
        %507 = vmatprep.subr.bf16.mxu0 0
        %508 = vmatpush1.bf16.xpose.msra.mxu0 0
        %509 = vmatprep.subr.bf16.mxu0 0
        %510 = vmatpush1.bf16.xpose.msra.mxu0 0
        %511 = vmatprep.mubr.bf16.mxu0 0
        %512 = vmatmul.mubr.bf16.gmra.mrb[0].mxu0 %v474
        %v513 = vpop.f32.mrb[0].mxu0
        %v514 = vadd.f32 0.0, %v513
        %v515 = vpop.f32.mrb[0].mxu0
        %v516 = vpop.f32.mrb[0].mxu0
        %v517 = vpop.f32.mrb[0].mxu0
        %518 = vdwg.mxu0
        %v519 = vsel %vm242, %v514, -inf
        %520 = vmax.xlane.f32.xlu0 %v519
        %v521 = vpop.xlane.xlu0 %520
        %v522 = vsub.f32 %v514, %v521
        %v523 = vmul.f32 %v522, 1.442695
        %v524 = vpow.pop %v523
        %v525 = vsel %vm242, %v524, 0.0
        %526 = vadd.xlane.f32.xlu0 %v525
        %v527 = vpop.xlane.xlu0 %526
        %v528 = vrcp.pop %v527
        %v529 = vmul.f32 %v524, %v528
        %v530 = vpack.c.bf16 %v529, %v529
        %531 = vrot.lane.b32.xlu0 %v419, 112
        %v532 = vpop.permute.xlu0 %531
        %v534 = vsel %vm242, %v530, 0
        %v537 = vsel %vm304, %v532, 0
        %539 = vmatprep.subr.bf16.mxu0 0
        %540 = vmatpush1.bf16.msra.mxu0 %v537
        %541 = vmatprep.subr.bf16.mxu0 0
        %542 = vmatpush1.bf16.msra.mxu0 0
        %543 = vmatprep.subr.bf16.mxu0 0
        %544 = vmatpush1.bf16.msra.mxu0 0
        %545 = vmatprep.subr.bf16.mxu0 0
        %546 = vmatpush1.bf16.msra.mxu0 0
        %547 = vmatprep.subr.bf16.mxu0 0
        %548 = vmatpush1.bf16.msra.mxu0 0
        %549 = vmatprep.subr.bf16.mxu0 0
        %550 = vmatpush1.bf16.msra.mxu0 0
        %551 = vmatprep.subr.bf16.mxu0 0
        %552 = vmatpush1.bf16.msra.mxu0 0
        %553 = vmatprep.subr.bf16.mxu0 0
        %554 = vmatpush1.bf16.msra.mxu0 0
        %555 = vmatprep.subr.bf16.mxu0 0
        %556 = vmatpush1.bf16.msra.mxu0 0
        %557 = vmatprep.subr.bf16.mxu0 0
        %558 = vmatpush1.bf16.msra.mxu0 0
        %559 = vmatprep.subr.bf16.mxu0 0
        %560 = vmatpush1.bf16.msra.mxu0 0
        %561 = vmatprep.subr.bf16.mxu0 0
        %562 = vmatpush1.bf16.msra.mxu0 0
        %563 = vmatprep.subr.bf16.mxu0 0
        %564 = vmatpush1.bf16.msra.mxu0 0
        %565 = vmatprep.subr.bf16.mxu0 0
        %566 = vmatpush1.bf16.msra.mxu0 0
        %567 = vmatprep.subr.bf16.mxu0 0
        %568 = vmatpush1.bf16.msra.mxu0 0
        %569 = vmatprep.subr.bf16.mxu0 0
        %570 = vmatpush1.bf16.msra.mxu0 0
        %571 = vmatprep.mubr.bf16.mxu0 0
        %572 = vmatmul.mubr.bf16.gmra.mrb[0].mxu0 %v534
        %v573 = vpop.f32.mrb[0].mxu0
        %v574 = vadd.f32 0.0, %v573
        %v575 = vpop.f32.mrb[0].mxu0
        %v576 = vpop.f32.mrb[0].mxu0
        %v577 = vpop.f32.mrb[0].mxu0
        %578 = vdwg.mxu0
        %v579 = vadd.f32 %v468, %v529
        %580 = vrot.lane.b32.xlu0 %v351, 104
        %v581 = vpop.permute.xlu0 %580
        %582 = vrot.lane.b32.xlu0 %v356, 104
        %v583 = vpop.permute.xlu0 %582
        %v585 = vsel %vm242, %v581, 0
        %v588 = vsel %vm242, %v583, 0
        %590 = vmatprep.subr.bf16.mxu0 0
        %591 = vmatpush1.bf16.xpose.msra.mxu0 %v588
        %592 = vmatprep.subr.bf16.mxu0 0
        %593 = vmatpush1.bf16.xpose.msra.mxu0 0
        %594 = vmatprep.subr.bf16.mxu0 0
        %595 = vmatpush1.bf16.xpose.msra.mxu0 0
        %596 = vmatprep.subr.bf16.mxu0 0
        %597 = vmatpush1.bf16.xpose.msra.mxu0 0
        %598 = vmatprep.subr.bf16.mxu0 0
        %599 = vmatpush1.bf16.xpose.msra.mxu0 0
        %600 = vmatprep.subr.bf16.mxu0 0
        %601 = vmatpush1.bf16.xpose.msra.mxu0 0
        %602 = vmatprep.subr.bf16.mxu0 0
        %603 = vmatpush1.bf16.xpose.msra.mxu0 0
        %604 = vmatprep.subr.bf16.mxu0 0
        %605 = vmatpush1.bf16.xpose.msra.mxu0 0
        %606 = vmatprep.subr.bf16.mxu0 0
        %607 = vmatpush1.bf16.xpose.msra.mxu0 0
        %608 = vmatprep.subr.bf16.mxu0 0
        %609 = vmatpush1.bf16.xpose.msra.mxu0 0
        %610 = vmatprep.subr.bf16.mxu0 0
        %611 = vmatpush1.bf16.xpose.msra.mxu0 0
        %612 = vmatprep.subr.bf16.mxu0 0
        %613 = vmatpush1.bf16.xpose.msra.mxu0 0
        %614 = vmatprep.subr.bf16.mxu0 0
        %615 = vmatpush1.bf16.xpose.msra.mxu0 0
        %616 = vmatprep.subr.bf16.mxu0 0
        %617 = vmatpush1.bf16.xpose.msra.mxu0 0
        %618 = vmatprep.subr.bf16.mxu0 0
        %619 = vmatpush1.bf16.xpose.msra.mxu0 0
        %620 = vmatprep.subr.bf16.mxu0 0
        %621 = vmatpush1.bf16.xpose.msra.mxu0 0
        %622 = vmatprep.mubr.bf16.mxu0 0
        %623 = vmatmul.mubr.bf16.gmra.mrb[0].mxu0 %v585
        %v624 = vpop.f32.mrb[0].mxu0
        %v625 = vadd.f32 0.0, %v624
        %v626 = vpop.f32.mrb[0].mxu0
        %v627 = vpop.f32.mrb[0].mxu0
        %v628 = vpop.f32.mrb[0].mxu0
        %629 = vdwg.mxu0
        %v630 = vsel %vm242, %v625, -inf
        %631 = vmax.xlane.f32.xlu0 %v630
        %v632 = vpop.xlane.xlu0 %631
        %v633 = vsub.f32 %v625, %v632
        %v634 = vmul.f32 %v633, 1.442695
        %v635 = vpow.pop %v634
        %v636 = vsel %vm242, %v635, 0.0
        %637 = vadd.xlane.f32.xlu0 %v636
        %v638 = vpop.xlane.xlu0 %637
        %v639 = vrcp.pop %v638
        %v640 = vmul.f32 %v635, %v639
        %v641 = vpack.c.bf16 %v640, %v640
        %642 = vrot.lane.b32.xlu0 %v419, 104
        %v643 = vpop.permute.xlu0 %642
        %v645 = vsel %vm242, %v641, 0
        %v648 = vsel %vm304, %v643, 0
        %650 = vmatprep.subr.bf16.mxu0 0
        %651 = vmatpush1.bf16.msra.mxu0 %v648
        %652 = vmatprep.subr.bf16.mxu0 0
        %653 = vmatpush1.bf16.msra.mxu0 0
        %654 = vmatprep.subr.bf16.mxu0 0
        %655 = vmatpush1.bf16.msra.mxu0 0
        %656 = vmatprep.subr.bf16.mxu0 0
        %657 = vmatpush1.bf16.msra.mxu0 0
        %658 = vmatprep.subr.bf16.mxu0 0
        %659 = vmatpush1.bf16.msra.mxu0 0
        %660 = vmatprep.subr.bf16.mxu0 0
        %661 = vmatpush1.bf16.msra.mxu0 0
        %662 = vmatprep.subr.bf16.mxu0 0
        %663 = vmatpush1.bf16.msra.mxu0 0
        %664 = vmatprep.subr.bf16.mxu0 0
        %665 = vmatpush1.bf16.msra.mxu0 0
        %666 = vmatprep.subr.bf16.mxu0 0
        %667 = vmatpush1.bf16.msra.mxu0 0
        %668 = vmatprep.subr.bf16.mxu0 0
        %669 = vmatpush1.bf16.msra.mxu0 0
        %670 = vmatprep.subr.bf16.mxu0 0
        %671 = vmatpush1.bf16.msra.mxu0 0
        %672 = vmatprep.subr.bf16.mxu0 0
        %673 = vmatpush1.bf16.msra.mxu0 0
        %674 = vmatprep.subr.bf16.mxu0 0
        %675 = vmatpush1.bf16.msra.mxu0 0
        %676 = vmatprep.subr.bf16.mxu0 0
        %677 = vmatpush1.bf16.msra.mxu0 0
        %678 = vmatprep.subr.bf16.mxu0 0
        %679 = vmatpush1.bf16.msra.mxu0 0
        %680 = vmatprep.subr.bf16.mxu0 0
        %681 = vmatpush1.bf16.msra.mxu0 0
        %682 = vmatprep.mubr.bf16.mxu0 0
        %683 = vmatmul.mubr.bf16.gmra.mrb[0].mxu0 %v645
        %v684 = vpop.f32.mrb[0].mxu0
        %v685 = vadd.f32 0.0, %v684
        %v686 = vpop.f32.mrb[0].mxu0
        %v687 = vpop.f32.mrb[0].mxu0
        %v688 = vpop.f32.mrb[0].mxu0
        %689 = vdwg.mxu0
        %v690 = vadd.f32 %v579, %v640
        %692 = vrot.lane.b32.xlu0 %v463, 8
        %v693 = vpop.permute.xlu0 %692
        %696 = vrot.lane.b32.xlu0 %v574, 16
        %v697 = vpop.permute.xlu0 %696
        %700 = vrot.lane.b32.xlu0 %v685, 24
        %v701 = vpop.permute.xlu0 %700
        %v703 = vsel %vm242, %v343, %v693
        %vm704 = vcmask 130048
        %v705 = vsel %vm704, %v703, %v697
        %vm706 = vcmask 195584
        %v707 = vsel %vm706, %v705, %v701
        %v708 = vpack.c.bf16 %v707, %v707
        %vm709 = vcmask 257024
        %710 = vst.msk [vmem:[%s237] sm:$0xf] %vm709, %v708
        %v711 = vmul.f32 %v690, 0.25
        %v712 = vpack.c.bf16 %v711, %v711
        %vm713 = vcmask 60416
        %714 = vst.msk [vmem:[%s221] sm:$0xf] %vm713, %v712
        %p715 = scmp.lt.s32.totalorder %s19, 1
        %s716 = scalar_select %p715, %s19, 1
        %s717 = smul.addr %s716, 4
        %s718 = scalar_lea.vmem %s3, %s717
        %s719 = sand.u32 %s131, 1
        %s720 = scalar_lea.sflag [#allocation3], %s719
        %s721 = sand.u32 %s131, 1
        %s722 = smul.addr %s721, 4
        %s723 = scalar_lea.vmem [#allocation2], %s722
        // Predicated region
        $region33: #{transformer_encoder_forward.10} parent=31 // pred_check
          %p724 = pneg %p115
        $region34: #{transformer_encoder_forward.10} parent=31 // pred_check_branch
          %726 = sbr.rel (%p724) target = $region36
        $region35: #{transformer_encoder_forward.10} parent=31 // pred_region
          _
        $region36: #{transformer_encoder_forward.10} parent=31 // pred_fallthru
          _
        // Predicated region
        $region37: #{transformer_encoder_forward.10} parent=31 // pred_check
          %p727 = pneg %p141
        $region38: #{transformer_encoder_forward.10} parent=31 // pred_check_branch
          %729 = sbr.rel (%p727) target = $region40
        $region39: #{transformer_encoder_forward.10} parent=31 // pred_region
          %s731 = ssub.s32 64, 64
          %732 = vsyncadd %s720, %s731
          %s733 = smul.addr %s19, 64
          %s734 = scalar_lea.hbm %s4, %s733
          %s736 = sshll.u32 %s723, 4
          %s737 = int_to_ptr.vmem [resolvable:$true] %s736
          %739 = dma.vmem_to_hbm [thread:$0]  %s737, 64, %s734, %s720
        $region40: #{transformer_encoder_forward.10} parent=31 // pred_fallthru
          _
      $region32: #{transformer_encoder_forward.10} parent=5 // pred_fallthru
        _
      %p740 = scmp.le.s32.totalorder 2, %s14
      // Predicated region
      $region41: #{transformer_encoder_forward.10} parent=5 // pred_check
        %p741 = pneg %p740
      $region42: #{transformer_encoder_forward.10} parent=5 // pred_check_branch
        %743 = sbr.rel (%p741) target = $region44
      $region43: #{transformer_encoder_forward.10} parent=5 // pred_region
        %s744 = ssub.s32 %s14, 2
        // Predicated region
        $region45: #{transformer_encoder_forward.10} parent=43 // pred_check
          %p745 = pneg %p121
        $region46: #{transformer_encoder_forward.10} parent=43 // pred_check_branch
          %747 = sbr.rel (%p745) target = $region48
        $region47: #{transformer_encoder_forward.10} parent=43 // pred_region
          %p748 = scmp.lt.s32.totalorder %s20, 1
          %s749 = scalar_select %p748, %s20, 1
          %s750 = smul.addr %s749, 4
          %s751 = scalar_lea.vmem %s3, %s750
        $region48: #{transformer_encoder_forward.10} parent=43 // pred_fallthru
          _
        // Predicated region
        $region49: #{transformer_encoder_forward.10} parent=43 // pred_check
          %p752 = pneg %p147
        $region50: #{transformer_encoder_forward.10} parent=43 // pred_check_branch
          %754 = sbr.rel (%p752) target = $region52
        $region51: #{transformer_encoder_forward.10} parent=43 // pred_region
          %s755 = sand.u32 %s132, 1
          %s756 = scalar_lea.sflag [#allocation3], %s755
          %s757 = sand.u32 %s132, 1
          %s758 = smul.addr %s757, 4
          %s759 = scalar_lea.vmem [#allocation2], %s758
          %760 = dma.done %s756, 64
        $region52: #{transformer_encoder_forward.10} parent=43 // pred_fallthru
          _
      $region44: #{transformer_encoder_forward.10} parent=5 // pred_fallthru
        _
    $region6: #{transformer_encoder_forward.10} parent=1 // loop_footer
      %s18 = sadd.s32 1, %s14
    $region7: #{transformer_encoder_forward.10} parent=1 // loop_footer_branch
      %13 = sbr.rel target = $region3
    $region8: #{transformer_encoder_forward.10} parent=1 // loop_exit
      _
    %761 = vsyncpa [#allocation3], 1
    %s762 = scalar_lea.sflag [#allocation3], 1
    %763 = vsyncpa %s762, 1

// kernel: transformer_encoder_forward.12
$region0: #{transformer_encoder_forward.12}
  #allocation0 [shape = 'u32[]', space=smem, size = 0x4, offset = 0x4, fixed_abs, tag = 'smem constant byte address 0x4 - core index']
  #allocation1 [shape = 'u32[144,128]{1,0:T(1,128)}', space=vmem, size = 0x12000, scoped, tag = 'internal scratch']
  %s0 = inlined_call_operand.vmem [shape: bf16[16,32], index: 0, kind: input, shape index: {}]
  %s1 = inlined_call_operand.vmem [shape: bf16[32,64], index: 1, kind: input, shape index: {}]
  %s2 = inlined_call_operand.vmem [shape: bf16[1,64], index: 2, kind: input, shape index: {}]
  %s3 = inlined_call_operand.vmem [shape: bf16[64,32], index: 3, kind: input, shape index: {}]
  %s4 = inlined_call_operand.vmem [shape: bf16[1,32], index: 4, kind: input, shape index: {}]
  %s5 = inlined_call_operand.vmem [shape: bf16[1,32], index: 5, kind: input, shape index: {}]
  %s6 = inlined_call_operand.vmem [shape: bf16[1,32], index: 6, kind: input, shape index: {}]
  %s7 = inlined_call_operand.vmem [shape: bf16[16,32], index: 7, kind: output, shape index: {}]
  %s8 = sld [smem:[#allocation0]]
  $region61: #{transformer_encoder_forward.12} parent=0
    _
  %s10 = ssub.s32 1, %s8
  %s11 = scalar_select 0, %s10, %s8
  loop: start=0, step=1, limit=4
  $region2: #{transformer_encoder_forward.12} parent=0 // loop_pre_header
    _
  $region3: #{transformer_encoder_forward.12} parent=0 // loop_header
    %s13 = sphi 0, %s17
    %p14 = scmp.ge.s32.totalorder %s13, 4
    %s23 = sphi 0, %s25
    %s26 = sphi 0, %s23
    %s27 = sphi 0, %s26
    %s43 = sphi 0, %s27
    %s47 = sphi 0, %s47
    %s49 = sphi 0, %s47
    %s50 = sphi 0, %s49
    %s64 = sphi 0, %s50
    %s68 = sphi 0, %s68
    %s70 = sphi 0, %s68
    %s71 = sphi 0, %s70
    %s85 = sphi 0, %s71
    %s89 = sphi 0, %s89
    %s91 = sphi 0, %s89
    %s92 = sphi 0, %s91
    %s106 = sphi 0, %s92
    %s110 = sphi 0, %s110
    %s112 = sphi 0, %s110
    %s113 = sphi 0, %s112
    %s127 = sphi 0, %s113
    %s131 = sphi 0, %s131
    %s133 = sphi 0, %s131
    %s134 = sphi 0, %s133
    %s148 = sphi 0, %s134
    %s152 = sphi 0, %s152
    %s154 = sphi 0, %s152
    %s155 = sphi 0, %s154
    %s169 = sphi 0, %s155
    %s175 = sphi 0, %s177
    %s178 = sphi 0, %s175
    %s179 = sphi 0, %s178
    %s195 = sphi 0, %s179
  $region4: #{transformer_encoder_forward.12} parent=0 // loop_header_branch
    %16 = sbr.rel (%p14) target = $region8
  $region5: #{transformer_encoder_forward.12} parent=0 // loop_body
    %s18 = ssub.s32 %s13, 1
    %s19 = ssub.s32 %s13, 2
    %s20 = sadd.s32 %s13, 1
    %s21 = ssub.s32 %s13, %s20
    %p22 = scmp.eq.s32.totalorder %s21, 0
    %s24 = sadd.s32 %s23, 1
    %s25 = scalar_select %p22, %s23, %s24
    %p28 = pneg %p22
    %p29 = scmp.eq.s32.totalorder %s13, 1
    %p30 = por %p28, %p29
    %p31 = scmp.ne.s32.totalorder %s23, %s26
    %p32 = scmp.eq.s32.totalorder %s13, 0
    %p33 = por %p31, %p32
    %p34 = scmp.ne.s32.totalorder %s23, %s26
    %p35 = scmp.eq.s32.totalorder %s18, 1
    %p36 = por %p34, %p35
    %p37 = scmp.ne.s32.totalorder %s26, %s27
    %p38 = scmp.eq.s32.totalorder %s18, 0
    %p39 = por %p37, %p38
    %p40 = scmp.ne.s32.totalorder %s26, %s27
    %p41 = scmp.eq.s32.totalorder %s19, 1
    %p42 = por %p40, %p41
    %p44 = scmp.ne.s32.totalorder %s27, %s43
    %p45 = scmp.eq.s32.totalorder %s19, 0
    %p46 = por %p44, %p45
    %s48 = sadd.s32 %s47, 1
    %p51 = scmp.eq.s32.totalorder %s13, 1
    %p52 = scmp.ne.s32.totalorder %s47, %s49
    %p53 = scmp.eq.s32.totalorder %s13, 0
    %p54 = por %p52, %p53
    %p55 = scmp.ne.s32.totalorder %s47, %s49
    %p56 = scmp.eq.s32.totalorder %s18, 1
    %p57 = por %p55, %p56
    %p58 = scmp.ne.s32.totalorder %s49, %s50
    %p59 = scmp.eq.s32.totalorder %s18, 0
    %p60 = por %p58, %p59
    %p61 = scmp.ne.s32.totalorder %s49, %s50
    %p62 = scmp.eq.s32.totalorder %s19, 1
    %p63 = por %p61, %p62
    %p65 = scmp.ne.s32.totalorder %s50, %s64
    %p66 = scmp.eq.s32.totalorder %s19, 0
    %p67 = por %p65, %p66
    %s69 = sadd.s32 %s68, 1
    %p72 = scmp.eq.s32.totalorder %s13, 1
    %p73 = scmp.ne.s32.totalorder %s68, %s70
    %p74 = scmp.eq.s32.totalorder %s13, 0
    %p75 = por %p73, %p74
    %p76 = scmp.ne.s32.totalorder %s68, %s70
    %p77 = scmp.eq.s32.totalorder %s18, 1
    %p78 = por %p76, %p77
    %p79 = scmp.ne.s32.totalorder %s70, %s71
    %p80 = scmp.eq.s32.totalorder %s18, 0
    %p81 = por %p79, %p80
    %p82 = scmp.ne.s32.totalorder %s70, %s71
    %p83 = scmp.eq.s32.totalorder %s19, 1
    %p84 = por %p82, %p83
    %p86 = scmp.ne.s32.totalorder %s71, %s85
    %p87 = scmp.eq.s32.totalorder %s19, 0
    %p88 = por %p86, %p87
    %s90 = sadd.s32 %s89, 1
    %p93 = scmp.eq.s32.totalorder %s13, 1
    %p94 = scmp.ne.s32.totalorder %s89, %s91
    %p95 = scmp.eq.s32.totalorder %s13, 0
    %p96 = por %p94, %p95
    %p97 = scmp.ne.s32.totalorder %s89, %s91
    %p98 = scmp.eq.s32.totalorder %s18, 1
    %p99 = por %p97, %p98
    %p100 = scmp.ne.s32.totalorder %s91, %s92
    %p101 = scmp.eq.s32.totalorder %s18, 0
    %p102 = por %p100, %p101
    %p103 = scmp.ne.s32.totalorder %s91, %s92
    %p104 = scmp.eq.s32.totalorder %s19, 1
    %p105 = por %p103, %p104
    %p107 = scmp.ne.s32.totalorder %s92, %s106
    %p108 = scmp.eq.s32.totalorder %s19, 0
    %p109 = por %p107, %p108
    %s111 = sadd.s32 %s110, 1
    %p114 = scmp.eq.s32.totalorder %s13, 1
    %p115 = scmp.ne.s32.totalorder %s110, %s112
    %p116 = scmp.eq.s32.totalorder %s13, 0
    %p117 = por %p115, %p116
    %p118 = scmp.ne.s32.totalorder %s110, %s112
    %p119 = scmp.eq.s32.totalorder %s18, 1
    %p120 = por %p118, %p119
    %p121 = scmp.ne.s32.totalorder %s112, %s113
    %p122 = scmp.eq.s32.totalorder %s18, 0
    %p123 = por %p121, %p122
    %p124 = scmp.ne.s32.totalorder %s112, %s113
    %p125 = scmp.eq.s32.totalorder %s19, 1
    %p126 = por %p124, %p125
    %p128 = scmp.ne.s32.totalorder %s113, %s127
    %p129 = scmp.eq.s32.totalorder %s19, 0
    %p130 = por %p128, %p129
    %s132 = sadd.s32 %s131, 1
    %p135 = scmp.eq.s32.totalorder %s13, 1
    %p136 = scmp.ne.s32.totalorder %s131, %s133
    %p137 = scmp.eq.s32.totalorder %s13, 0
    %p138 = por %p136, %p137
    %p139 = scmp.ne.s32.totalorder %s131, %s133
    %p140 = scmp.eq.s32.totalorder %s18, 1
    %p141 = por %p139, %p140
    %p142 = scmp.ne.s32.totalorder %s133, %s134
    %p143 = scmp.eq.s32.totalorder %s18, 0
    %p144 = por %p142, %p143
    %p145 = scmp.ne.s32.totalorder %s133, %s134
    %p146 = scmp.eq.s32.totalorder %s19, 1
    %p147 = por %p145, %p146
    %p149 = scmp.ne.s32.totalorder %s134, %s148
    %p150 = scmp.eq.s32.totalorder %s19, 0
    %p151 = por %p149, %p150
    %s153 = sadd.s32 %s152, 1
    %p156 = scmp.eq.s32.totalorder %s13, 1
    %p157 = scmp.ne.s32.totalorder %s152, %s154
    %p158 = scmp.eq.s32.totalorder %s13, 0
    %p159 = por %p157, %p158
    %p160 = scmp.ne.s32.totalorder %s152, %s154
    %p161 = scmp.eq.s32.totalorder %s18, 1
    %p162 = por %p160, %p161
    %p163 = scmp.ne.s32.totalorder %s154, %s155
    %p164 = scmp.eq.s32.totalorder %s18, 0
    %p165 = por %p163, %p164
    %p166 = scmp.ne.s32.totalorder %s154, %s155
    %p167 = scmp.eq.s32.totalorder %s19, 1
    %p168 = por %p166, %p167
    %p170 = scmp.ne.s32.totalorder %s155, %s169
    %p171 = scmp.eq.s32.totalorder %s19, 0
    %p172 = por %p170, %p171
    %s173 = ssub.s32 %s13, %s20
    %p174 = scmp.eq.s32.totalorder %s173, 0
    %s176 = sadd.s32 %s175, 1
    %s177 = scalar_select %p174, %s175, %s176
    %p180 = pneg %p174
    %p181 = scmp.eq.s32.totalorder %s13, 1
    %p182 = por %p180, %p181
    %p183 = scmp.ne.s32.totalorder %s175, %s178
    %p184 = scmp.eq.s32.totalorder %s13, 0
    %p185 = por %p183, %p184
    %p186 = scmp.ne.s32.totalorder %s175, %s178
    %p187 = scmp.eq.s32.totalorder %s18, 1
    %p188 = por %p186, %p187
    %p189 = scmp.ne.s32.totalorder %s178, %s179
    %p190 = scmp.eq.s32.totalorder %s18, 0
    %p191 = por %p189, %p190
    %p192 = scmp.ne.s32.totalorder %s178, %s179
    %p193 = scmp.eq.s32.totalorder %s19, 1
    %p194 = por %p192, %p193
    %p196 = scmp.ne.s32.totalorder %s179, %s195
    %p197 = scmp.eq.s32.totalorder %s19, 0
    %p198 = por %p196, %p197
    %p199 = scmp.le.s32.totalorder 1, %s13
    %p200 = scmp.lt.s32.totalorder %s13, 3
    %p201 = pnand %p199, %p200
    %p202 = pneg %p201
    // Predicated region
    $region9: #{transformer_encoder_forward.12} parent=5 // pred_check
      _
    $region10: #{transformer_encoder_forward.12} parent=5 // pred_check_branch
      %204 = sbr.rel (%p201) target = $region12
    $region11: #{transformer_encoder_forward.12} parent=5 // pred_region
      %s205 = ssub.s32 %s13, 1
      // Predicated region
      $region13: #{transformer_encoder_forward.12} parent=11 // pred_check
        %p206 = pneg %p60
      $region14: #{transformer_encoder_forward.12} parent=11 // pred_check_branch
        %208 = sbr.rel (%p206) target = $region16
      $region15: #{transformer_encoder_forward.12} parent=11 // pred_region
        _
      $region16: #{transformer_encoder_forward.12} parent=11 // pred_fallthru
        _
      // Predicated region
      $region17: #{transformer_encoder_forward.12} parent=11 // pred_check
        %p209 = pneg %p81
      $region18: #{transformer_encoder_forward.12} parent=11 // pred_check_branch
        %211 = sbr.rel (%p209) target = $region20
      $region19: #{transformer_encoder_forward.12} parent=11 // pred_region
        _
      $region20: #{transformer_encoder_forward.12} parent=11 // pred_fallthru
        _
      // Predicated region
      $region21: #{transformer_encoder_forward.12} parent=11 // pred_check
        %p212 = pneg %p102
      $region22: #{transformer_encoder_forward.12} parent=11 // pred_check_branch
        %214 = sbr.rel (%p212) target = $region24
      $region23: #{transformer_encoder_forward.12} parent=11 // pred_region
        _
      $region24: #{transformer_encoder_forward.12} parent=11 // pred_fallthru
        _
      // Predicated region
      $region25: #{transformer_encoder_forward.12} parent=11 // pred_check
        %p215 = pneg %p123
      $region26: #{transformer_encoder_forward.12} parent=11 // pred_check_branch
        %217 = sbr.rel (%p215) target = $region28
      $region27: #{transformer_encoder_forward.12} parent=11 // pred_region
        _
      $region28: #{transformer_encoder_forward.12} parent=11 // pred_fallthru
        _
      // Predicated region
      $region29: #{transformer_encoder_forward.12} parent=11 // pred_check
        %p218 = pneg %p144
      $region30: #{transformer_encoder_forward.12} parent=11 // pred_check_branch
        %220 = sbr.rel (%p218) target = $region32
      $region31: #{transformer_encoder_forward.12} parent=11 // pred_region
        _
      $region32: #{transformer_encoder_forward.12} parent=11 // pred_fallthru
        _
      // Predicated region
      $region33: #{transformer_encoder_forward.12} parent=11 // pred_check
        %p221 = pneg %p165
      $region34: #{transformer_encoder_forward.12} parent=11 // pred_check_branch
        %223 = sbr.rel (%p221) target = $region36
      $region35: #{transformer_encoder_forward.12} parent=11 // pred_region
        _
      $region36: #{transformer_encoder_forward.12} parent=11 // pred_fallthru
        _
    $region12: #{transformer_encoder_forward.12} parent=5 // pred_fallthru
      _
    %p224 = scmp.lt.s32.totalorder %s13, 2
    // Predicated region
    $region37: #{transformer_encoder_forward.12} parent=5 // pred_check
      %p225 = pneg %p224
    $region38: #{transformer_encoder_forward.12} parent=5 // pred_check_branch
      %227 = sbr.rel (%p225) target = $region40
    $region39: #{transformer_encoder_forward.12} parent=5 // pred_region
      // Predicated region
      $region41: #{transformer_encoder_forward.12} parent=39 // pred_check
        %p228 = pneg %p33
      $region42: #{transformer_encoder_forward.12} parent=39 // pred_check_branch
        %230 = sbr.rel (%p228) target = $region44
      $region43: #{transformer_encoder_forward.12} parent=39 // pred_region
        %p231 = scmp.lt.s32.totalorder %s13, 1
        %s232 = scalar_select %p231, %s13, 1
        %s233 = smul.addr %s232, 4
        %s234 = scalar_lea.vmem %s0, %s233
      $region44: #{transformer_encoder_forward.12} parent=39 // pred_fallthru
        _
    $region40: #{transformer_encoder_forward.12} parent=5 // pred_fallthru
      _
    %p235 = scmp.le.s32.totalorder 1, %s13
    %p236 = scmp.lt.s32.totalorder %s13, 3
    %p237 = pnand %p235, %p236
    %p238 = pneg %p237
    // Predicated region
    $region45: #{transformer_encoder_forward.12} parent=5 // pred_check
      _
    $region46: #{transformer_encoder_forward.12} parent=5 // pred_check_branch
      %240 = sbr.rel (%p237) target = $region48
    $region47: #{transformer_encoder_forward.12} parent=5 // pred_region
      %s241 = ssub.s32 %s13, 1
      %p242 = scmp.lt.s32.totalorder %s18, 1
      %s243 = scalar_select %p242, %s18, 1
      %s244 = smul.addr %s243, 4
      %s245 = scalar_lea.vmem %s0, %s244
      %p246 = pneg %p39
      %p247 = pneg %p36
      %p248 = pneg %p60
      %p249 = pneg %p57
      %p250 = pneg %p81
      %p251 = pneg %p78
      %p252 = pneg %p102
      %p253 = pneg %p99
      %p254 = pneg %p123
      %p255 = pneg %p120
      %p256 = pneg %p144
      %p257 = pneg %p141
      %p258 = pneg %p165
      %p259 = pneg %p162
      %p260 = pneg %p191
      %p261 = pneg %p188
      %p262 = scmp.lt.s32.totalorder %s18, 1
      %s263 = scalar_select %p262, %s18, 1
      %s264 = smul.addr %s263, 4
      %s265 = scalar_lea.vmem %s7, %s264
      %p266 = scmp.lt.s32.totalorder %s18, 1
      %s267 = scalar_select %p266, %s18, 1
      %s268 = smul.addr %s267, 4
      %s269 = scalar_lea.vmem %s0, %s268
      %p270 = scmp.lt.s32.totalorder %s18, 1
      %s271 = scalar_select %p270, %s18, 1
      %s272 = smul.addr %s271, 4
      %s273 = scalar_lea.vmem %s7, %s272
      %v275 = vld [vmem:[%s269] sm:$0xf]
      %v276 = vld [vmem:[%s1] sm:$0xf]
      %v277 = vld [vmem:[%s1 + $0x4] sm:$0xf]
      %v278 = vld [vmem:[%s1 + $0x8] sm:$0xf]
      %v279 = vld [vmem:[%s1 + $0xc] sm:$0xf]
      %v280 = vld [vmem:[%s2] sm:$0x1]
      %v281 = vunpack.c.l.bf16 %v280
      %v282 = vlaneseq
      %v283 = vshrl.u32 %v282, 7
      %v284 = vsub.s32 0, %v283
      %v285 = vrot.slane %v281, %v284
      %v290 = vunpack.c.l.b16 %v276
      %v291 = vunpack.c.l.b16 %v277
      %v292 = vunpack.c.l.b16 %v278
      %v293 = vunpack.c.l.b16 %v279
      %v294 = vpack.c.b16 %v291, %v290
      %v295 = vpack.c.b16 %v293, %v292
      %vm298 = vcmask 261120
      %v300 = vsel %vm298, %v275, 0
      %302 = vmatprep.subr.bf16.mxu0 0
      %303 = vmatpush1.bf16.msra.mxu0 %v294
      %304 = vmatprep.subr.bf16.mxu0 0
      %305 = vmatpush1.bf16.msra.mxu0 %v295
      %306 = vmatprep.subr.bf16.mxu0 0
      %307 = vmatpush1.bf16.msra.mxu0 0
      %308 = vmatprep.subr.bf16.mxu0 0
      %309 = vmatpush1.bf16.msra.mxu0 0
      %310 = vmatprep.subr.bf16.mxu0 0
      %311 = vmatpush1.bf16.msra.mxu0 0
      %312 = vmatprep.subr.bf16.mxu0 0
      %313 = vmatpush1.bf16.msra.mxu0 0
      %314 = vmatprep.subr.bf16.mxu0 0
      %315 = vmatpush1.bf16.msra.mxu0 0
      %316 = vmatprep.subr.bf16.mxu0 0
      %317 = vmatpush1.bf16.msra.mxu0 0
      %318 = vmatprep.subr.bf16.mxu0 0
      %319 = vmatpush1.bf16.msra.mxu0 0
      %320 = vmatprep.subr.bf16.mxu0 0
      %321 = vmatpush1.bf16.msra.mxu0 0
      %322 = vmatprep.subr.bf16.mxu0 0
      %323 = vmatpush1.bf16.msra.mxu0 0
      %324 = vmatprep.subr.bf16.mxu0 0
      %325 = vmatpush1.bf16.msra.mxu0 0
      %326 = vmatprep.subr.bf16.mxu0 0
      %327 = vmatpush1.bf16.msra.mxu0 0
      %328 = vmatprep.subr.bf16.mxu0 0
      %329 = vmatpush1.bf16.msra.mxu0 0
      %330 = vmatprep.subr.bf16.mxu0 0
      %331 = vmatpush1.bf16.msra.mxu0 0
      %332 = vmatprep.subr.bf16.mxu0 0
      %333 = vmatpush1.bf16.msra.mxu0 0
      %334 = vmatprep.mubr.bf16.mxu0 0
      %335 = vmatmul.mubr.bf16.gmra.mrb[0].mxu0 %v300
      %v336 = vpop.f32.mrb[0].mxu0
      %v337 = vadd.f32 %v285, %v336
      %v338 = vpop.f32.mrb[0].mxu0
      %v339 = vpop.f32.mrb[0].mxu0
      %v340 = vpop.f32.mrb[0].mxu0
      %341 = vdwg.mxu0
      %v342 = vmax.f32 %v337, 0.0
      %v343 = vpack.c.bf16 %v342, %v342
      %v344 = vld [vmem:[%s3] sm:$0xf]
      %v345 = vld [vmem:[%s3 + $0x4] sm:$0xf]
      %v346 = vld [vmem:[%s3 + $0x8] sm:$0xf]
      %v347 = vld [vmem:[%s3 + $0xc] sm:$0xf]
      %v348 = vld [vmem:[%s3 + $0x10] sm:$0xf]
      %v349 = vld [vmem:[%s3 + $0x14] sm:$0xf]
      %v350 = vld [vmem:[%s3 + $0x18] sm:$0xf]
      %v351 = vld [vmem:[%s3 + $0x1c] sm:$0xf]
      %v352 = vld [vmem:[%s4] sm:$0x1]
      %v353 = vunpack.c.l.bf16 %v352
      %v354 = vlaneseq
      %v355 = vshrl.u32 %v354, 7
      %v356 = vsub.s32 0, %v355
      %v357 = vrot.slane %v353, %v356
      %v366 = vunpack.c.l.b16 %v344
      %v367 = vunpack.c.l.b16 %v345
      %v368 = vunpack.c.l.b16 %v346
      %v369 = vunpack.c.l.b16 %v347
      %v370 = vunpack.c.l.b16 %v348
      %v371 = vunpack.c.l.b16 %v349
      %v372 = vunpack.c.l.b16 %v350
      %v373 = vunpack.c.l.b16 %v351
      %v374 = vpack.c.b16 %v367, %v366
      %v375 = vpack.c.b16 %v369, %v368
      %v376 = vpack.c.b16 %v371, %v370
      %v377 = vpack.c.b16 %v373, %v372
      %vm382 = vcmask 523264
      %v384 = vsel %vm382, %v343, 0
      %386 = vmatprep.subr.bf16.mxu0 0
      %387 = vmatpush1.bf16.msra.mxu0 %v374
      %388 = vmatprep.subr.bf16.mxu0 0
      %389 = vmatpush1.bf16.msra.mxu0 %v375
      %390 = vmatprep.subr.bf16.mxu0 0
      %391 = vmatpush1.bf16.msra.mxu0 %v376
      %392 = vmatprep.subr.bf16.mxu0 0
      %393 = vmatpush1.bf16.msra.mxu0 %v377
      %394 = vmatprep.subr.bf16.mxu0 0
      %395 = vmatpush1.bf16.msra.mxu0 0
      %396 = vmatprep.subr.bf16.mxu0 0
      %397 = vmatpush1.bf16.msra.mxu0 0
      %398 = vmatprep.subr.bf16.mxu0 0
      %399 = vmatpush1.bf16.msra.mxu0 0
      %400 = vmatprep.subr.bf16.mxu0 0
      %401 = vmatpush1.bf16.msra.mxu0 0
      %402 = vmatprep.subr.bf16.mxu0 0
      %403 = vmatpush1.bf16.msra.mxu0 0
      %404 = vmatprep.subr.bf16.mxu0 0
      %405 = vmatpush1.bf16.msra.mxu0 0
      %406 = vmatprep.subr.bf16.mxu0 0
      %407 = vmatpush1.bf16.msra.mxu0 0
      %408 = vmatprep.subr.bf16.mxu0 0
      %409 = vmatpush1.bf16.msra.mxu0 0
      %410 = vmatprep.subr.bf16.mxu0 0
      %411 = vmatpush1.bf16.msra.mxu0 0
      %412 = vmatprep.subr.bf16.mxu0 0
      %413 = vmatpush1.bf16.msra.mxu0 0
      %414 = vmatprep.subr.bf16.mxu0 0
      %415 = vmatpush1.bf16.msra.mxu0 0
      %416 = vmatprep.subr.bf16.mxu0 0
      %417 = vmatpush1.bf16.msra.mxu0 0
      %418 = vmatprep.mubr.bf16.mxu0 0
      %419 = vmatmul.mubr.bf16.gmra.mrb[0].mxu0 %v384
      %v420 = vpop.f32.mrb[0].mxu0
      %v421 = vadd.f32 %v357, %v420
      %v422 = vpop.f32.mrb[0].mxu0
      %v423 = vpop.f32.mrb[0].mxu0
      %v424 = vpop.f32.mrb[0].mxu0
      %425 = vdwg.mxu0
      %v426 = vunpack.c.l.bf16 %v275
      %v427 = vadd.f32 %v421, %v426
      %v428 = vsel %vm298, %v427, 0.0
      %429 = vadd.xlane.f32.xlu0 %v428
      %v430 = vpop.xlane.xlu0 %429
      %v431 = vrcp.pop 32.0
      %v432 = vmul.f32 %v430, %v431
      %v433 = vsub.f32 %v427, %v432
      %v434 = vmul.f32 %v433, %v433
      %v435 = vsel %vm298, %v434, 0.0
      %436 = vadd.xlane.f32.xlu0 %v435
      %v437 = vpop.xlane.xlu0 %436
      %v438 = vmul.f32 %v437, %v431
      %v439 = vadd.f32 %v438, 1e-06
      %v440 = vrsqrt.pop %v439
      %v441 = vmul.f32 %v433, %v440
      %v442 = vld [vmem:[%s5] sm:$0x1]
      %v443 = vunpack.c.l.bf16 %v442
      %v444 = vlaneseq
      %v445 = vshrl.u32 %v444, 7
      %v446 = vsub.s32 0, %v445
      %v447 = vrot.slane %v443, %v446
      %v448 = vmul.f32 %v441, %v447
      %v449 = vld [vmem:[%s6] sm:$0x1]
      %v450 = vunpack.c.l.bf16 %v449
      %v451 = vlaneseq
      %v452 = vshrl.u32 %v451, 7
      %v453 = vsub.s32 0, %v452
      %v454 = vrot.slane %v450, %v453
      %v455 = vadd.f32 %v448, %v454
      %v456 = vpack.c.bf16 %v455, %v455
      %vm457 = vcmask 257024
      %458 = vst.msk [vmem:[%s273] sm:$0xf] %vm457, %v456
      %p459 = scmp.lt.s32.totalorder %s18, 1
      %s460 = scalar_select %p459, %s18, 1
      %s461 = smul.addr %s460, 4
      %s462 = scalar_lea.vmem %s7, %s461
      // Predicated region
      $region49: #{transformer_encoder_forward.12} parent=47 // pred_check
        %p463 = pneg %p188
      $region50: #{transformer_encoder_forward.12} parent=47 // pred_check_branch
        %465 = sbr.rel (%p463) target = $region52
      $region51: #{transformer_encoder_forward.12} parent=47 // pred_region
        _
      $region52: #{transformer_encoder_forward.12} parent=47 // pred_fallthru
        _
    $region48: #{transformer_encoder_forward.12} parent=5 // pred_fallthru
      _
    %p466 = scmp.le.s32.totalorder 2, %s13
    // Predicated region
    $region53: #{transformer_encoder_forward.12} parent=5 // pred_check
      %p467 = pneg %p466
    $region54: #{transformer_encoder_forward.12} parent=5 // pred_check_branch
      %469 = sbr.rel (%p467) target = $region56
    $region55: #{transformer_encoder_forward.12} parent=5 // pred_region
      %s470 = ssub.s32 %s13, 2
      // Predicated region
      $region57: #{transformer_encoder_forward.12} parent=55 // pred_check
        %p471 = pneg %p194
      $region58: #{transformer_encoder_forward.12} parent=55 // pred_check_branch
        %473 = sbr.rel (%p471) target = $region60
      $region59: #{transformer_encoder_forward.12} parent=55 // pred_region
        %p474 = scmp.lt.s32.totalorder %s19, 1
        %s475 = scalar_select %p474, %s19, 1
        %s476 = smul.addr %s475, 4
        %s477 = scalar_lea.vmem %s7, %s476
      $region60: #{transformer_encoder_forward.12} parent=55 // pred_fallthru
        _
    $region56: #{transformer_encoder_forward.12} parent=5 // pred_fallthru
      _
  $region6: #{transformer_encoder_forward.12} parent=0 // loop_footer
    %s17 = sadd.s32 1, %s13
  $region7: #{transformer_encoder_forward.12} parent=0 // loop_footer_branch
    %12 = sbr.rel target = $region3
  $region8: #{transformer_encoder_forward.12} parent=0 // loop_exit
    _

// kernel: transformer_encoder_forward.17
$region0: #{transformer_encoder_forward.17}
  #allocation0 [shape = 'u32[]', space=smem, size = 0x4, offset = 0x4, fixed_abs, tag = 'smem constant byte address 0x4 - core index']
  #allocation1 [shape = 'u32[144,128]{1,0:T(1,128)}', space=vmem, size = 0x12000, scoped, tag = 'internal scratch']
  %s0 = inlined_call_operand.vmem [shape: bf16[16,32], index: 0, kind: input, shape index: {}]
  %s1 = inlined_call_operand.vmem [shape: bf16[1,32], index: 1, kind: input, shape index: {}]
  %s2 = inlined_call_operand.vmem [shape: bf16[1,32], index: 2, kind: input, shape index: {}]
  %s3 = inlined_call_operand.hbm [shape: bf16[16,32], index: 3, kind: output, shape index: {}]
  %s4 = sld [smem:[#allocation0]]
  $region45: #{transformer_encoder_forward.17} parent=0
    _
  %s6 = ssub.s32 1, %s4
  %s7 = scalar_select 0, %s6, %s4
  $region1: #{transformer_encoder_forward.17} parent=0
    #allocation2 [shape = 'u8[4096]{0}', space=vmem, size = 0x1000, scoped, tag = 'output window, operand 0']
    #allocation3 [shape = 's32[2]{0}', space=sflag, size = 0x8, scoped, tag = 'scoped memory for transformer_encoder_forward.17']
    %8 = vsyncpa [#allocation3], 0
    %s9 = scalar_lea.sflag [#allocation3], 1
    %10 = vsyncpa %s9, 0
    loop: start=0, step=1, limit=4
    $region2: #{transformer_encoder_forward.17} parent=1 // loop_pre_header
      _
    $region3: #{transformer_encoder_forward.17} parent=1 // loop_header
      %s12 = sphi 0, %s16
      %p13 = scmp.ge.s32.totalorder %s12, 4
      %s22 = sphi 0, %s24
      %s25 = sphi 0, %s22
      %s26 = sphi 0, %s25
      %s42 = sphi 0, %s26
      %s46 = sphi 0, %s46
      %s48 = sphi 0, %s46
      %s49 = sphi 0, %s48
      %s63 = sphi 0, %s49
      %s67 = sphi 0, %s67
      %s69 = sphi 0, %s67
      %s70 = sphi 0, %s69
      %s84 = sphi 0, %s70
      %s90 = sphi 0, %s92
      %s93 = sphi 0, %s90
      %s94 = sphi 0, %s93
      %s110 = sphi 0, %s94
    $region4: #{transformer_encoder_forward.17} parent=1 // loop_header_branch
      %15 = sbr.rel (%p13) target = $region8
    $region5: #{transformer_encoder_forward.17} parent=1 // loop_body
      %s17 = ssub.s32 %s12, 1
      %s18 = ssub.s32 %s12, 2
      %s19 = sadd.s32 %s12, 1
      %s20 = ssub.s32 %s12, %s19
      %p21 = scmp.eq.s32.totalorder %s20, 0
      %s23 = sadd.s32 %s22, 1
      %s24 = scalar_select %p21, %s22, %s23
      %p27 = pneg %p21
      %p28 = scmp.eq.s32.totalorder %s12, 1
      %p29 = por %p27, %p28
      %p30 = scmp.ne.s32.totalorder %s22, %s25
      %p31 = scmp.eq.s32.totalorder %s12, 0
      %p32 = por %p30, %p31
      %p33 = scmp.ne.s32.totalorder %s22, %s25
      %p34 = scmp.eq.s32.totalorder %s17, 1
      %p35 = por %p33, %p34
      %p36 = scmp.ne.s32.totalorder %s25, %s26
      %p37 = scmp.eq.s32.totalorder %s17, 0
      %p38 = por %p36, %p37
      %p39 = scmp.ne.s32.totalorder %s25, %s26
      %p40 = scmp.eq.s32.totalorder %s18, 1
      %p41 = por %p39, %p40
      %p43 = scmp.ne.s32.totalorder %s26, %s42
      %p44 = scmp.eq.s32.totalorder %s18, 0
      %p45 = por %p43, %p44
      %s47 = sadd.s32 %s46, 1
      %p50 = scmp.eq.s32.totalorder %s12, 1
      %p51 = scmp.ne.s32.totalorder %s46, %s48
      %p52 = scmp.eq.s32.totalorder %s12, 0
      %p53 = por %p51, %p52
      %p54 = scmp.ne.s32.totalorder %s46, %s48
      %p55 = scmp.eq.s32.totalorder %s17, 1
      %p56 = por %p54, %p55
      %p57 = scmp.ne.s32.totalorder %s48, %s49
      %p58 = scmp.eq.s32.totalorder %s17, 0
      %p59 = por %p57, %p58
      %p60 = scmp.ne.s32.totalorder %s48, %s49
      %p61 = scmp.eq.s32.totalorder %s18, 1
      %p62 = por %p60, %p61
      %p64 = scmp.ne.s32.totalorder %s49, %s63
      %p65 = scmp.eq.s32.totalorder %s18, 0
      %p66 = por %p64, %p65
      %s68 = sadd.s32 %s67, 1
      %p71 = scmp.eq.s32.totalorder %s12, 1
      %p72 = scmp.ne.s32.totalorder %s67, %s69
      %p73 = scmp.eq.s32.totalorder %s12, 0
      %p74 = por %p72, %p73
      %p75 = scmp.ne.s32.totalorder %s67, %s69
      %p76 = scmp.eq.s32.totalorder %s17, 1
      %p77 = por %p75, %p76
      %p78 = scmp.ne.s32.totalorder %s69, %s70
      %p79 = scmp.eq.s32.totalorder %s17, 0
      %p80 = por %p78, %p79
      %p81 = scmp.ne.s32.totalorder %s69, %s70
      %p82 = scmp.eq.s32.totalorder %s18, 1
      %p83 = por %p81, %p82
      %p85 = scmp.ne.s32.totalorder %s70, %s84
      %p86 = scmp.eq.s32.totalorder %s18, 0
      %p87 = por %p85, %p86
      %s88 = ssub.s32 %s12, %s19
      %p89 = scmp.eq.s32.totalorder %s88, 0
      %s91 = sadd.s32 %s90, 1
      %s92 = scalar_select %p89, %s90, %s91
      %p95 = pneg %p89
      %p96 = scmp.eq.s32.totalorder %s12, 1
      %p97 = por %p95, %p96
      %p98 = scmp.ne.s32.totalorder %s90, %s93
      %p99 = scmp.eq.s32.totalorder %s12, 0
      %p100 = por %p98, %p99
      %p101 = scmp.ne.s32.totalorder %s90, %s93
      %p102 = scmp.eq.s32.totalorder %s17, 1
      %p103 = por %p101, %p102
      %p104 = scmp.ne.s32.totalorder %s93, %s94
      %p105 = scmp.eq.s32.totalorder %s17, 0
      %p106 = por %p104, %p105
      %p107 = scmp.ne.s32.totalorder %s93, %s94
      %p108 = scmp.eq.s32.totalorder %s18, 1
      %p109 = por %p107, %p108
      %p111 = scmp.ne.s32.totalorder %s94, %s110
      %p112 = scmp.eq.s32.totalorder %s18, 0
      %p113 = por %p111, %p112
      %p114 = scmp.le.s32.totalorder 1, %s12
      %p115 = scmp.lt.s32.totalorder %s12, 3
      %p116 = pnand %p114, %p115
      %p117 = pneg %p116
      // Predicated region
      $region9: #{transformer_encoder_forward.17} parent=5 // pred_check
        _
      $region10: #{transformer_encoder_forward.17} parent=5 // pred_check_branch
        %119 = sbr.rel (%p116) target = $region12
      $region11: #{transformer_encoder_forward.17} parent=5 // pred_region
        %s120 = ssub.s32 %s12, 1
        // Predicated region
        $region13: #{transformer_encoder_forward.17} parent=11 // pred_check
          %p121 = pneg %p59
        $region14: #{transformer_encoder_forward.17} parent=11 // pred_check_branch
          %123 = sbr.rel (%p121) target = $region16
        $region15: #{transformer_encoder_forward.17} parent=11 // pred_region
          _
        $region16: #{transformer_encoder_forward.17} parent=11 // pred_fallthru
          _
        // Predicated region
        $region17: #{transformer_encoder_forward.17} parent=11 // pred_check
          %p124 = pneg %p80
        $region18: #{transformer_encoder_forward.17} parent=11 // pred_check_branch
          %126 = sbr.rel (%p124) target = $region20
        $region19: #{transformer_encoder_forward.17} parent=11 // pred_region
          _
        $region20: #{transformer_encoder_forward.17} parent=11 // pred_fallthru
          _
      $region12: #{transformer_encoder_forward.17} parent=5 // pred_fallthru
        _
      %p127 = scmp.lt.s32.totalorder %s12, 2
      // Predicated region
      $region21: #{transformer_encoder_forward.17} parent=5 // pred_check
        %p128 = pneg %p127
      $region22: #{transformer_encoder_forward.17} parent=5 // pred_check_branch
        %130 = sbr.rel (%p128) target = $region24
      $region23: #{transformer_encoder_forward.17} parent=5 // pred_region
        // Predicated region
        $region25: #{transformer_encoder_forward.17} parent=23 // pred_check
          %p131 = pneg %p32
        $region26: #{transformer_encoder_forward.17} parent=23 // pred_check_branch
          %133 = sbr.rel (%p131) target = $region28
        $region27: #{transformer_encoder_forward.17} parent=23 // pred_region
          %p134 = scmp.lt.s32.totalorder %s12, 1
          %s135 = scalar_select %p134, %s12, 1
          %s136 = smul.addr %s135, 4
          %s137 = scalar_lea.vmem %s0, %s136
        $region28: #{transformer_encoder_forward.17} parent=23 // pred_fallthru
          _
      $region24: #{transformer_encoder_forward.17} parent=5 // pred_fallthru
        _
      %p138 = scmp.le.s32.totalorder 1, %s12
      %p139 = scmp.lt.s32.totalorder %s12, 3
      %p140 = pnand %p138, %p139
      %p141 = pneg %p140
      // Predicated region
      $region29: #{transformer_encoder_forward.17} parent=5 // pred_check
        _
      $region30: #{transformer_encoder_forward.17} parent=5 // pred_check_branch
        %143 = sbr.rel (%p140) target = $region32
      $region31: #{transformer_encoder_forward.17} parent=5 // pred_region
        %s144 = ssub.s32 %s12, 1
        %p145 = scmp.lt.s32.totalorder %s17, 1
        %s146 = scalar_select %p145, %s17, 1
        %s147 = smul.addr %s146, 4
        %s148 = scalar_lea.vmem %s0, %s147
        %p149 = pneg %p38
        %p150 = pneg %p35
        %p151 = pneg %p59
        %p152 = pneg %p56
        %p153 = pneg %p80
        %p154 = pneg %p77
        %p155 = pneg %p106
        %p156 = pneg %p103
        %s157 = sand.u32 %s93, 1
        %s158 = scalar_lea.sflag [#allocation3], %s157
        %s159 = sand.u32 %s93, 1
        %s160 = smul.addr %s159, 4
        %s161 = scalar_lea.vmem [#allocation2], %s160
        %p162 = scmp.lt.s32.totalorder %s17, 1
        %s163 = scalar_select %p162, %s17, 1
        %s164 = smul.addr %s163, 4
        %s165 = scalar_lea.vmem %s0, %s164
        %v166 = vld [vmem:[%s165] sm:$0xf]
        %v167 = vunpack.c.l.bf16 %v166
        %vm168 = vcmask 261120
        %v169 = vsel %vm168, %v167, 0.0
        %170 = vadd.xlane.f32.xlu0 %v169
        %v171 = vpop.xlane.xlu0 %170
        %v172 = vrcp.pop 32.0
        %v173 = vmul.f32 %v171, %v172
        %v174 = vsub.f32 %v167, %v173
        %v175 = vmul.f32 %v174, %v174
        %v176 = vsel %vm168, %v175, 0.0
        %177 = vadd.xlane.f32.xlu0 %v176
        %v178 = vpop.xlane.xlu0 %177
        %v179 = vmul.f32 %v178, %v172
        %v180 = vadd.f32 %v179, 1e-06
        %v181 = vrsqrt.pop %v180
        %v182 = vmul.f32 %v174, %v181
        %v183 = vld [vmem:[%s1] sm:$0x1]
        %v184 = vunpack.c.l.bf16 %v183
        %v185 = vlaneseq
        %v186 = vshrl.u32 %v185, 7
        %v187 = vsub.s32 0, %v186
        %v188 = vrot.slane %v184, %v187
        %v189 = vmul.f32 %v182, %v188
        %v190 = vld [vmem:[%s2] sm:$0x1]
        %v191 = vunpack.c.l.bf16 %v190
        %v192 = vlaneseq
        %v193 = vshrl.u32 %v192, 7
        %v194 = vsub.s32 0, %v193
        %v195 = vrot.slane %v191, %v194
        %v196 = vadd.f32 %v189, %v195
        %v197 = vpack.c.bf16 %v196, %v196
        %vm198 = vcmask 257024
        %199 = vst.msk [vmem:[%s161] sm:$0xf] %vm198, %v197
        %s200 = sand.u32 %s93, 1
        %s201 = scalar_lea.sflag [#allocation3], %s200
        %s202 = sand.u32 %s93, 1
        %s203 = smul.addr %s202, 4
        %s204 = scalar_lea.vmem [#allocation2], %s203
        // Predicated region
        $region33: #{transformer_encoder_forward.17} parent=31 // pred_check
          %p205 = pneg %p103
        $region34: #{transformer_encoder_forward.17} parent=31 // pred_check_branch
          %207 = sbr.rel (%p205) target = $region36
        $region35: #{transformer_encoder_forward.17} parent=31 // pred_region
          %s209 = ssub.s32 64, 64
          %210 = vsyncadd %s201, %s209
          %s211 = smul.addr %s17, 64
          %s212 = scalar_lea.hbm %s3, %s211
          %s214 = sshll.u32 %s204, 4
          %s215 = int_to_ptr.vmem [resolvable:$true] %s214
          %217 = dma.vmem_to_hbm [thread:$0]  %s215, 64, %s212, %s201
        $region36: #{transformer_encoder_forward.17} parent=31 // pred_fallthru
          _
      $region32: #{transformer_encoder_forward.17} parent=5 // pred_fallthru
        _
      %p218 = scmp.le.s32.totalorder 2, %s12
      // Predicated region
      $region37: #{transformer_encoder_forward.17} parent=5 // pred_check
        %p219 = pneg %p218
      $region38: #{transformer_encoder_forward.17} parent=5 // pred_check_branch
        %221 = sbr.rel (%p219) target = $region40
      $region39: #{transformer_encoder_forward.17} parent=5 // pred_region
        %s222 = ssub.s32 %s12, 2
        // Predicated region
        $region41: #{transformer_encoder_forward.17} parent=39 // pred_check
          %p223 = pneg %p109
        $region42: #{transformer_encoder_forward.17} parent=39 // pred_check_branch
          %225 = sbr.rel (%p223) target = $region44
        $region43: #{transformer_encoder_forward.17} parent=39 // pred_region
          %s226 = sand.u32 %s94, 1
          %s227 = scalar_lea.sflag [#allocation3], %s226
          %s228 = sand.u32 %s94, 1
          %s229 = smul.addr %s228, 4
          %s230 = scalar_lea.vmem [#allocation2], %s229
          %231 = dma.done %s227, 64
        $region44: #{transformer_encoder_forward.17} parent=39 // pred_fallthru
          _
      $region40: #{transformer_encoder_forward.17} parent=5 // pred_fallthru
        _
    $region6: #{transformer_encoder_forward.17} parent=1 // loop_footer
      %s16 = sadd.s32 1, %s12
    $region7: #{transformer_encoder_forward.17} parent=1 // loop_footer_branch
      %11 = sbr.rel target = $region3
    $region8: #{transformer_encoder_forward.17} parent=1 // loop_exit
      _
    %232 = vsyncpa [#allocation3], 1
    %s233 = scalar_lea.sflag [#allocation3], 1
    %234 = vsyncpa %s233, 1

// kernel: transformer_encoder_forward.13
$region0: #{transformer_encoder_forward.13}
  #allocation0 [shape = 'u32[]', space=smem, size = 0x4, offset = 0x4, fixed_abs, tag = 'smem constant byte address 0x4 - core index']
  #allocation1 [shape = 'u32[144,128]{1,0:T(1,128)}', space=vmem, size = 0x12000, scoped, tag = 'internal scratch']
  %s0 = inlined_call_operand.vmem [shape: bf16[16,32], index: 0, kind: input, shape index: {}]
  %s1 = inlined_call_operand.vmem [shape: bf16[32,96], index: 1, kind: input, shape index: {}]
  %s2 = inlined_call_operand.vmem [shape: bf16[1,96], index: 2, kind: input, shape index: {}]
  %s3 = inlined_call_operand.vmem [shape: bf16[16,32], index: 3, kind: output, shape index: {0}]
  %s4 = inlined_call_operand.vmem [shape: bf16[16,32], index: 4, kind: output, shape index: {1}]
  %s5 = inlined_call_operand.vmem [shape: bf16[16,32], index: 5, kind: output, shape index: {2}]
  %6 = xla_tuple %s3, %s4, %s5
  %s7 = sld [smem:[#allocation0]]
  $region61: #{transformer_encoder_forward.13} parent=0
    _
  %s9 = ssub.s32 1, %s7
  %s10 = scalar_select 0, %s9, %s7
  loop: start=0, step=1, limit=4
  $region2: #{transformer_encoder_forward.13} parent=0 // loop_pre_header
    _
  $region3: #{transformer_encoder_forward.13} parent=0 // loop_header
    %s12 = sphi 0, %s16
    %p13 = scmp.ge.s32.totalorder %s12, 4
    %s22 = sphi 0, %s24
    %s25 = sphi 0, %s22
    %s26 = sphi 0, %s25
    %s42 = sphi 0, %s26
    %s46 = sphi 0, %s46
    %s48 = sphi 0, %s46
    %s49 = sphi 0, %s48
    %s63 = sphi 0, %s49
    %s67 = sphi 0, %s67
    %s69 = sphi 0, %s67
    %s70 = sphi 0, %s69
    %s84 = sphi 0, %s70
    %s90 = sphi 0, %s92
    %s93 = sphi 0, %s90
    %s94 = sphi 0, %s93
    %s110 = sphi 0, %s94
    %s116 = sphi 0, %s118
    %s119 = sphi 0, %s116
    %s120 = sphi 0, %s119
    %s136 = sphi 0, %s120
    %s142 = sphi 0, %s144
    %s145 = sphi 0, %s142
    %s146 = sphi 0, %s145
    %s162 = sphi 0, %s146
  $region4: #{transformer_encoder_forward.13} parent=0 // loop_header_branch
    %15 = sbr.rel (%p13) target = $region8
  $region5: #{transformer_encoder_forward.13} parent=0 // loop_body
    %s17 = ssub.s32 %s12, 1
    %s18 = ssub.s32 %s12, 2
    %s19 = sadd.s32 %s12, 1
    %s20 = ssub.s32 %s12, %s19
    %p21 = scmp.eq.s32.totalorder %s20, 0
    %s23 = sadd.s32 %s22, 1
    %s24 = scalar_select %p21, %s22, %s23
    %p27 = pneg %p21
    %p28 = scmp.eq.s32.totalorder %s12, 1
    %p29 = por %p27, %p28
    %p30 = scmp.ne.s32.totalorder %s22, %s25
    %p31 = scmp.eq.s32.totalorder %s12, 0
    %p32 = por %p30, %p31
    %p33 = scmp.ne.s32.totalorder %s22, %s25
    %p34 = scmp.eq.s32.totalorder %s17, 1
    %p35 = por %p33, %p34
    %p36 = scmp.ne.s32.totalorder %s25, %s26
    %p37 = scmp.eq.s32.totalorder %s17, 0
    %p38 = por %p36, %p37
    %p39 = scmp.ne.s32.totalorder %s25, %s26
    %p40 = scmp.eq.s32.totalorder %s18, 1
    %p41 = por %p39, %p40
    %p43 = scmp.ne.s32.totalorder %s26, %s42
    %p44 = scmp.eq.s32.totalorder %s18, 0
    %p45 = por %p43, %p44
    %s47 = sadd.s32 %s46, 1
    %p50 = scmp.eq.s32.totalorder %s12, 1
    %p51 = scmp.ne.s32.totalorder %s46, %s48
    %p52 = scmp.eq.s32.totalorder %s12, 0
    %p53 = por %p51, %p52
    %p54 = scmp.ne.s32.totalorder %s46, %s48
    %p55 = scmp.eq.s32.totalorder %s17, 1
    %p56 = por %p54, %p55
    %p57 = scmp.ne.s32.totalorder %s48, %s49
    %p58 = scmp.eq.s32.totalorder %s17, 0
    %p59 = por %p57, %p58
    %p60 = scmp.ne.s32.totalorder %s48, %s49
    %p61 = scmp.eq.s32.totalorder %s18, 1
    %p62 = por %p60, %p61
    %p64 = scmp.ne.s32.totalorder %s49, %s63
    %p65 = scmp.eq.s32.totalorder %s18, 0
    %p66 = por %p64, %p65
    %s68 = sadd.s32 %s67, 1
    %p71 = scmp.eq.s32.totalorder %s12, 1
    %p72 = scmp.ne.s32.totalorder %s67, %s69
    %p73 = scmp.eq.s32.totalorder %s12, 0
    %p74 = por %p72, %p73
    %p75 = scmp.ne.s32.totalorder %s67, %s69
    %p76 = scmp.eq.s32.totalorder %s17, 1
    %p77 = por %p75, %p76
    %p78 = scmp.ne.s32.totalorder %s69, %s70
    %p79 = scmp.eq.s32.totalorder %s17, 0
    %p80 = por %p78, %p79
    %p81 = scmp.ne.s32.totalorder %s69, %s70
    %p82 = scmp.eq.s32.totalorder %s18, 1
    %p83 = por %p81, %p82
    %p85 = scmp.ne.s32.totalorder %s70, %s84
    %p86 = scmp.eq.s32.totalorder %s18, 0
    %p87 = por %p85, %p86
    %s88 = ssub.s32 %s12, %s19
    %p89 = scmp.eq.s32.totalorder %s88, 0
    %s91 = sadd.s32 %s90, 1
    %s92 = scalar_select %p89, %s90, %s91
    %p95 = pneg %p89
    %p96 = scmp.eq.s32.totalorder %s12, 1
    %p97 = por %p95, %p96
    %p98 = scmp.ne.s32.totalorder %s90, %s93
    %p99 = scmp.eq.s32.totalorder %s12, 0
    %p100 = por %p98, %p99
    %p101 = scmp.ne.s32.totalorder %s90, %s93
    %p102 = scmp.eq.s32.totalorder %s17, 1
    %p103 = por %p101, %p102
    %p104 = scmp.ne.s32.totalorder %s93, %s94
    %p105 = scmp.eq.s32.totalorder %s17, 0
    %p106 = por %p104, %p105
    %p107 = scmp.ne.s32.totalorder %s93, %s94
    %p108 = scmp.eq.s32.totalorder %s18, 1
    %p109 = por %p107, %p108
    %p111 = scmp.ne.s32.totalorder %s94, %s110
    %p112 = scmp.eq.s32.totalorder %s18, 0
    %p113 = por %p111, %p112
    %s114 = ssub.s32 %s12, %s19
    %p115 = scmp.eq.s32.totalorder %s114, 0
    %s117 = sadd.s32 %s116, 1
    %s118 = scalar_select %p115, %s116, %s117
    %p121 = pneg %p115
    %p122 = scmp.eq.s32.totalorder %s12, 1
    %p123 = por %p121, %p122
    %p124 = scmp.ne.s32.totalorder %s116, %s119
    %p125 = scmp.eq.s32.totalorder %s12, 0
    %p126 = por %p124, %p125
    %p127 = scmp.ne.s32.totalorder %s116, %s119
    %p128 = scmp.eq.s32.totalorder %s17, 1
    %p129 = por %p127, %p128
    %p130 = scmp.ne.s32.totalorder %s119, %s120
    %p131 = scmp.eq.s32.totalorder %s17, 0
    %p132 = por %p130, %p131
    %p133 = scmp.ne.s32.totalorder %s119, %s120
    %p134 = scmp.eq.s32.totalorder %s18, 1
    %p135 = por %p133, %p134
    %p137 = scmp.ne.s32.totalorder %s120, %s136
    %p138 = scmp.eq.s32.totalorder %s18, 0
    %p139 = por %p137, %p138
    %s140 = ssub.s32 %s12, %s19
    %p141 = scmp.eq.s32.totalorder %s140, 0
    %s143 = sadd.s32 %s142, 1
    %s144 = scalar_select %p141, %s142, %s143
    %p147 = pneg %p141
    %p148 = scmp.eq.s32.totalorder %s12, 1
    %p149 = por %p147, %p148
    %p150 = scmp.ne.s32.totalorder %s142, %s145
    %p151 = scmp.eq.s32.totalorder %s12, 0
    %p152 = por %p150, %p151
    %p153 = scmp.ne.s32.totalorder %s142, %s145
    %p154 = scmp.eq.s32.totalorder %s17, 1
    %p155 = por %p153, %p154
    %p156 = scmp.ne.s32.totalorder %s145, %s146
    %p157 = scmp.eq.s32.totalorder %s17, 0
    %p158 = por %p156, %p157
    %p159 = scmp.ne.s32.totalorder %s145, %s146
    %p160 = scmp.eq.s32.totalorder %s18, 1
    %p161 = por %p159, %p160
    %p163 = scmp.ne.s32.totalorder %s146, %s162
    %p164 = scmp.eq.s32.totalorder %s18, 0
    %p165 = por %p163, %p164
    %p166 = scmp.le.s32.totalorder 1, %s12
    %p167 = scmp.lt.s32.totalorder %s12, 3
    %p168 = pnand %p166, %p167
    %p169 = pneg %p168
    // Predicated region
    $region9: #{transformer_encoder_forward.13} parent=5 // pred_check
      _
    $region10: #{transformer_encoder_forward.13} parent=5 // pred_check_branch
      %171 = sbr.rel (%p168) target = $region12
    $region11: #{transformer_encoder_forward.13} parent=5 // pred_region
      %s172 = ssub.s32 %s12, 1
      // Predicated region
      $region13: #{transformer_encoder_forward.13} parent=11 // pred_check
        %p173 = pneg %p59
      $region14: #{transformer_encoder_forward.13} parent=11 // pred_check_branch
        %175 = sbr.rel (%p173) target = $region16
      $region15: #{transformer_encoder_forward.13} parent=11 // pred_region
        _
      $region16: #{transformer_encoder_forward.13} parent=11 // pred_fallthru
        _
      // Predicated region
      $region17: #{transformer_encoder_forward.13} parent=11 // pred_check
        %p176 = pneg %p80
      $region18: #{transformer_encoder_forward.13} parent=11 // pred_check_branch
        %178 = sbr.rel (%p176) target = $region20
      $region19: #{transformer_encoder_forward.13} parent=11 // pred_region
        _
      $region20: #{transformer_encoder_forward.13} parent=11 // pred_fallthru
        _
    $region12: #{transformer_encoder_forward.13} parent=5 // pred_fallthru
      _
    %p179 = scmp.lt.s32.totalorder %s12, 2
    // Predicated region
    $region21: #{transformer_encoder_forward.13} parent=5 // pred_check
      %p180 = pneg %p179
    $region22: #{transformer_encoder_forward.13} parent=5 // pred_check_branch
      %182 = sbr.rel (%p180) target = $region24
    $region23: #{transformer_encoder_forward.13} parent=5 // pred_region
      // Predicated region
      $region25: #{transformer_encoder_forward.13} parent=23 // pred_check
        %p183 = pneg %p32
      $region26: #{transformer_encoder_forward.13} parent=23 // pred_check_branch
        %185 = sbr.rel (%p183) target = $region28
      $region27: #{transformer_encoder_forward.13} parent=23 // pred_region
        %p186 = scmp.lt.s32.totalorder %s12, 1
        %s187 = scalar_select %p186, %s12, 1
        %s188 = smul.addr %s187, 4
        %s189 = scalar_lea.vmem %s0, %s188
      $region28: #{transformer_encoder_forward.13} parent=23 // pred_fallthru
        _
    $region24: #{transformer_encoder_forward.13} parent=5 // pred_fallthru
      _
    %p190 = scmp.le.s32.totalorder 1, %s12
    %p191 = scmp.lt.s32.totalorder %s12, 3
    %p192 = pnand %p190, %p191
    %p193 = pneg %p192
    // Predicated region
    $region29: #{transformer_encoder_forward.13} parent=5 // pred_check
      _
    $region30: #{transformer_encoder_forward.13} parent=5 // pred_check_branch
      %195 = sbr.rel (%p192) target = $region32
    $region31: #{transformer_encoder_forward.13} parent=5 // pred_region
      %s196 = ssub.s32 %s12, 1
      %p197 = scmp.lt.s32.totalorder %s17, 1
      %s198 = scalar_select %p197, %s17, 1
      %s199 = smul.addr %s198, 4
      %s200 = scalar_lea.vmem %s0, %s199
      %p201 = pneg %p38
      %p202 = pneg %p35
      %p203 = pneg %p59
      %p204 = pneg %p56
      %p205 = pneg %p80
      %p206 = pneg %p77
      %p207 = pneg %p106
      %p208 = pneg %p103
      %p209 = scmp.lt.s32.totalorder %s17, 1
      %s210 = scalar_select %p209, %s17, 1
      %s211 = smul.addr %s210, 4
      %s212 = scalar_lea.vmem %s3, %s211
      %p213 = pneg %p132
      %p214 = pneg %p129
      %p215 = scmp.lt.s32.totalorder %s17, 1
      %s216 = scalar_select %p215, %s17, 1
      %s217 = smul.addr %s216, 4
      %s218 = scalar_lea.vmem %s4, %s217
      %p219 = pneg %p158
      %p220 = pneg %p155
      %p221 = scmp.lt.s32.totalorder %s17, 1
      %s222 = scalar_select %p221, %s17, 1
      %s223 = smul.addr %s222, 4
      %s224 = scalar_lea.vmem %s5, %s223
      %p225 = scmp.lt.s32.totalorder %s17, 1
      %s226 = scalar_select %p225, %s17, 1
      %s227 = smul.addr %s226, 4
      %s228 = scalar_lea.vmem %s0, %s227
      %p229 = scmp.lt.s32.totalorder %s17, 1
      %s230 = scalar_select %p229, %s17, 1
      %s231 = smul.addr %s230, 4
      %s232 = scalar_lea.vmem %s3, %s231
      %p233 = scmp.lt.s32.totalorder %s17, 1
      %s234 = scalar_select %p233, %s17, 1
      %s235 = smul.addr %s234, 4
      %s236 = scalar_lea.vmem %s4, %s235
      %p237 = scmp.lt.s32.totalorder %s17, 1
      %s238 = scalar_select %p237, %s17, 1
      %s239 = smul.addr %s238, 4
      %s240 = scalar_lea.vmem %s5, %s239
      %v242 = vld [vmem:[%s228] sm:$0xf]
      %v243 = vld [vmem:[%s1] sm:$0xf]
      %v244 = vld [vmem:[%s1 + $0x4] sm:$0xf]
      %v245 = vld [vmem:[%s1 + $0x8] sm:$0xf]
      %v246 = vld [vmem:[%s1 + $0xc] sm:$0xf]
      %v247 = vld [vmem:[%s2] sm:$0x1]
      %v248 = vunpack.c.l.bf16 %v247
      %v249 = vlaneseq
      %v250 = vshrl.u32 %v249, 7
      %v251 = vsub.s32 0, %v250
      %v252 = vrot.slane %v248, %v251
      %v257 = vunpack.c.l.b16 %v243
      %v258 = vunpack.c.l.b16 %v244
      %v259 = vunpack.c.l.b16 %v245
      %v260 = vunpack.c.l.b16 %v246
      %v261 = vpack.c.b16 %v258, %v257
      %v262 = vpack.c.b16 %v260, %v259
      %vm265 = vcmask 261120
      %v267 = vsel %vm265, %v242, 0
      %269 = vmatprep.subr.bf16.mxu0 0
      %270 = vmatpush1.bf16.msra.mxu0 %v261
      %271 = vmatprep.subr.bf16.mxu0 0
      %272 = vmatpush1.bf16.msra.mxu0 %v262
      %273 = vmatprep.subr.bf16.mxu0 0
      %274 = vmatpush1.bf16.msra.mxu0 0
      %275 = vmatprep.subr.bf16.mxu0 0
      %276 = vmatpush1.bf16.msra.mxu0 0
      %277 = vmatprep.subr.bf16.mxu0 0
      %278 = vmatpush1.bf16.msra.mxu0 0
      %279 = vmatprep.subr.bf16.mxu0 0
      %280 = vmatpush1.bf16.msra.mxu0 0
      %281 = vmatprep.subr.bf16.mxu0 0
      %282 = vmatpush1.bf16.msra.mxu0 0
      %283 = vmatprep.subr.bf16.mxu0 0
      %284 = vmatpush1.bf16.msra.mxu0 0
      %285 = vmatprep.subr.bf16.mxu0 0
      %286 = vmatpush1.bf16.msra.mxu0 0
      %287 = vmatprep.subr.bf16.mxu0 0
      %288 = vmatpush1.bf16.msra.mxu0 0
      %289 = vmatprep.subr.bf16.mxu0 0
      %290 = vmatpush1.bf16.msra.mxu0 0
      %291 = vmatprep.subr.bf16.mxu0 0
      %292 = vmatpush1.bf16.msra.mxu0 0
      %293 = vmatprep.subr.bf16.mxu0 0
      %294 = vmatpush1.bf16.msra.mxu0 0
      %295 = vmatprep.subr.bf16.mxu0 0
      %296 = vmatpush1.bf16.msra.mxu0 0
      %297 = vmatprep.subr.bf16.mxu0 0
      %298 = vmatpush1.bf16.msra.mxu0 0
      %299 = vmatprep.subr.bf16.mxu0 0
      %300 = vmatpush1.bf16.msra.mxu0 0
      %301 = vmatprep.mubr.bf16.mxu0 0
      %302 = vmatmul.mubr.bf16.gmra.mrb[0].mxu0 %v267
      %v303 = vpop.f32.mrb[0].mxu0
      %v304 = vadd.f32 %v252, %v303
      %v305 = vpop.f32.mrb[0].mxu0
      %v306 = vpop.f32.mrb[0].mxu0
      %v307 = vpop.f32.mrb[0].mxu0
      %308 = vdwg.mxu0
      %v309 = vpack.c.bf16 %v304, %v304
      %vm310 = vcmask 257024
      %311 = vst.msk [vmem:[%s232] sm:$0xf] %vm310, %v309
      %v313 = vunpack.c.l.b16 %v309
      %v314 = vpack.c.b16 %v313, %v313
      %315 = vrot.lane.b32.xlu0 %v314, 96
      %v316 = vpop.permute.xlu0 %315
      %318 = vst.msk [vmem:[%s236] sm:$0xf] %vm310, %v316
      %319 = vrot.lane.b32.xlu0 %v314, 64
      %v320 = vpop.permute.xlu0 %319
      %322 = vst.msk [vmem:[%s240] sm:$0xf] %vm310, %v320
      %p323 = scmp.lt.s32.totalorder %s17, 1
      %s324 = scalar_select %p323, %s17, 1
      %s325 = smul.addr %s324, 4
      %s326 = scalar_lea.vmem %s3, %s325
      %p327 = scmp.lt.s32.totalorder %s17, 1
      %s328 = scalar_select %p327, %s17, 1
      %s329 = smul.addr %s328, 4
      %s330 = scalar_lea.vmem %s4, %s329
      %p331 = scmp.lt.s32.totalorder %s17, 1
      %s332 = scalar_select %p331, %s17, 1
      %s333 = smul.addr %s332, 4
      %s334 = scalar_lea.vmem %s5, %s333
      // Predicated region
      $region33: #{transformer_encoder_forward.13} parent=31 // pred_check
        %p335 = pneg %p103
      $region34: #{transformer_encoder_forward.13} parent=31 // pred_check_branch
        %337 = sbr.rel (%p335) target = $region36
      $region35: #{transformer_encoder_forward.13} parent=31 // pred_region
        _
      $region36: #{transformer_encoder_forward.13} parent=31 // pred_fallthru
        _
      // Predicated region
      $region37: #{transformer_encoder_forward.13} parent=31 // pred_check
        %p338 = pneg %p129
      $region38: #{transformer_encoder_forward.13} parent=31 // pred_check_branch
        %340 = sbr.rel (%p338) target = $region40
      $region39: #{transformer_encoder_forward.13} parent=31 // pred_region
        _
      $region40: #{transformer_encoder_forward.13} parent=31 // pred_fallthru
        _
      // Predicated region
      $region41: #{transformer_encoder_forward.13} parent=31 // pred_check
        %p341 = pneg %p155
      $region42: #{transformer_encoder_forward.13} parent=31 // pred_check_branch
        %343 = sbr.rel (%p341) target = $region44
      $region43: #{transformer_encoder_forward.13} parent=31 // pred_region
        _
      $region44: #{transformer_encoder_forward.13} parent=31 // pred_fallthru
        _
    $region32: #{transformer_encoder_forward.13} parent=5 // pred_fallthru
      _
    %p344 = scmp.le.s32.totalorder 2, %s12
    // Predicated region
    $region45: #{transformer_encoder_forward.13} parent=5 // pred_check
      %p345 = pneg %p344
    $region46: #{transformer_encoder_forward.13} parent=5 // pred_check_branch
      %347 = sbr.rel (%p345) target = $region48
    $region47: #{transformer_encoder_forward.13} parent=5 // pred_region
      %s348 = ssub.s32 %s12, 2
      // Predicated region
      $region49: #{transformer_encoder_forward.13} parent=47 // pred_check
        %p349 = pneg %p109
      $region50: #{transformer_encoder_forward.13} parent=47 // pred_check_branch
        %351 = sbr.rel (%p349) target = $region52
      $region51: #{transformer_encoder_forward.13} parent=47 // pred_region
        %p352 = scmp.lt.s32.totalorder %s18, 1
        %s353 = scalar_select %p352, %s18, 1
        %s354 = smul.addr %s353, 4
        %s355 = scalar_lea.vmem %s3, %s354
      $region52: #{transformer_encoder_forward.13} parent=47 // pred_fallthru
        _
      // Predicated region
      $region53: #{transformer_encoder_forward.13} parent=47 // pred_check
        %p356 = pneg %p135
      $region54: #{transformer_encoder_forward.13} parent=47 // pred_check_branch
        %358 = sbr.rel (%p356) target = $region56
      $region55: #{transformer_encoder_forward.13} parent=47 // pred_region
        %p359 = scmp.lt.s32.totalorder %s18, 1
        %s360 = scalar_select %p359, %s18, 1
        %s361 = smul.addr %s360, 4
        %s362 = scalar_lea.vmem %s4, %s361
      $region56: #{transformer_encoder_forward.13} parent=47 // pred_fallthru
        _
      // Predicated region
      $region57: #{transformer_encoder_forward.13} parent=47 // pred_check
        %p363 = pneg %p161
      $region58: #{transformer_encoder_forward.13} parent=47 // pred_check_branch
        %365 = sbr.rel (%p363) target = $region60
      $region59: #{transformer_encoder_forward.13} parent=47 // pred_region
        %p366 = scmp.lt.s32.totalorder %s18, 1
        %s367 = scalar_select %p366, %s18, 1
        %s368 = smul.addr %s367, 4
        %s369 = scalar_lea.vmem %s5, %s368
      $region60: #{transformer_encoder_forward.13} parent=47 // pred_fallthru
        _
    $region48: #{transformer_encoder_forward.13} parent=5 // pred_fallthru
      _
  $region6: #{transformer_encoder_forward.13} parent=0 // loop_footer
    %s16 = sadd.s32 1, %s12
  $region7: #{transformer_encoder_forward.13} parent=0 // loop_footer_branch
    %11 = sbr.rel target = $region3
  $region8: #{transformer_encoder_forward.13} parent=0 // loop_exit
    _

</llo_original>
